<compile_context>
chip_gen: v7x
topology: tpu7x:2x2x1
jax: 0.10.0
libtpu: 0.0.40
codegen_flags: <defaults>
</compile_context>

<pallas_src>
import math
import jax
import jax.numpy as jnp
from jax.experimental import pallas as pl
from jax.experimental.pallas import tpu as pltpu

# ---- synthetic small BERT config (shapes implied by the module) ----
VOCAB = 128
HIDDEN = 32
NUM_HEADS = 2
HEAD_DIM = HIDDEN // NUM_HEADS
INTER = 64
NUM_LAYERS = 2
SEQ = 8
BATCH = 2
LN_EPS = 1e-12  # BERT layer_norm_eps

LAYER_WEIGHT_NAMES = ("wq", "bq", "wk", "bk", "wv", "bv", "wo", "bo",
                      "g1", "b1", "wi", "bi", "wo2", "bo2", "g2", "b2")


def _layernorm(x, g, b):
    mu = jnp.mean(x, axis=-1, keepdims=True)
    var = jnp.mean((x - mu) ** 2, axis=-1, keepdims=True)
    return (x - mu) * jax.lax.rsqrt(var + LN_EPS) * g + b


def _gelu(x):
    # TODO(synk): HF BERT default hidden_act="gelu" is the exact erf-based GELU; tanh approximation
    # used here (erf is not guaranteed to lower through Mosaic on all TPU generations).
    return 0.5 * x * (1.0 + jnp.tanh(0.7978845608028654 * (x + 0.044715 * x * x * x)))


# ---------------- fused Pallas kernel ----------------

def fused_forward_kernel(plen_ref,                              # SMEM, scalar-prefetched (B,)
                         ids_ref,                               # (B*S, 1) int32 token ids
                         word_emb_ref, pos_emb_ref, type_emb_ref,
                         emb_g_ref, emb_b_ref,                  # embedding LayerNorm params
                         wq_ref, bq_ref, wk_ref, bk_ref, wv_ref, bv_ref,
                         wo_ref, bo_ref, g1_ref, b1_ref,
                         wi_ref, bi_ref, wo2_ref, bo2_ref, g2_ref, b2_ref,  # stacked (L, ...) layer params
                         lm_w_ref, lm_b_ref,                    # LM head
                         logits_ref):
    f32 = jnp.float32

    # --- embedding lookup as a one-hot MXU matmul (VOCAB == 128 == lane width) ---
    vocab_iota = jax.lax.broadcasted_iota(jnp.int32, (BATCH * SEQ, VOCAB), 1)
    onehot = (vocab_iota == ids_ref[...]).astype(f32)                         # (B*S, VOCAB)
    we = jnp.dot(onehot, word_emb_ref[...], preferred_element_type=f32)       # (B*S, H)
    emb = (we.reshape(BATCH, SEQ, HIDDEN)
           + pos_emb_ref[...][None]                                           # (1, S, H)
           + type_emb_ref[...][None]                                          # token_type_ids = 0
           ).reshape(BATCH * SEQ, HIDDEN)
    x = _layernorm(emb, emb_g_ref[...], emb_b_ref[...])

    # --- prefix-LM additive attention bias from scalar-prefetched prompt lengths ---
    # attend iff (row >= col) OR (col < prompt_len[b])  -> 0.0, else -1e9 (HF extended-mask semantics).
    rows = jax.lax.broadcasted_iota(jnp.int32, (SEQ, SEQ), 0)
    cols = jax.lax.broadcasted_iota(jnp.int32, (SEQ, SEQ), 1)
    neg = jnp.concatenate(
        [jnp.where(jnp.logical_or(rows >= cols, cols < plen_ref[b]),
                   jnp.float32(0.0), jnp.float32(-1e9))[None]
         for b in range(BATCH)],
        axis=0)                                                               # (B, S, S)

    scale = 1.0 / math.sqrt(HEAD_DIM)

    for l in range(NUM_LAYERS):                   # static unroll; all layer weights stay VMEM-resident
        # QKV projections over the whole batch at once; fold 1/sqrt(d) into q.
        q = (jnp.dot(x, wq_ref[l], preferred_element_type=f32) + bq_ref[l]) * scale
        k = jnp.dot(x, wk_ref[l], preferred_element_type=f32) + bk_ref[l]
        v = jnp.dot(x, wv_ref[l], preferred_element_type=f32) + bv_ref[l]

        q3 = q.reshape(BATCH, SEQ, HIDDEN)        # sublane split at an 8-aligned boundary
        k3 = k.reshape(BATCH, SEQ, HIDDEN)
        v3 = v.reshape(BATCH, SEQ, HIDDEN)

        ctx_heads = []
        for h in range(NUM_HEADS):                # static unroll over heads, batched over B
            sl = slice(h * HEAD_DIM, (h + 1) * HEAD_DIM)
            s = jnp.einsum('bqd,bkd->bqk', q3[:, :, sl], k3[:, :, sl],
                           preferred_element_type=f32) + neg
            s = s - jnp.max(s, axis=-1, keepdims=True)
            p = jnp.exp(s)
            p = p * pl.reciprocal(jnp.sum(p, axis=-1, keepdims=True), approx=True)
            ctx_heads.append(jnp.einsum('bqk,bkd->bqd', p, v3[:, :, sl],
                                        preferred_element_type=f32))

        ctx = jnp.concatenate(ctx_heads, axis=-1).reshape(BATCH * SEQ, HIDDEN)
        attn_out = jnp.dot(ctx, wo_ref[l], preferred_element_type=f32) + bo_ref[l]

        h1 = _layernorm(x + attn_out, g1_ref[l], b1_ref[l])
        ffn = _gelu(jnp.dot(h1, wi_ref[l], preferred_element_type=f32) + bi_ref[l])
        ffn = jnp.dot(ffn, wo2_ref[l], preferred_element_type=f32) + bo2_ref[l]
        x = _layernorm(h1 + ffn, g2_ref[l], b2_ref[l])

    # LM head: single lane-dense (B*S, VOCAB=128) store.
    logits_ref[...] = (jnp.dot(x, lm_w_ref[...], preferred_element_type=f32)
                       + lm_b_ref[...]).astype(logits_ref.dtype)


# ---------------- wrapper ----------------

def sft_forward(params, input_ids, prompt_lengths):
    # SFTLanguageModel.forward with attention_mask=None, labels=None -> returns logits
    B, S = input_ids.shape
    ids2d = input_ids.reshape(B * S, 1).astype(jnp.int32)

    # Stack per-layer weights along a leading L axis so a single kernel holds the whole encoder.
    stacked = [jnp.stack([lp[name] for lp in params["layers"]]) for name in LAYER_WEIGHT_NAMES]
    args = [ids2d, params["word_emb"], params["pos_emb"], params["type_emb"],
            params["emb_g"], params["emb_b"], *stacked, params["lm_w"], params["lm_b"]]

    in_specs = [pl.BlockSpec(a.shape, lambda i, plen, n=a.ndim: (0,) * n) for a in args]

    logits2d = pl.pallas_call(
        fused_forward_kernel,
        out_shape=jax.ShapeDtypeStruct((B * S, VOCAB), jnp.float32),
        grid_spec=pltpu.PrefetchScalarGridSpec(
            num_scalar_prefetch=1,          # prompt_lengths -> SMEM
            grid=(1,),                      # everything fits VMEM (<200 KB); single fused step
            in_specs=in_specs,
            out_specs=pl.BlockSpec((B * S, VOCAB), lambda i, plen: (0, 0)),
        ),
        compiler_params=pltpu.CompilerParams(dimension_semantics=("arbitrary",)),
    )(prompt_lengths.astype(jnp.int32), *args)

    return logits2d.reshape(B, S, VOCAB)
    # TODO(synk): labels branch (shifted CrossEntropyLoss, ignore_index=-100) not implemented; labels=None path only.


# ---------------- deterministic parameter init ----------------

def init_params(key):
    keys = iter(jax.random.split(key, 64))

    def nrm(shape):
        return jax.random.normal(next(keys), shape, jnp.float32) * 0.02

    params = dict(
        word_emb=nrm((VOCAB, HIDDEN)),
        pos_emb=nrm((SEQ, HIDDEN)),
        type_emb=nrm((1, HIDDEN)),
        emb_g=jnp.ones((1, HIDDEN), jnp.float32),
        emb_b=jnp.zeros((1, HIDDEN), jnp.float32),
        lm_w=nrm((HIDDEN, VOCAB)),            # nn.Linear(hidden, vocab), stored as (in, out)
        lm_b=jnp.zeros((1, VOCAB), jnp.float32),
        layers=[],
    )
    for _ in range(NUM_LAYERS):
        params["layers"].append(dict(
            wq=nrm((HIDDEN, HIDDEN)), bq=jnp.zeros((1, HIDDEN), jnp.float32),
            wk=nrm((HIDDEN, HIDDEN)), bk=jnp.zeros((1, HIDDEN), jnp.float32),
            wv=nrm((HIDDEN, HIDDEN)), bv=jnp.zeros((1, HIDDEN), jnp.float32),
            wo=nrm((HIDDEN, HIDDEN)), bo=jnp.zeros((1, HIDDEN), jnp.float32),
            g1=jnp.ones((1, HIDDEN), jnp.float32), b1=jnp.zeros((1, HIDDEN), jnp.float32),
            wi=nrm((HIDDEN, INTER)), bi=jnp.zeros((1, INTER), jnp.float32),
            wo2=nrm((INTER, HIDDEN)), bo2=jnp.zeros((1, HIDDEN), jnp.float32),
            g2=jnp.ones((1, HIDDEN), jnp.float32), b2=jnp.zeros((1, HIDDEN), jnp.float32),
        ))
    return params


if __name__ == "__main__":
    key = jax.random.PRNGKey(0)
    pkey, ikey = jax.random.split(key)
    params = init_params(pkey)

    input_ids = jax.random.randint(ikey, (BATCH, SEQ), 0, VOCAB, dtype=jnp.int32)
    prompt_lengths = jnp.array([3, 0], jnp.int32)

    logits = jax.jit(sft_forward)(params, input_ids, prompt_lengths)
    jax.block_until_ready(logits)
    assert logits.shape == (BATCH, SEQ, VOCAB)
    assert bool(jnp.all(jnp.isfinite(logits)))
    print("KERNEL_OK")
</pallas_src>

<mosaic_0001>
module attributes {stable_mosaic.version = 11 : i64} {
  func.func @fused_forward_kernel(%arg0: i32, %arg1: memref<2xi32, #tpu.memory_space<smem>>, %arg2: memref<16x1xi32, #tpu.memory_space<vmem>>, %arg3: memref<128x32xf32, #tpu.memory_space<vmem>>, %arg4: memref<8x32xf32, #tpu.memory_space<vmem>>, %arg5: memref<1x32xf32, #tpu.memory_space<vmem>>, %arg6: memref<1x32xf32, #tpu.memory_space<vmem>>, %arg7: memref<1x32xf32, #tpu.memory_space<vmem>>, %arg8: memref<2x32x32xf32, #tpu.memory_space<vmem>>, %arg9: memref<2x1x32xf32, #tpu.memory_space<vmem>>, %arg10: memref<2x32x32xf32, #tpu.memory_space<vmem>>, %arg11: memref<2x1x32xf32, #tpu.memory_space<vmem>>, %arg12: memref<2x32x32xf32, #tpu.memory_space<vmem>>, %arg13: memref<2x1x32xf32, #tpu.memory_space<vmem>>, %arg14: memref<2x32x32xf32, #tpu.memory_space<vmem>>, %arg15: memref<2x1x32xf32, #tpu.memory_space<vmem>>, %arg16: memref<2x1x32xf32, #tpu.memory_space<vmem>>, %arg17: memref<2x1x32xf32, #tpu.memory_space<vmem>>, %arg18: memref<2x32x64xf32, #tpu.memory_space<vmem>>, %arg19: memref<2x1x64xf32, #tpu.memory_space<vmem>>, %arg20: memref<2x64x32xf32, #tpu.memory_space<vmem>>, %arg21: memref<2x1x32xf32, #tpu.memory_space<vmem>>, %arg22: memref<2x1x32xf32, #tpu.memory_space<vmem>>, %arg23: memref<2x1x32xf32, #tpu.memory_space<vmem>>, %arg24: memref<32x128xf32, #tpu.memory_space<vmem>>, %arg25: memref<1x128xf32, #tpu.memory_space<vmem>>, %arg26: memref<16x128xf32, #tpu.memory_space<vmem>>) attributes {dimension_semantics = [#tpu.dimension_semantics<arbitrary>], iteration_bounds = array<i64: 1>, scalar_prefetch = 1 : i64, scratch_operands = 0 : i64, tpu.core_type = #tpu.core_type<tc>, window_params = [{pipeline_mode = #tpu.pipeline_mode<synchronous>, transform_indices = @transform_0, window_bounds = array<i64: 16, 1>}, {pipeline_mode = #tpu.pipeline_mode<synchronous>, transform_indices = @transform_1, window_bounds = array<i64: 128, 32>}, {pipeline_mode = #tpu.pipeline_mode<synchronous>, transform_indices = @transform_2, window_bounds = array<i64: 8, 32>}, {pipeline_mode = #tpu.pipeline_mode<synchronous>, transform_indices = @transform_3, window_bounds = array<i64: 1, 32>}, {pipeline_mode = #tpu.pipeline_mode<synchronous>, transform_indices = @transform_4, window_bounds = array<i64: 1, 32>}, {pipeline_mode = #tpu.pipeline_mode<synchronous>, transform_indices = @transform_5, window_bounds = array<i64: 1, 32>}, {pipeline_mode = #tpu.pipeline_mode<synchronous>, transform_indices = @transform_6, window_bounds = array<i64: 2, 32, 32>}, {pipeline_mode = #tpu.pipeline_mode<synchronous>, transform_indices = @transform_7, window_bounds = array<i64: 2, 1, 32>}, {pipeline_mode = #tpu.pipeline_mode<synchronous>, transform_indices = @transform_8, window_bounds = array<i64: 2, 32, 32>}, {pipeline_mode = #tpu.pipeline_mode<synchronous>, transform_indices = @transform_9, window_bounds = array<i64: 2, 1, 32>}, {pipeline_mode = #tpu.pipeline_mode<synchronous>, transform_indices = @transform_10, window_bounds = array<i64: 2, 32, 32>}, {pipeline_mode = #tpu.pipeline_mode<synchronous>, transform_indices = @transform_11, window_bounds = array<i64: 2, 1, 32>}, {pipeline_mode = #tpu.pipeline_mode<synchronous>, transform_indices = @transform_12, window_bounds = array<i64: 2, 32, 32>}, {pipeline_mode = #tpu.pipeline_mode<synchronous>, transform_indices = @transform_13, window_bounds = array<i64: 2, 1, 32>}, {pipeline_mode = #tpu.pipeline_mode<synchronous>, transform_indices = @transform_14, window_bounds = array<i64: 2, 1, 32>}, {pipeline_mode = #tpu.pipeline_mode<synchronous>, transform_indices = @transform_15, window_bounds = array<i64: 2, 1, 32>}, {pipeline_mode = #tpu.pipeline_mode<synchronous>, transform_indices = @transform_16, window_bounds = array<i64: 2, 32, 64>}, {pipeline_mode = #tpu.pipeline_mode<synchronous>, transform_indices = @transform_17, window_bounds = array<i64: 2, 1, 64>}, {pipeline_mode = #tpu.pipeline_mode<synchronous>, transform_indices = @transform_18, window_bounds = array<i64: 2, 64, 32>}, {pipeline_mode = #tpu.pipeline_mode<synchronous>, transform_indices = @transform_19, window_bounds = array<i64: 2, 1, 32>}, {pipeline_mode = #tpu.pipeline_mode<synchronous>, transform_indices = @transform_20, window_bounds = array<i64: 2, 1, 32>}, {pipeline_mode = #tpu.pipeline_mode<synchronous>, transform_indices = @transform_21, window_bounds = array<i64: 2, 1, 32>}, {pipeline_mode = #tpu.pipeline_mode<synchronous>, transform_indices = @transform_22, window_bounds = array<i64: 32, 128>}, {pipeline_mode = #tpu.pipeline_mode<synchronous>, transform_indices = @transform_23, window_bounds = array<i64: 1, 128>}, {pipeline_mode = #tpu.pipeline_mode<synchronous>, transform_indices = @transform_24, window_bounds = array<i64: 16, 128>}]} {
    %0 = tpu.iota {dimensions = array<i32: 1>} : vector<16x128xi32>
    %c0 = arith.constant 0 : index
    %c0_0 = arith.constant 0 : index
    %1 = vector.load %arg2[%c0, %c0_0] : memref<16x1xi32, #tpu.memory_space<vmem>>, vector<16x1xi32>
    %2 = vector.broadcast %1 : vector<16x1xi32> to vector<16x128xi32>
    %3 = arith.cmpi eq, %0, %2 : vector<16x128xi32>
    %4 = arith.extui %3 : vector<16x128xi1> to vector<16x128xi32>
    %5 = arith.sitofp %4 : vector<16x128xi32> to vector<16x128xf32>
    %c0_1 = arith.constant 0 : index
    %c0_2 = arith.constant 0 : index
    %6 = vector.load %arg3[%c0_1, %c0_2] : memref<128x32xf32, #tpu.memory_space<vmem>>, vector<128x32xf32>
    %cst = arith.constant dense<0.000000e+00> : vector<16x32xf32>
    %7 = tpu.matmul %5, %6, %cst {dimension_numbers = #tpu.dot_dimension_numbers<[1], [0], [0], [1], [0, 0, 1, 1], [], []>} : vector<16x128xf32>, vector<128x32xf32>, vector<16x32xf32> -> vector<16x32xf32>
    %8 = vector.shape_cast %7 : vector<16x32xf32> to vector<2x8x32xf32>
    %c0_3 = arith.constant 0 : index
    %c0_4 = arith.constant 0 : index
    %9 = vector.load %arg4[%c0_3, %c0_4] : memref<8x32xf32, #tpu.memory_space<vmem>>, vector<8x32xf32>
    %10 = vector.shape_cast %9 : vector<8x32xf32> to vector<1x8x32xf32>
    %11 = vector.broadcast %10 : vector<1x8x32xf32> to vector<2x8x32xf32>
    %12 = arith.addf %8, %11 : vector<2x8x32xf32>
    %c0_5 = arith.constant 0 : index
    %c0_6 = arith.constant 0 : index
    %13 = vector.load %arg5[%c0_5, %c0_6] : memref<1x32xf32, #tpu.memory_space<vmem>>, vector<1x32xf32>
    %14 = vector.shape_cast %13 : vector<1x32xf32> to vector<1x1x32xf32>
    %15 = vector.broadcast %14 : vector<1x1x32xf32> to vector<2x8x32xf32>
    %16 = arith.addf %12, %15 : vector<2x8x32xf32>
    %17 = vector.shape_cast %16 : vector<2x8x32xf32> to vector<16x32xf32>
    %c0_7 = arith.constant 0 : index
    %c0_8 = arith.constant 0 : index
    %18 = vector.load %arg6[%c0_7, %c0_8] : memref<1x32xf32, #tpu.memory_space<vmem>>, vector<1x32xf32>
    %c0_9 = arith.constant 0 : index
    %c0_10 = arith.constant 0 : index
    %19 = vector.load %arg7[%c0_9, %c0_10] : memref<1x32xf32, #tpu.memory_space<vmem>>, vector<1x32xf32>
    %cst_11 = arith.constant dense<0.000000e+00> : vector<16xf32>
    %20 = vector.multi_reduction <add>, %17, %cst_11 [1] : vector<16x32xf32> to vector<16xf32>
    %21 = vector.shape_cast %20 : vector<16xf32> to vector<16x1xf32>
    %cst_12 = arith.constant 3.200000e+01 : f32
    %22 = vector.broadcast %cst_12 : f32 to vector<16x1xf32>
    %23 = arith.divf %21, %22 : vector<16x1xf32>
    %24 = vector.broadcast %23 : vector<16x1xf32> to vector<16x32xf32>
    %25 = arith.subf %17, %24 : vector<16x32xf32>
    %26 = arith.mulf %25, %25 : vector<16x32xf32>
    %cst_13 = arith.constant dense<0.000000e+00> : vector<16xf32>
    %27 = vector.multi_reduction <add>, %26, %cst_13 [1] : vector<16x32xf32> to vector<16xf32>
    %28 = vector.shape_cast %27 : vector<16xf32> to vector<16x1xf32>
    %cst_14 = arith.constant 3.200000e+01 : f32
    %29 = vector.broadcast %cst_14 : f32 to vector<16x1xf32>
    %30 = arith.divf %28, %29 : vector<16x1xf32>
    %31 = vector.broadcast %23 : vector<16x1xf32> to vector<16x32xf32>
    %32 = arith.subf %17, %31 : vector<16x32xf32>
    %cst_15 = arith.constant 9.99999996E-13 : f32
    %33 = vector.broadcast %cst_15 : f32 to vector<16x1xf32>
    %34 = arith.addf %30, %33 : vector<16x1xf32>
    %35 = math.rsqrt %34 : vector<16x1xf32>
    %36 = vector.broadcast %35 : vector<16x1xf32> to vector<16x32xf32>
    %37 = arith.mulf %32, %36 : vector<16x32xf32>
    %38 = vector.broadcast %18 : vector<1x32xf32> to vector<16x32xf32>
    %39 = arith.mulf %37, %38 : vector<16x32xf32>
    %40 = vector.broadcast %19 : vector<1x32xf32> to vector<16x32xf32>
    %41 = arith.addf %39, %40 : vector<16x32xf32>
    %42 = tpu.iota {dimensions = array<i32: 0>} : vector<8x8xi32>
    %43 = tpu.iota {dimensions = array<i32: 1>} : vector<8x8xi32>
    %44 = arith.cmpi sge, %42, %43 : vector<8x8xi32>
    %c0_16 = arith.constant 0 : index
    %45 = memref.load %arg1[%c0_16] : memref<2xi32, #tpu.memory_space<smem>>
    %46 = vector.broadcast %45 : i32 to vector<8x8xi32>
    %47 = arith.cmpi slt, %43, %46 : vector<8x8xi32>
    %48 = arith.ori %44, %47 : vector<8x8xi1>
    %cst_17 = arith.constant 0.000000e+00 : f32
    %cst_18 = arith.constant -1.000000e+09 : f32
    %49 = vector.broadcast %cst_17 : f32 to vector<8x8xf32>
    %50 = vector.broadcast %cst_18 : f32 to vector<8x8xf32>
    %51 = arith.select %48, %49, %50 : vector<8x8xi1>, vector<8x8xf32>
    %52 = vector.shape_cast %51 : vector<8x8xf32> to vector<1x8x8xf32>
    %53 = arith.cmpi sge, %42, %43 : vector<8x8xi32>
    %c1 = arith.constant 1 : index
    %54 = memref.load %arg1[%c1] : memref<2xi32, #tpu.memory_space<smem>>
    %55 = vector.broadcast %54 : i32 to vector<8x8xi32>
    %56 = arith.cmpi slt, %43, %55 : vector<8x8xi32>
    %57 = arith.ori %53, %56 : vector<8x8xi1>
    %cst_19 = arith.constant 0.000000e+00 : f32
    %cst_20 = arith.constant -1.000000e+09 : f32
    %58 = vector.broadcast %cst_19 : f32 to vector<8x8xf32>
    %59 = vector.broadcast %cst_20 : f32 to vector<8x8xf32>
    %60 = arith.select %57, %58, %59 : vector<8x8xi1>, vector<8x8xf32>
    %61 = vector.shape_cast %60 : vector<8x8xf32> to vector<1x8x8xf32>
    %62 = tpu.concatenate %52, %61 in 0 : vector<1x8x8xf32>, vector<1x8x8xf32> -> vector<2x8x8xf32>
    %c0_21 = arith.constant 0 : index
    %c0_22 = arith.constant 0 : index
    %c0_23 = arith.constant 0 : index
    %63 = vector.load %arg8[%c0_21, %c0_22, %c0_23] : memref<2x32x32xf32, #tpu.memory_space<vmem>>, vector<1x32x32xf32>
    %64 = vector.shape_cast %63 : vector<1x32x32xf32> to vector<32x32xf32>
    %cst_24 = arith.constant dense<0.000000e+00> : vector<16x32xf32>
    %65 = tpu.matmul %41, %64, %cst_24 {dimension_numbers = #tpu.dot_dimension_numbers<[1], [0], [0], [1], [0, 0, 1, 1], [], []>} : vector<16x32xf32>, vector<32x32xf32>, vector<16x32xf32> -> vector<16x32xf32>
    %c0_25 = arith.constant 0 : index
    %c0_26 = arith.constant 0 : index
    %c0_27 = arith.constant 0 : index
    %66 = vector.load %arg9[%c0_25, %c0_26, %c0_27] : memref<2x1x32xf32, #tpu.memory_space<vmem>>, vector<1x1x32xf32>
    %67 = vector.shape_cast %66 : vector<1x1x32xf32> to vector<1x32xf32>
    %68 = vector.broadcast %67 : vector<1x32xf32> to vector<16x32xf32>
    %69 = arith.addf %65, %68 : vector<16x32xf32>
    %cst_28 = arith.constant 2.500000e-01 : f32
    %70 = vector.broadcast %cst_28 : f32 to vector<16x32xf32>
    %71 = arith.mulf %69, %70 : vector<16x32xf32>
    %c0_29 = arith.constant 0 : index
    %c0_30 = arith.constant 0 : index
    %c0_31 = arith.constant 0 : index
    %72 = vector.load %arg10[%c0_29, %c0_30, %c0_31] : memref<2x32x32xf32, #tpu.memory_space<vmem>>, vector<1x32x32xf32>
    %73 = vector.shape_cast %72 : vector<1x32x32xf32> to vector<32x32xf32>
    %cst_32 = arith.constant dense<0.000000e+00> : vector<16x32xf32>
    %74 = tpu.matmul %41, %73, %cst_32 {dimension_numbers = #tpu.dot_dimension_numbers<[1], [0], [0], [1], [0, 0, 1, 1], [], []>} : vector<16x32xf32>, vector<32x32xf32>, vector<16x32xf32> -> vector<16x32xf32>
    %c0_33 = arith.constant 0 : index
    %c0_34 = arith.constant 0 : index
    %c0_35 = arith.constant 0 : index
    %75 = vector.load %arg11[%c0_33, %c0_34, %c0_35] : memref<2x1x32xf32, #tpu.memory_space<vmem>>, vector<1x1x32xf32>
    %76 = vector.shape_cast %75 : vector<1x1x32xf32> to vector<1x32xf32>
    %77 = vector.broadcast %76 : vector<1x32xf32> to vector<16x32xf32>
    %78 = arith.addf %74, %77 : vector<16x32xf32>
    %c0_36 = arith.constant 0 : index
    %c0_37 = arith.constant 0 : index
    %c0_38 = arith.constant 0 : index
    %79 = vector.load %arg12[%c0_36, %c0_37, %c0_38] : memref<2x32x32xf32, #tpu.memory_space<vmem>>, vector<1x32x32xf32>
    %80 = vector.shape_cast %79 : vector<1x32x32xf32> to vector<32x32xf32>
    %cst_39 = arith.constant dense<0.000000e+00> : vector<16x32xf32>
    %81 = tpu.matmul %41, %80, %cst_39 {dimension_numbers = #tpu.dot_dimension_numbers<[1], [0], [0], [1], [0, 0, 1, 1], [], []>} : vector<16x32xf32>, vector<32x32xf32>, vector<16x32xf32> -> vector<16x32xf32>
    %c0_40 = arith.constant 0 : index
    %c0_41 = arith.constant 0 : index
    %c0_42 = arith.constant 0 : index
    %82 = vector.load %arg13[%c0_40, %c0_41, %c0_42] : memref<2x1x32xf32, #tpu.memory_space<vmem>>, vector<1x1x32xf32>
    %83 = vector.shape_cast %82 : vector<1x1x32xf32> to vector<1x32xf32>
    %84 = vector.broadcast %83 : vector<1x32xf32> to vector<16x32xf32>
    %85 = arith.addf %81, %84 : vector<16x32xf32>
    %86 = vector.shape_cast %71 : vector<16x32xf32> to vector<2x8x32xf32>
    %87 = vector.shape_cast %78 : vector<16x32xf32> to vector<2x8x32xf32>
    %88 = vector.shape_cast %85 : vector<16x32xf32> to vector<2x8x32xf32>
    %89 = vector.extract_strided_slice %86 {offsets = [0, 0, 0], sizes = [2, 8, 16], strides = [1, 1, 1]} : vector<2x8x32xf32> to vector<2x8x16xf32>
    %90 = vector.extract_strided_slice %87 {offsets = [0, 0, 0], sizes = [2, 8, 16], strides = [1, 1, 1]} : vector<2x8x32xf32> to vector<2x8x16xf32>
    "tpu.trace_start"() <{level = 10 : i32, message = "bqd,bkd->bqk"}> : () -> ()
    %cst_43 = arith.constant dense<0.000000e+00> : vector<2x8x8xf32>
    %91 = tpu.matmul %89, %90, %cst_43 {dimension_numbers = #tpu.dot_dimension_numbers<[2], [2], [1], [1], [0, 0, 0, 1, 1, 1], [0], [0]>} : vector<2x8x16xf32>, vector<2x8x16xf32>, vector<2x8x8xf32> -> vector<2x8x8xf32>
    "tpu.trace_stop"() : () -> ()
    %92 = arith.addf %91, %62 : vector<2x8x8xf32>
    %cst_44 = arith.constant dense<0xFF800000> : vector<2x8xf32>
    %93 = vector.multi_reduction <maximumf>, %92, %cst_44 [2] : vector<2x8x8xf32> to vector<2x8xf32>
    %94 = vector.shape_cast %93 : vector<2x8xf32> to vector<2x8x1xf32>
    %95 = vector.broadcast %94 : vector<2x8x1xf32> to vector<2x8x8xf32>
    %96 = arith.subf %92, %95 : vector<2x8x8xf32>
    %97 = math.exp %96 : vector<2x8x8xf32>
    %cst_45 = arith.constant dense<0.000000e+00> : vector<2x8xf32>
    %98 = vector.multi_reduction <add>, %97, %cst_45 [2] : vector<2x8x8xf32> to vector<2x8xf32>
    %99 = vector.shape_cast %98 : vector<2x8xf32> to vector<2x8x1xf32>
    %100 = tpu.reciprocal %99 {approx = true} : vector<2x8x1xf32> -> vector<2x8x1xf32>
    %101 = vector.broadcast %100 : vector<2x8x1xf32> to vector<2x8x8xf32>
    %102 = arith.mulf %97, %101 : vector<2x8x8xf32>
    %103 = vector.extract_strided_slice %88 {offsets = [0, 0, 0], sizes = [2, 8, 16], strides = [1, 1, 1]} : vector<2x8x32xf32> to vector<2x8x16xf32>
    "tpu.trace_start"() <{level = 10 : i32, message = "bqk,bkd->bqd"}> : () -> ()
    %cst_46 = arith.constant dense<0.000000e+00> : vector<2x8x16xf32>
    %104 = tpu.matmul %102, %103, %cst_46 {dimension_numbers = #tpu.dot_dimension_numbers<[2], [1], [1], [2], [0, 0, 0, 1, 1, 2], [0], [0]>} : vector<2x8x8xf32>, vector<2x8x16xf32>, vector<2x8x16xf32> -> vector<2x8x16xf32>
    "tpu.trace_stop"() : () -> ()
    %105 = vector.extract_strided_slice %86 {offsets = [0, 0, 16], sizes = [2, 8, 16], strides = [1, 1, 1]} : vector<2x8x32xf32> to vector<2x8x16xf32>
    %106 = vector.extract_strided_slice %87 {offsets = [0, 0, 16], sizes = [2, 8, 16], strides = [1, 1, 1]} : vector<2x8x32xf32> to vector<2x8x16xf32>
    "tpu.trace_start"() <{level = 10 : i32, message = "bqd,bkd->bqk"}> : () -> ()
    %cst_47 = arith.constant dense<0.000000e+00> : vector<2x8x8xf32>
    %107 = tpu.matmul %105, %106, %cst_47 {dimension_numbers = #tpu.dot_dimension_numbers<[2], [2], [1], [1], [0, 0, 0, 1, 1, 1], [0], [0]>} : vector<2x8x16xf32>, vector<2x8x16xf32>, vector<2x8x8xf32> -> vector<2x8x8xf32>
    "tpu.trace_stop"() : () -> ()
    %108 = arith.addf %107, %62 : vector<2x8x8xf32>
    %cst_48 = arith.constant dense<0xFF800000> : vector<2x8xf32>
    %109 = vector.multi_reduction <maximumf>, %108, %cst_48 [2] : vector<2x8x8xf32> to vector<2x8xf32>
    %110 = vector.shape_cast %109 : vector<2x8xf32> to vector<2x8x1xf32>
    %111 = vector.broadcast %110 : vector<2x8x1xf32> to vector<2x8x8xf32>
    %112 = arith.subf %108, %111 : vector<2x8x8xf32>
    %113 = math.exp %112 : vector<2x8x8xf32>
    %cst_49 = arith.constant dense<0.000000e+00> : vector<2x8xf32>
    %114 = vector.multi_reduction <add>, %113, %cst_49 [2] : vector<2x8x8xf32> to vector<2x8xf32>
    %115 = vector.shape_cast %114 : vector<2x8xf32> to vector<2x8x1xf32>
    %116 = tpu.reciprocal %115 {approx = true} : vector<2x8x1xf32> -> vector<2x8x1xf32>
    %117 = vector.broadcast %116 : vector<2x8x1xf32> to vector<2x8x8xf32>
    %118 = arith.mulf %113, %117 : vector<2x8x8xf32>
    %119 = vector.extract_strided_slice %88 {offsets = [0, 0, 16], sizes = [2, 8, 16], strides = [1, 1, 1]} : vector<2x8x32xf32> to vector<2x8x16xf32>
    "tpu.trace_start"() <{level = 10 : i32, message = "bqk,bkd->bqd"}> : () -> ()
    %cst_50 = arith.constant dense<0.000000e+00> : vector<2x8x16xf32>
    %120 = tpu.matmul %118, %119, %cst_50 {dimension_numbers = #tpu.dot_dimension_numbers<[2], [1], [1], [2], [0, 0, 0, 1, 1, 2], [0], [0]>} : vector<2x8x8xf32>, vector<2x8x16xf32>, vector<2x8x16xf32> -> vector<2x8x16xf32>
    "tpu.trace_stop"() : () -> ()
    %121 = tpu.concatenate %104, %120 in 2 : vector<2x8x16xf32>, vector<2x8x16xf32> -> vector<2x8x32xf32>
    %122 = vector.shape_cast %121 : vector<2x8x32xf32> to vector<16x32xf32>
    %c0_51 = arith.constant 0 : index
    %c0_52 = arith.constant 0 : index
    %c0_53 = arith.constant 0 : index
    %123 = vector.load %arg14[%c0_51, %c0_52, %c0_53] : memref<2x32x32xf32, #tpu.memory_space<vmem>>, vector<1x32x32xf32>
    %124 = vector.shape_cast %123 : vector<1x32x32xf32> to vector<32x32xf32>
    %cst_54 = arith.constant dense<0.000000e+00> : vector<16x32xf32>
    %125 = tpu.matmul %122, %124, %cst_54 {dimension_numbers = #tpu.dot_dimension_numbers<[1], [0], [0], [1], [0, 0, 1, 1], [], []>} : vector<16x32xf32>, vector<32x32xf32>, vector<16x32xf32> -> vector<16x32xf32>
    %c0_55 = arith.constant 0 : index
    %c0_56 = arith.constant 0 : index
    %c0_57 = arith.constant 0 : index
    %126 = vector.load %arg15[%c0_55, %c0_56, %c0_57] : memref<2x1x32xf32, #tpu.memory_space<vmem>>, vector<1x1x32xf32>
    %127 = vector.shape_cast %126 : vector<1x1x32xf32> to vector<1x32xf32>
    %128 = vector.broadcast %127 : vector<1x32xf32> to vector<16x32xf32>
    %129 = arith.addf %125, %128 : vector<16x32xf32>
    %130 = arith.addf %41, %129 : vector<16x32xf32>
    %c0_58 = arith.constant 0 : index
    %c0_59 = arith.constant 0 : index
    %c0_60 = arith.constant 0 : index
    %131 = vector.load %arg16[%c0_58, %c0_59, %c0_60] : memref<2x1x32xf32, #tpu.memory_space<vmem>>, vector<1x1x32xf32>
    %132 = vector.shape_cast %131 : vector<1x1x32xf32> to vector<1x32xf32>
    %c0_61 = arith.constant 0 : index
    %c0_62 = arith.constant 0 : index
    %c0_63 = arith.constant 0 : index
    %133 = vector.load %arg17[%c0_61, %c0_62, %c0_63] : memref<2x1x32xf32, #tpu.memory_space<vmem>>, vector<1x1x32xf32>
    %134 = vector.shape_cast %133 : vector<1x1x32xf32> to vector<1x32xf32>
    %cst_64 = arith.constant dense<0.000000e+00> : vector<16xf32>
    %135 = vector.multi_reduction <add>, %130, %cst_64 [1] : vector<16x32xf32> to vector<16xf32>
    %136 = vector.shape_cast %135 : vector<16xf32> to vector<16x1xf32>
    %cst_65 = arith.constant 3.200000e+01 : f32
    %137 = vector.broadcast %cst_65 : f32 to vector<16x1xf32>
    %138 = arith.divf %136, %137 : vector<16x1xf32>
    %139 = vector.broadcast %138 : vector<16x1xf32> to vector<16x32xf32>
    %140 = arith.subf %130, %139 : vector<16x32xf32>
    %141 = arith.mulf %140, %140 : vector<16x32xf32>
    %cst_66 = arith.constant dense<0.000000e+00> : vector<16xf32>
    %142 = vector.multi_reduction <add>, %141, %cst_66 [1] : vector<16x32xf32> to vector<16xf32>
    %143 = vector.shape_cast %142 : vector<16xf32> to vector<16x1xf32>
    %cst_67 = arith.constant 3.200000e+01 : f32
    %144 = vector.broadcast %cst_67 : f32 to vector<16x1xf32>
    %145 = arith.divf %143, %144 : vector<16x1xf32>
    %146 = vector.broadcast %138 : vector<16x1xf32> to vector<16x32xf32>
    %147 = arith.subf %130, %146 : vector<16x32xf32>
    %cst_68 = arith.constant 9.99999996E-13 : f32
    %148 = vector.broadcast %cst_68 : f32 to vector<16x1xf32>
    %149 = arith.addf %145, %148 : vector<16x1xf32>
    %150 = math.rsqrt %149 : vector<16x1xf32>
    %151 = vector.broadcast %150 : vector<16x1xf32> to vector<16x32xf32>
    %152 = arith.mulf %147, %151 : vector<16x32xf32>
    %153 = vector.broadcast %132 : vector<1x32xf32> to vector<16x32xf32>
    %154 = arith.mulf %152, %153 : vector<16x32xf32>
    %155 = vector.broadcast %134 : vector<1x32xf32> to vector<16x32xf32>
    %156 = arith.addf %154, %155 : vector<16x32xf32>
    %c0_69 = arith.constant 0 : index
    %c0_70 = arith.constant 0 : index
    %c0_71 = arith.constant 0 : index
    %157 = vector.load %arg18[%c0_69, %c0_70, %c0_71] : memref<2x32x64xf32, #tpu.memory_space<vmem>>, vector<1x32x64xf32>
    %158 = vector.shape_cast %157 : vector<1x32x64xf32> to vector<32x64xf32>
    %cst_72 = arith.constant dense<0.000000e+00> : vector<16x64xf32>
    %159 = tpu.matmul %156, %158, %cst_72 {dimension_numbers = #tpu.dot_dimension_numbers<[1], [0], [0], [1], [0, 0, 1, 1], [], []>} : vector<16x32xf32>, vector<32x64xf32>, vector<16x64xf32> -> vector<16x64xf32>
    %c0_73 = arith.constant 0 : index
    %c0_74 = arith.constant 0 : index
    %c0_75 = arith.constant 0 : index
    %160 = vector.load %arg19[%c0_73, %c0_74, %c0_75] : memref<2x1x64xf32, #tpu.memory_space<vmem>>, vector<1x1x64xf32>
    %161 = vector.shape_cast %160 : vector<1x1x64xf32> to vector<1x64xf32>
    %162 = vector.broadcast %161 : vector<1x64xf32> to vector<16x64xf32>
    %163 = arith.addf %159, %162 : vector<16x64xf32>
    %cst_76 = arith.constant 5.000000e-01 : f32
    %164 = vector.broadcast %cst_76 : f32 to vector<16x64xf32>
    %165 = arith.mulf %164, %163 : vector<16x64xf32>
    %cst_77 = arith.constant 4.471500e-02 : f32
    %166 = vector.broadcast %cst_77 : f32 to vector<16x64xf32>
    %167 = arith.mulf %166, %163 : vector<16x64xf32>
    %168 = arith.mulf %167, %163 : vector<16x64xf32>
    %169 = arith.mulf %168, %163 : vector<16x64xf32>
    %170 = arith.addf %163, %169 : vector<16x64xf32>
    %cst_78 = arith.constant 0.797884583 : f32
    %171 = vector.broadcast %cst_78 : f32 to vector<16x64xf32>
    %172 = arith.mulf %171, %170 : vector<16x64xf32>
    %173 = math.tanh %172 : vector<16x64xf32>
    %cst_79 = arith.constant 1.000000e+00 : f32
    %174 = vector.broadcast %cst_79 : f32 to vector<16x64xf32>
    %175 = arith.addf %174, %173 : vector<16x64xf32>
    %176 = arith.mulf %165, %175 : vector<16x64xf32>
    %c0_80 = arith.constant 0 : index
    %c0_81 = arith.constant 0 : index
    %c0_82 = arith.constant 0 : index
    %177 = vector.load %arg20[%c0_80, %c0_81, %c0_82] : memref<2x64x32xf32, #tpu.memory_space<vmem>>, vector<1x64x32xf32>
    %178 = vector.shape_cast %177 : vector<1x64x32xf32> to vector<64x32xf32>
    %cst_83 = arith.constant dense<0.000000e+00> : vector<16x32xf32>
    %179 = tpu.matmul %176, %178, %cst_83 {dimension_numbers = #tpu.dot_dimension_numbers<[1], [0], [0], [1], [0, 0, 1, 1], [], []>} : vector<16x64xf32>, vector<64x32xf32>, vector<16x32xf32> -> vector<16x32xf32>
    %c0_84 = arith.constant 0 : index
    %c0_85 = arith.constant 0 : index
    %c0_86 = arith.constant 0 : index
    %180 = vector.load %arg21[%c0_84, %c0_85, %c0_86] : memref<2x1x32xf32, #tpu.memory_space<vmem>>, vector<1x1x32xf32>
    %181 = vector.shape_cast %180 : vector<1x1x32xf32> to vector<1x32xf32>
    %182 = vector.broadcast %181 : vector<1x32xf32> to vector<16x32xf32>
    %183 = arith.addf %179, %182 : vector<16x32xf32>
    %184 = arith.addf %156, %183 : vector<16x32xf32>
    %c0_87 = arith.constant 0 : index
    %c0_88 = arith.constant 0 : index
    %c0_89 = arith.constant 0 : index
    %185 = vector.load %arg22[%c0_87, %c0_88, %c0_89] : memref<2x1x32xf32, #tpu.memory_space<vmem>>, vector<1x1x32xf32>
    %186 = vector.shape_cast %185 : vector<1x1x32xf32> to vector<1x32xf32>
    %c0_90 = arith.constant 0 : index
    %c0_91 = arith.constant 0 : index
    %c0_92 = arith.constant 0 : index
    %187 = vector.load %arg23[%c0_90, %c0_91, %c0_92] : memref<2x1x32xf32, #tpu.memory_space<vmem>>, vector<1x1x32xf32>
    %188 = vector.shape_cast %187 : vector<1x1x32xf32> to vector<1x32xf32>
    %cst_93 = arith.constant dense<0.000000e+00> : vector<16xf32>
    %189 = vector.multi_reduction <add>, %184, %cst_93 [1] : vector<16x32xf32> to vector<16xf32>
    %190 = vector.shape_cast %189 : vector<16xf32> to vector<16x1xf32>
    %cst_94 = arith.constant 3.200000e+01 : f32
    %191 = vector.broadcast %cst_94 : f32 to vector<16x1xf32>
    %192 = arith.divf %190, %191 : vector<16x1xf32>
    %193 = vector.broadcast %192 : vector<16x1xf32> to vector<16x32xf32>
    %194 = arith.subf %184, %193 : vector<16x32xf32>
    %195 = arith.mulf %194, %194 : vector<16x32xf32>
    %cst_95 = arith.constant dense<0.000000e+00> : vector<16xf32>
    %196 = vector.multi_reduction <add>, %195, %cst_95 [1] : vector<16x32xf32> to vector<16xf32>
    %197 = vector.shape_cast %196 : vector<16xf32> to vector<16x1xf32>
    %cst_96 = arith.constant 3.200000e+01 : f32
    %198 = vector.broadcast %cst_96 : f32 to vector<16x1xf32>
    %199 = arith.divf %197, %198 : vector<16x1xf32>
    %200 = vector.broadcast %192 : vector<16x1xf32> to vector<16x32xf32>
    %201 = arith.subf %184, %200 : vector<16x32xf32>
    %cst_97 = arith.constant 9.99999996E-13 : f32
    %202 = vector.broadcast %cst_97 : f32 to vector<16x1xf32>
    %203 = arith.addf %199, %202 : vector<16x1xf32>
    %204 = math.rsqrt %203 : vector<16x1xf32>
    %205 = vector.broadcast %204 : vector<16x1xf32> to vector<16x32xf32>
    %206 = arith.mulf %201, %205 : vector<16x32xf32>
    %207 = vector.broadcast %186 : vector<1x32xf32> to vector<16x32xf32>
    %208 = arith.mulf %206, %207 : vector<16x32xf32>
    %209 = vector.broadcast %188 : vector<1x32xf32> to vector<16x32xf32>
    %210 = arith.addf %208, %209 : vector<16x32xf32>
    %c1_98 = arith.constant 1 : index
    %c0_99 = arith.constant 0 : index
    %c0_100 = arith.constant 0 : index
    %211 = vector.load %arg8[%c1_98, %c0_99, %c0_100] : memref<2x32x32xf32, #tpu.memory_space<vmem>>, vector<1x32x32xf32>
    %212 = vector.shape_cast %211 : vector<1x32x32xf32> to vector<32x32xf32>
    %cst_101 = arith.constant dense<0.000000e+00> : vector<16x32xf32>
    %213 = tpu.matmul %210, %212, %cst_101 {dimension_numbers = #tpu.dot_dimension_numbers<[1], [0], [0], [1], [0, 0, 1, 1], [], []>} : vector<16x32xf32>, vector<32x32xf32>, vector<16x32xf32> -> vector<16x32xf32>
    %c1_102 = arith.constant 1 : index
    %c0_103 = arith.constant 0 : index
    %c0_104 = arith.constant 0 : index
    %214 = vector.load %arg9[%c1_102, %c0_103, %c0_104] : memref<2x1x32xf32, #tpu.memory_space<vmem>>, vector<1x1x32xf32>
    %215 = vector.shape_cast %214 : vector<1x1x32xf32> to vector<1x32xf32>
    %216 = vector.broadcast %215 : vector<1x32xf32> to vector<16x32xf32>
    %217 = arith.addf %213, %216 : vector<16x32xf32>
    %cst_105 = arith.constant 2.500000e-01 : f32
    %218 = vector.broadcast %cst_105 : f32 to vector<16x32xf32>
    %219 = arith.mulf %217, %218 : vector<16x32xf32>
    %c1_106 = arith.constant 1 : index
    %c0_107 = arith.constant 0 : index
    %c0_108 = arith.constant 0 : index
    %220 = vector.load %arg10[%c1_106, %c0_107, %c0_108] : memref<2x32x32xf32, #tpu.memory_space<vmem>>, vector<1x32x32xf32>
    %221 = vector.shape_cast %220 : vector<1x32x32xf32> to vector<32x32xf32>
    %cst_109 = arith.constant dense<0.000000e+00> : vector<16x32xf32>
    %222 = tpu.matmul %210, %221, %cst_109 {dimension_numbers = #tpu.dot_dimension_numbers<[1], [0], [0], [1], [0, 0, 1, 1], [], []>} : vector<16x32xf32>, vector<32x32xf32>, vector<16x32xf32> -> vector<16x32xf32>
    %c1_110 = arith.constant 1 : index
    %c0_111 = arith.constant 0 : index
    %c0_112 = arith.constant 0 : index
    %223 = vector.load %arg11[%c1_110, %c0_111, %c0_112] : memref<2x1x32xf32, #tpu.memory_space<vmem>>, vector<1x1x32xf32>
    %224 = vector.shape_cast %223 : vector<1x1x32xf32> to vector<1x32xf32>
    %225 = vector.broadcast %224 : vector<1x32xf32> to vector<16x32xf32>
    %226 = arith.addf %222, %225 : vector<16x32xf32>
    %c1_113 = arith.constant 1 : index
    %c0_114 = arith.constant 0 : index
    %c0_115 = arith.constant 0 : index
    %227 = vector.load %arg12[%c1_113, %c0_114, %c0_115] : memref<2x32x32xf32, #tpu.memory_space<vmem>>, vector<1x32x32xf32>
    %228 = vector.shape_cast %227 : vector<1x32x32xf32> to vector<32x32xf32>
    %cst_116 = arith.constant dense<0.000000e+00> : vector<16x32xf32>
    %229 = tpu.matmul %210, %228, %cst_116 {dimension_numbers = #tpu.dot_dimension_numbers<[1], [0], [0], [1], [0, 0, 1, 1], [], []>} : vector<16x32xf32>, vector<32x32xf32>, vector<16x32xf32> -> vector<16x32xf32>
    %c1_117 = arith.constant 1 : index
    %c0_118 = arith.constant 0 : index
    %c0_119 = arith.constant 0 : index
    %230 = vector.load %arg13[%c1_117, %c0_118, %c0_119] : memref<2x1x32xf32, #tpu.memory_space<vmem>>, vector<1x1x32xf32>
    %231 = vector.shape_cast %230 : vector<1x1x32xf32> to vector<1x32xf32>
    %232 = vector.broadcast %231 : vector<1x32xf32> to vector<16x32xf32>
    %233 = arith.addf %229, %232 : vector<16x32xf32>
    %234 = vector.shape_cast %219 : vector<16x32xf32> to vector<2x8x32xf32>
    %235 = vector.shape_cast %226 : vector<16x32xf32> to vector<2x8x32xf32>
    %236 = vector.shape_cast %233 : vector<16x32xf32> to vector<2x8x32xf32>
    %237 = vector.extract_strided_slice %234 {offsets = [0, 0, 0], sizes = [2, 8, 16], strides = [1, 1, 1]} : vector<2x8x32xf32> to vector<2x8x16xf32>
    %238 = vector.extract_strided_slice %235 {offsets = [0, 0, 0], sizes = [2, 8, 16], strides = [1, 1, 1]} : vector<2x8x32xf32> to vector<2x8x16xf32>
    "tpu.trace_start"() <{level = 10 : i32, message = "bqd,bkd->bqk"}> : () -> ()
    %cst_120 = arith.constant dense<0.000000e+00> : vector<2x8x8xf32>
    %239 = tpu.matmul %237, %238, %cst_120 {dimension_numbers = #tpu.dot_dimension_numbers<[2], [2], [1], [1], [0, 0, 0, 1, 1, 1], [0], [0]>} : vector<2x8x16xf32>, vector<2x8x16xf32>, vector<2x8x8xf32> -> vector<2x8x8xf32>
    "tpu.trace_stop"() : () -> ()
    %240 = arith.addf %239, %62 : vector<2x8x8xf32>
    %cst_121 = arith.constant dense<0xFF800000> : vector<2x8xf32>
    %241 = vector.multi_reduction <maximumf>, %240, %cst_121 [2] : vector<2x8x8xf32> to vector<2x8xf32>
    %242 = vector.shape_cast %241 : vector<2x8xf32> to vector<2x8x1xf32>
    %243 = vector.broadcast %242 : vector<2x8x1xf32> to vector<2x8x8xf32>
    %244 = arith.subf %240, %243 : vector<2x8x8xf32>
    %245 = math.exp %244 : vector<2x8x8xf32>
    %cst_122 = arith.constant dense<0.000000e+00> : vector<2x8xf32>
    %246 = vector.multi_reduction <add>, %245, %cst_122 [2] : vector<2x8x8xf32> to vector<2x8xf32>
    %247 = vector.shape_cast %246 : vector<2x8xf32> to vector<2x8x1xf32>
    %248 = tpu.reciprocal %247 {approx = true} : vector<2x8x1xf32> -> vector<2x8x1xf32>
    %249 = vector.broadcast %248 : vector<2x8x1xf32> to vector<2x8x8xf32>
    %250 = arith.mulf %245, %249 : vector<2x8x8xf32>
    %251 = vector.extract_strided_slice %236 {offsets = [0, 0, 0], sizes = [2, 8, 16], strides = [1, 1, 1]} : vector<2x8x32xf32> to vector<2x8x16xf32>
    "tpu.trace_start"() <{level = 10 : i32, message = "bqk,bkd->bqd"}> : () -> ()
    %cst_123 = arith.constant dense<0.000000e+00> : vector<2x8x16xf32>
    %252 = tpu.matmul %250, %251, %cst_123 {dimension_numbers = #tpu.dot_dimension_numbers<[2], [1], [1], [2], [0, 0, 0, 1, 1, 2], [0], [0]>} : vector<2x8x8xf32>, vector<2x8x16xf32>, vector<2x8x16xf32> -> vector<2x8x16xf32>
    "tpu.trace_stop"() : () -> ()
    %253 = vector.extract_strided_slice %234 {offsets = [0, 0, 16], sizes = [2, 8, 16], strides = [1, 1, 1]} : vector<2x8x32xf32> to vector<2x8x16xf32>
    %254 = vector.extract_strided_slice %235 {offsets = [0, 0, 16], sizes = [2, 8, 16], strides = [1, 1, 1]} : vector<2x8x32xf32> to vector<2x8x16xf32>
    "tpu.trace_start"() <{level = 10 : i32, message = "bqd,bkd->bqk"}> : () -> ()
    %cst_124 = arith.constant dense<0.000000e+00> : vector<2x8x8xf32>
    %255 = tpu.matmul %253, %254, %cst_124 {dimension_numbers = #tpu.dot_dimension_numbers<[2], [2], [1], [1], [0, 0, 0, 1, 1, 1], [0], [0]>} : vector<2x8x16xf32>, vector<2x8x16xf32>, vector<2x8x8xf32> -> vector<2x8x8xf32>
    "tpu.trace_stop"() : () -> ()
    %256 = arith.addf %255, %62 : vector<2x8x8xf32>
    %cst_125 = arith.constant dense<0xFF800000> : vector<2x8xf32>
    %257 = vector.multi_reduction <maximumf>, %256, %cst_125 [2] : vector<2x8x8xf32> to vector<2x8xf32>
    %258 = vector.shape_cast %257 : vector<2x8xf32> to vector<2x8x1xf32>
    %259 = vector.broadcast %258 : vector<2x8x1xf32> to vector<2x8x8xf32>
    %260 = arith.subf %256, %259 : vector<2x8x8xf32>
    %261 = math.exp %260 : vector<2x8x8xf32>
    %cst_126 = arith.constant dense<0.000000e+00> : vector<2x8xf32>
    %262 = vector.multi_reduction <add>, %261, %cst_126 [2] : vector<2x8x8xf32> to vector<2x8xf32>
    %263 = vector.shape_cast %262 : vector<2x8xf32> to vector<2x8x1xf32>
    %264 = tpu.reciprocal %263 {approx = true} : vector<2x8x1xf32> -> vector<2x8x1xf32>
    %265 = vector.broadcast %264 : vector<2x8x1xf32> to vector<2x8x8xf32>
    %266 = arith.mulf %261, %265 : vector<2x8x8xf32>
    %267 = vector.extract_strided_slice %236 {offsets = [0, 0, 16], sizes = [2, 8, 16], strides = [1, 1, 1]} : vector<2x8x32xf32> to vector<2x8x16xf32>
    "tpu.trace_start"() <{level = 10 : i32, message = "bqk,bkd->bqd"}> : () -> ()
    %cst_127 = arith.constant dense<0.000000e+00> : vector<2x8x16xf32>
    %268 = tpu.matmul %266, %267, %cst_127 {dimension_numbers = #tpu.dot_dimension_numbers<[2], [1], [1], [2], [0, 0, 0, 1, 1, 2], [0], [0]>} : vector<2x8x8xf32>, vector<2x8x16xf32>, vector<2x8x16xf32> -> vector<2x8x16xf32>
    "tpu.trace_stop"() : () -> ()
    %269 = tpu.concatenate %252, %268 in 2 : vector<2x8x16xf32>, vector<2x8x16xf32> -> vector<2x8x32xf32>
    %270 = vector.shape_cast %269 : vector<2x8x32xf32> to vector<16x32xf32>
    %c1_128 = arith.constant 1 : index
    %c0_129 = arith.constant 0 : index
    %c0_130 = arith.constant 0 : index
    %271 = vector.load %arg14[%c1_128, %c0_129, %c0_130] : memref<2x32x32xf32, #tpu.memory_space<vmem>>, vector<1x32x32xf32>
    %272 = vector.shape_cast %271 : vector<1x32x32xf32> to vector<32x32xf32>
    %cst_131 = arith.constant dense<0.000000e+00> : vector<16x32xf32>
    %273 = tpu.matmul %270, %272, %cst_131 {dimension_numbers = #tpu.dot_dimension_numbers<[1], [0], [0], [1], [0, 0, 1, 1], [], []>} : vector<16x32xf32>, vector<32x32xf32>, vector<16x32xf32> -> vector<16x32xf32>
    %c1_132 = arith.constant 1 : index
    %c0_133 = arith.constant 0 : index
    %c0_134 = arith.constant 0 : index
    %274 = vector.load %arg15[%c1_132, %c0_133, %c0_134] : memref<2x1x32xf32, #tpu.memory_space<vmem>>, vector<1x1x32xf32>
    %275 = vector.shape_cast %274 : vector<1x1x32xf32> to vector<1x32xf32>
    %276 = vector.broadcast %275 : vector<1x32xf32> to vector<16x32xf32>
    %277 = arith.addf %273, %276 : vector<16x32xf32>
    %278 = arith.addf %210, %277 : vector<16x32xf32>
    %c1_135 = arith.constant 1 : index
    %c0_136 = arith.constant 0 : index
    %c0_137 = arith.constant 0 : index
    %279 = vector.load %arg16[%c1_135, %c0_136, %c0_137] : memref<2x1x32xf32, #tpu.memory_space<vmem>>, vector<1x1x32xf32>
    %280 = vector.shape_cast %279 : vector<1x1x32xf32> to vector<1x32xf32>
    %c1_138 = arith.constant 1 : index
    %c0_139 = arith.constant 0 : index
    %c0_140 = arith.constant 0 : index
    %281 = vector.load %arg17[%c1_138, %c0_139, %c0_140] : memref<2x1x32xf32, #tpu.memory_space<vmem>>, vector<1x1x32xf32>
    %282 = vector.shape_cast %281 : vector<1x1x32xf32> to vector<1x32xf32>
    %cst_141 = arith.constant dense<0.000000e+00> : vector<16xf32>
    %283 = vector.multi_reduction <add>, %278, %cst_141 [1] : vector<16x32xf32> to vector<16xf32>
    %284 = vector.shape_cast %283 : vector<16xf32> to vector<16x1xf32>
    %cst_142 = arith.constant 3.200000e+01 : f32
    %285 = vector.broadcast %cst_142 : f32 to vector<16x1xf32>
    %286 = arith.divf %284, %285 : vector<16x1xf32>
    %287 = vector.broadcast %286 : vector<16x1xf32> to vector<16x32xf32>
    %288 = arith.subf %278, %287 : vector<16x32xf32>
    %289 = arith.mulf %288, %288 : vector<16x32xf32>
    %cst_143 = arith.constant dense<0.000000e+00> : vector<16xf32>
    %290 = vector.multi_reduction <add>, %289, %cst_143 [1] : vector<16x32xf32> to vector<16xf32>
    %291 = vector.shape_cast %290 : vector<16xf32> to vector<16x1xf32>
    %cst_144 = arith.constant 3.200000e+01 : f32
    %292 = vector.broadcast %cst_144 : f32 to vector<16x1xf32>
    %293 = arith.divf %291, %292 : vector<16x1xf32>
    %294 = vector.broadcast %286 : vector<16x1xf32> to vector<16x32xf32>
    %295 = arith.subf %278, %294 : vector<16x32xf32>
    %cst_145 = arith.constant 9.99999996E-13 : f32
    %296 = vector.broadcast %cst_145 : f32 to vector<16x1xf32>
    %297 = arith.addf %293, %296 : vector<16x1xf32>
    %298 = math.rsqrt %297 : vector<16x1xf32>
    %299 = vector.broadcast %298 : vector<16x1xf32> to vector<16x32xf32>
    %300 = arith.mulf %295, %299 : vector<16x32xf32>
    %301 = vector.broadcast %280 : vector<1x32xf32> to vector<16x32xf32>
    %302 = arith.mulf %300, %301 : vector<16x32xf32>
    %303 = vector.broadcast %282 : vector<1x32xf32> to vector<16x32xf32>
    %304 = arith.addf %302, %303 : vector<16x32xf32>
    %c1_146 = arith.constant 1 : index
    %c0_147 = arith.constant 0 : index
    %c0_148 = arith.constant 0 : index
    %305 = vector.load %arg18[%c1_146, %c0_147, %c0_148] : memref<2x32x64xf32, #tpu.memory_space<vmem>>, vector<1x32x64xf32>
    %306 = vector.shape_cast %305 : vector<1x32x64xf32> to vector<32x64xf32>
    %cst_149 = arith.constant dense<0.000000e+00> : vector<16x64xf32>
    %307 = tpu.matmul %304, %306, %cst_149 {dimension_numbers = #tpu.dot_dimension_numbers<[1], [0], [0], [1], [0, 0, 1, 1], [], []>} : vector<16x32xf32>, vector<32x64xf32>, vector<16x64xf32> -> vector<16x64xf32>
    %c1_150 = arith.constant 1 : index
    %c0_151 = arith.constant 0 : index
    %c0_152 = arith.constant 0 : index
    %308 = vector.load %arg19[%c1_150, %c0_151, %c0_152] : memref<2x1x64xf32, #tpu.memory_space<vmem>>, vector<1x1x64xf32>
    %309 = vector.shape_cast %308 : vector<1x1x64xf32> to vector<1x64xf32>
    %310 = vector.broadcast %309 : vector<1x64xf32> to vector<16x64xf32>
    %311 = arith.addf %307, %310 : vector<16x64xf32>
    %cst_153 = arith.constant 5.000000e-01 : f32
    %312 = vector.broadcast %cst_153 : f32 to vector<16x64xf32>
    %313 = arith.mulf %312, %311 : vector<16x64xf32>
    %cst_154 = arith.constant 4.471500e-02 : f32
    %314 = vector.broadcast %cst_154 : f32 to vector<16x64xf32>
    %315 = arith.mulf %314, %311 : vector<16x64xf32>
    %316 = arith.mulf %315, %311 : vector<16x64xf32>
    %317 = arith.mulf %316, %311 : vector<16x64xf32>
    %318 = arith.addf %311, %317 : vector<16x64xf32>
    %cst_155 = arith.constant 0.797884583 : f32
    %319 = vector.broadcast %cst_155 : f32 to vector<16x64xf32>
    %320 = arith.mulf %319, %318 : vector<16x64xf32>
    %321 = math.tanh %320 : vector<16x64xf32>
    %cst_156 = arith.constant 1.000000e+00 : f32
    %322 = vector.broadcast %cst_156 : f32 to vector<16x64xf32>
    %323 = arith.addf %322, %321 : vector<16x64xf32>
    %324 = arith.mulf %313, %323 : vector<16x64xf32>
    %c1_157 = arith.constant 1 : index
    %c0_158 = arith.constant 0 : index
    %c0_159 = arith.constant 0 : index
    %325 = vector.load %arg20[%c1_157, %c0_158, %c0_159] : memref<2x64x32xf32, #tpu.memory_space<vmem>>, vector<1x64x32xf32>
    %326 = vector.shape_cast %325 : vector<1x64x32xf32> to vector<64x32xf32>
    %cst_160 = arith.constant dense<0.000000e+00> : vector<16x32xf32>
    %327 = tpu.matmul %324, %326, %cst_160 {dimension_numbers = #tpu.dot_dimension_numbers<[1], [0], [0], [1], [0, 0, 1, 1], [], []>} : vector<16x64xf32>, vector<64x32xf32>, vector<16x32xf32> -> vector<16x32xf32>
    %c1_161 = arith.constant 1 : index
    %c0_162 = arith.constant 0 : index
    %c0_163 = arith.constant 0 : index
    %328 = vector.load %arg21[%c1_161, %c0_162, %c0_163] : memref<2x1x32xf32, #tpu.memory_space<vmem>>, vector<1x1x32xf32>
    %329 = vector.shape_cast %328 : vector<1x1x32xf32> to vector<1x32xf32>
    %330 = vector.broadcast %329 : vector<1x32xf32> to vector<16x32xf32>
    %331 = arith.addf %327, %330 : vector<16x32xf32>
    %332 = arith.addf %304, %331 : vector<16x32xf32>
    %c1_164 = arith.constant 1 : index
    %c0_165 = arith.constant 0 : index
    %c0_166 = arith.constant 0 : index
    %333 = vector.load %arg22[%c1_164, %c0_165, %c0_166] : memref<2x1x32xf32, #tpu.memory_space<vmem>>, vector<1x1x32xf32>
    %334 = vector.shape_cast %333 : vector<1x1x32xf32> to vector<1x32xf32>
    %c1_167 = arith.constant 1 : index
    %c0_168 = arith.constant 0 : index
    %c0_169 = arith.constant 0 : index
    %335 = vector.load %arg23[%c1_167, %c0_168, %c0_169] : memref<2x1x32xf32, #tpu.memory_space<vmem>>, vector<1x1x32xf32>
    %336 = vector.shape_cast %335 : vector<1x1x32xf32> to vector<1x32xf32>
    %cst_170 = arith.constant dense<0.000000e+00> : vector<16xf32>
    %337 = vector.multi_reduction <add>, %332, %cst_170 [1] : vector<16x32xf32> to vector<16xf32>
    %338 = vector.shape_cast %337 : vector<16xf32> to vector<16x1xf32>
    %cst_171 = arith.constant 3.200000e+01 : f32
    %339 = vector.broadcast %cst_171 : f32 to vector<16x1xf32>
    %340 = arith.divf %338, %339 : vector<16x1xf32>
    %341 = vector.broadcast %340 : vector<16x1xf32> to vector<16x32xf32>
    %342 = arith.subf %332, %341 : vector<16x32xf32>
    %343 = arith.mulf %342, %342 : vector<16x32xf32>
    %cst_172 = arith.constant dense<0.000000e+00> : vector<16xf32>
    %344 = vector.multi_reduction <add>, %343, %cst_172 [1] : vector<16x32xf32> to vector<16xf32>
    %345 = vector.shape_cast %344 : vector<16xf32> to vector<16x1xf32>
    %cst_173 = arith.constant 3.200000e+01 : f32
    %346 = vector.broadcast %cst_173 : f32 to vector<16x1xf32>
    %347 = arith.divf %345, %346 : vector<16x1xf32>
    %348 = vector.broadcast %340 : vector<16x1xf32> to vector<16x32xf32>
    %349 = arith.subf %332, %348 : vector<16x32xf32>
    %cst_174 = arith.constant 9.99999996E-13 : f32
    %350 = vector.broadcast %cst_174 : f32 to vector<16x1xf32>
    %351 = arith.addf %347, %350 : vector<16x1xf32>
    %352 = math.rsqrt %351 : vector<16x1xf32>
    %353 = vector.broadcast %352 : vector<16x1xf32> to vector<16x32xf32>
    %354 = arith.mulf %349, %353 : vector<16x32xf32>
    %355 = vector.broadcast %334 : vector<1x32xf32> to vector<16x32xf32>
    %356 = arith.mulf %354, %355 : vector<16x32xf32>
    %357 = vector.broadcast %336 : vector<1x32xf32> to vector<16x32xf32>
    %358 = arith.addf %356, %357 : vector<16x32xf32>
    %c0_175 = arith.constant 0 : index
    %c0_176 = arith.constant 0 : index
    %359 = vector.load %arg24[%c0_175, %c0_176] : memref<32x128xf32, #tpu.memory_space<vmem>>, vector<32x128xf32>
    %cst_177 = arith.constant dense<0.000000e+00> : vector<16x128xf32>
    %360 = tpu.matmul %358, %359, %cst_177 {dimension_numbers = #tpu.dot_dimension_numbers<[1], [0], [0], [1], [0, 0, 1, 1], [], []>} : vector<16x32xf32>, vector<32x128xf32>, vector<16x128xf32> -> vector<16x128xf32>
    %c0_178 = arith.constant 0 : index
    %c0_179 = arith.constant 0 : index
    %361 = vector.load %arg25[%c0_178, %c0_179] : memref<1x128xf32, #tpu.memory_space<vmem>>, vector<1x128xf32>
    %362 = vector.broadcast %361 : vector<1x128xf32> to vector<16x128xf32>
    %363 = arith.addf %360, %362 : vector<16x128xf32>
    %c0_180 = arith.constant 0 : index
    %c0_181 = arith.constant 0 : index
    %364 = vector.load %arg26[%c0_180, %c0_181] : memref<16x128xf32, #tpu.memory_space<vmem>>, vector<16x128xf32>
    tpu.vector_store %arg26[%c0_180, %c0_181], %363 {strides = array<i32>} : memref<16x128xf32, #tpu.memory_space<vmem>>, vector<16x128xf32>,
    return
  }
  func.func @transform_0(%arg0: i32, %arg1: memref<2xi32, #tpu.memory_space<smem>>) -> (i32, i32) {
    %c0_i32 = arith.constant 0 : i32
    %c0_i32_0 = arith.constant 0 : i32
    %c0_i32_1 = arith.constant 0 : i32
    return %c0_i32, %c0_i32_0 : i32, i32
  }
  func.func @transform_1(%arg0: i32, %arg1: memref<2xi32, #tpu.memory_space<smem>>) -> (i32, i32) {
    %c0_i32 = arith.constant 0 : i32
    %c0_i32_0 = arith.constant 0 : i32
    %c0_i32_1 = arith.constant 0 : i32
    return %c0_i32, %c0_i32_0 : i32, i32
  }
  func.func @transform_2(%arg0: i32, %arg1: memref<2xi32, #tpu.memory_space<smem>>) -> (i32, i32) {
    %c0_i32 = arith.constant 0 : i32
    %c0_i32_0 = arith.constant 0 : i32
    %c0_i32_1 = arith.constant 0 : i32
    return %c0_i32, %c0_i32_0 : i32, i32
  }
  func.func @transform_3(%arg0: i32, %arg1: memref<2xi32, #tpu.memory_space<smem>>) -> (i32, i32) {
    %c0_i32 = arith.constant 0 : i32
    %c0_i32_0 = arith.constant 0 : i32
    %c0_i32_1 = arith.constant 0 : i32
    return %c0_i32, %c0_i32_0 : i32, i32
  }
  func.func @transform_4(%arg0: i32, %arg1: memref<2xi32, #tpu.memory_space<smem>>) -> (i32, i32) {
    %c0_i32 = arith.constant 0 : i32
    %c0_i32_0 = arith.constant 0 : i32
    %c0_i32_1 = arith.constant 0 : i32
    return %c0_i32, %c0_i32_0 : i32, i32
  }
  func.func @transform_5(%arg0: i32, %arg1: memref<2xi32, #tpu.memory_space<smem>>) -> (i32, i32) {
    %c0_i32 = arith.constant 0 : i32
    %c0_i32_0 = arith.constant 0 : i32
    %c0_i32_1 = arith.constant 0 : i32
    return %c0_i32, %c0_i32_0 : i32, i32
  }
  func.func @transform_6(%arg0: i32, %arg1: memref<2xi32, #tpu.memory_space<smem>>) -> (i32, i32, i32) {
    %c0_i32 = arith.constant 0 : i32
    %c0_i32_0 = arith.constant 0 : i32
    %c0_i32_1 = arith.constant 0 : i32
    %c0_i32_2 = arith.constant 0 : i32
    return %c0_i32, %c0_i32_0, %c0_i32_1 : i32, i32, i32
  }
  func.func @transform_7(%arg0: i32, %arg1: memref<2xi32, #tpu.memory_space<smem>>) -> (i32, i32, i32) {
    %c0_i32 = arith.constant 0 : i32
    %c0_i32_0 = arith.constant 0 : i32
    %c0_i32_1 = arith.constant 0 : i32
    %c0_i32_2 = arith.constant 0 : i32
    return %c0_i32, %c0_i32_0, %c0_i32_1 : i32, i32, i32
  }
  func.func @transform_8(%arg0: i32, %arg1: memref<2xi32, #tpu.memory_space<smem>>) -> (i32, i32, i32) {
    %c0_i32 = arith.constant 0 : i32
    %c0_i32_0 = arith.constant 0 : i32
    %c0_i32_1 = arith.constant 0 : i32
    %c0_i32_2 = arith.constant 0 : i32
    return %c0_i32, %c0_i32_0, %c0_i32_1 : i32, i32, i32
  }
  func.func @transform_9(%arg0: i32, %arg1: memref<2xi32, #tpu.memory_space<smem>>) -> (i32, i32, i32) {
    %c0_i32 = arith.constant 0 : i32
    %c0_i32_0 = arith.constant 0 : i32
    %c0_i32_1 = arith.constant 0 : i32
    %c0_i32_2 = arith.constant 0 : i32
    return %c0_i32, %c0_i32_0, %c0_i32_1 : i32, i32, i32
  }
  func.func @transform_10(%arg0: i32, %arg1: memref<2xi32, #tpu.memory_space<smem>>) -> (i32, i32, i32) {
    %c0_i32 = arith.constant 0 : i32
    %c0_i32_0 = arith.constant 0 : i32
    %c0_i32_1 = arith.constant 0 : i32
    %c0_i32_2 = arith.constant 0 : i32
    return %c0_i32, %c0_i32_0, %c0_i32_1 : i32, i32, i32
  }
  func.func @transform_11(%arg0: i32, %arg1: memref<2xi32, #tpu.memory_space<smem>>) -> (i32, i32, i32) {
    %c0_i32 = arith.constant 0 : i32
    %c0_i32_0 = arith.constant 0 : i32
    %c0_i32_1 = arith.constant 0 : i32
    %c0_i32_2 = arith.constant 0 : i32
    return %c0_i32, %c0_i32_0, %c0_i32_1 : i32, i32, i32
  }
  func.func @transform_12(%arg0: i32, %arg1: memref<2xi32, #tpu.memory_space<smem>>) -> (i32, i32, i32) {
    %c0_i32 = arith.constant 0 : i32
    %c0_i32_0 = arith.constant 0 : i32
    %c0_i32_1 = arith.constant 0 : i32
    %c0_i32_2 = arith.constant 0 : i32
    return %c0_i32, %c0_i32_0, %c0_i32_1 : i32, i32, i32
  }
  func.func @transform_13(%arg0: i32, %arg1: memref<2xi32, #tpu.memory_space<smem>>) -> (i32, i32, i32) {
    %c0_i32 = arith.constant 0 : i32
    %c0_i32_0 = arith.constant 0 : i32
    %c0_i32_1 = arith.constant 0 : i32
    %c0_i32_2 = arith.constant 0 : i32
    return %c0_i32, %c0_i32_0, %c0_i32_1 : i32, i32, i32
  }
  func.func @transform_14(%arg0: i32, %arg1: memref<2xi32, #tpu.memory_space<smem>>) -> (i32, i32, i32) {
    %c0_i32 = arith.constant 0 : i32
    %c0_i32_0 = arith.constant 0 : i32
    %c0_i32_1 = arith.constant 0 : i32
    %c0_i32_2 = arith.constant 0 : i32
    return %c0_i32, %c0_i32_0, %c0_i32_1 : i32, i32, i32
  }
  func.func @transform_15(%arg0: i32, %arg1: memref<2xi32, #tpu.memory_space<smem>>) -> (i32, i32, i32) {
    %c0_i32 = arith.constant 0 : i32
    %c0_i32_0 = arith.constant 0 : i32
    %c0_i32_1 = arith.constant 0 : i32
    %c0_i32_2 = arith.constant 0 : i32
    return %c0_i32, %c0_i32_0, %c0_i32_1 : i32, i32, i32
  }
  func.func @transform_16(%arg0: i32, %arg1: memref<2xi32, #tpu.memory_space<smem>>) -> (i32, i32, i32) {
    %c0_i32 = arith.constant 0 : i32
    %c0_i32_0 = arith.constant 0 : i32
    %c0_i32_1 = arith.constant 0 : i32
    %c0_i32_2 = arith.constant 0 : i32
    return %c0_i32, %c0_i32_0, %c0_i32_1 : i32, i32, i32
  }
  func.func @transform_17(%arg0: i32, %arg1: memref<2xi32, #tpu.memory_space<smem>>) -> (i32, i32, i32) {
    %c0_i32 = arith.constant 0 : i32
    %c0_i32_0 = arith.constant 0 : i32
    %c0_i32_1 = arith.constant 0 : i32
    %c0_i32_2 = arith.constant 0 : i32
    return %c0_i32, %c0_i32_0, %c0_i32_1 : i32, i32, i32
  }
  func.func @transform_18(%arg0: i32, %arg1: memref<2xi32, #tpu.memory_space<smem>>) -> (i32, i32, i32) {
    %c0_i32 = arith.constant 0 : i32
    %c0_i32_0 = arith.constant 0 : i32
    %c0_i32_1 = arith.constant 0 : i32
    %c0_i32_2 = arith.constant 0 : i32
    return %c0_i32, %c0_i32_0, %c0_i32_1 : i32, i32, i32
  }
  func.func @transform_19(%arg0: i32, %arg1: memref<2xi32, #tpu.memory_space<smem>>) -> (i32, i32, i32) {
    %c0_i32 = arith.constant 0 : i32
    %c0_i32_0 = arith.constant 0 : i32
    %c0_i32_1 = arith.constant 0 : i32
    %c0_i32_2 = arith.constant 0 : i32
    return %c0_i32, %c0_i32_0, %c0_i32_1 : i32, i32, i32
  }
  func.func @transform_20(%arg0: i32, %arg1: memref<2xi32, #tpu.memory_space<smem>>) -> (i32, i32, i32) {
    %c0_i32 = arith.constant 0 : i32
    %c0_i32_0 = arith.constant 0 : i32
    %c0_i32_1 = arith.constant 0 : i32
    %c0_i32_2 = arith.constant 0 : i32
    return %c0_i32, %c0_i32_0, %c0_i32_1 : i32, i32, i32
  }
  func.func @transform_21(%arg0: i32, %arg1: memref<2xi32, #tpu.memory_space<smem>>) -> (i32, i32, i32) {
    %c0_i32 = arith.constant 0 : i32
    %c0_i32_0 = arith.constant 0 : i32
    %c0_i32_1 = arith.constant 0 : i32
    %c0_i32_2 = arith.constant 0 : i32
    return %c0_i32, %c0_i32_0, %c0_i32_1 : i32, i32, i32
  }
  func.func @transform_22(%arg0: i32, %arg1: memref<2xi32, #tpu.memory_space<smem>>) -> (i32, i32) {
    %c0_i32 = arith.constant 0 : i32
    %c0_i32_0 = arith.constant 0 : i32
    %c0_i32_1 = arith.constant 0 : i32
    return %c0_i32, %c0_i32_0 : i32, i32
  }
  func.func @transform_23(%arg0: i32, %arg1: memref<2xi32, #tpu.memory_space<smem>>) -> (i32, i32) {
    %c0_i32 = arith.constant 0 : i32
    %c0_i32_0 = arith.constant 0 : i32
    %c0_i32_1 = arith.constant 0 : i32
    return %c0_i32, %c0_i32_0 : i32, i32
  }
  func.func @transform_24(%arg0: i32, %arg1: memref<2xi32, #tpu.memory_space<smem>>) -> (i32, i32) {
    %c0_i32 = arith.constant 0 : i32
    %c0_i32_0 = arith.constant 0 : i32
    %c0_i32_1 = arith.constant 0 : i32
    return %c0_i32, %c0_i32_0 : i32, i32
  }
}

</mosaic_0001>

<llo_original>
// kernel: sft_forward.1
$region0: #{sft_forward.1}
  #allocation0 [shape = 'u32[]', space=smem, size = 0x4, offset = 0x4, fixed_abs, tag = 'smem constant byte address 0x4 - core index']
  #allocation1 [shape = 'u32[144,128]{1,0:T(1,128)}', space=vmem, size = 0x12000, scoped, tag = 'internal scratch']
  #allocation2 [shape = 's32[1]{0}', space=sflag, size = 0x4, scoped, tag = 'scoped memory for sft_forward.1']
  #allocation3 [shape = 'u8[512]{0}', space=smem, size = 0x200, scoped, tag = 'prefetched SMEM operand 0']
  %s0 = inlined_call_operand.vmem [shape: s32[2], index: 0, kind: input, shape index: {}]
  %s1 = inlined_call_operand.vmem [shape: s32[16,1], index: 1, kind: input, shape index: {}]
  %s2 = inlined_call_operand.vmem [shape: f32[128,32], index: 2, kind: input, shape index: {}]
  %s3 = inlined_call_operand.vmem [shape: f32[8,32], index: 3, kind: input, shape index: {}]
  %s4 = inlined_call_operand.vmem [shape: f32[1,32], index: 4, kind: input, shape index: {}]
  %s5 = inlined_call_operand.vmem [shape: f32[1,32], index: 5, kind: input, shape index: {}]
  %s6 = inlined_call_operand.vmem [shape: f32[1,32], index: 6, kind: input, shape index: {}]
  %s7 = inlined_call_operand.vmem [shape: f32[2,32,32], index: 7, kind: input, shape index: {}]
  %s8 = inlined_call_operand.vmem [shape: f32[2,1,32], index: 8, kind: input, shape index: {}]
  %s9 = inlined_call_operand.vmem [shape: f32[2,32,32], index: 9, kind: input, shape index: {}]
  %s10 = inlined_call_operand.vmem [shape: f32[2,1,32], index: 10, kind: input, shape index: {}]
  %s11 = inlined_call_operand.vmem [shape: f32[2,32,32], index: 11, kind: input, shape index: {}]
  %s12 = inlined_call_operand.vmem [shape: f32[2,1,32], index: 12, kind: input, shape index: {}]
  %s13 = inlined_call_operand.vmem [shape: f32[2,32,32], index: 13, kind: input, shape index: {}]
  %s14 = inlined_call_operand.vmem [shape: f32[2,1,32], index: 14, kind: input, shape index: {}]
  %s15 = inlined_call_operand.vmem [shape: f32[2,1,32], index: 15, kind: input, shape index: {}]
  %s16 = inlined_call_operand.vmem [shape: f32[2,1,32], index: 16, kind: input, shape index: {}]
  %s17 = inlined_call_operand.vmem [shape: f32[2,32,64], index: 17, kind: input, shape index: {}]
  %s18 = inlined_call_operand.vmem [shape: f32[2,1,64], index: 18, kind: input, shape index: {}]
  %s19 = inlined_call_operand.vmem [shape: f32[2,64,32], index: 19, kind: input, shape index: {}]
  %s20 = inlined_call_operand.vmem [shape: f32[2,1,32], index: 20, kind: input, shape index: {}]
  %s21 = inlined_call_operand.vmem [shape: f32[2,1,32], index: 21, kind: input, shape index: {}]
  %s22 = inlined_call_operand.vmem [shape: f32[2,1,32], index: 22, kind: input, shape index: {}]
  %s23 = inlined_call_operand.vmem [shape: f32[32,128], index: 23, kind: input, shape index: {}]
  %s24 = inlined_call_operand.vmem [shape: f32[1,128], index: 24, kind: input, shape index: {}]
  %s25 = inlined_call_operand.hbm [shape: f32[16,128], index: 25, kind: output, shape index: {}]
  %s26 = sld [smem:[#allocation0]]
  $region106: #{sft_forward.1} parent=0
    _
  %s28 = ssub.s32 1, %s26
  %s29 = scalar_select 0, %s28, %s26
  %s30 = sshll.u32 %s0, 4
  %s31 = int_to_ptr.vmem [resolvable:$true] %s30
  %33 = dma.vmem_to_smem %s31, 16, [#allocation3], [#allocation2]
  %34 = dma.done [#allocation2], 16
  %35 = sfence
  $region1: #{sft_forward.1} parent=0
    #allocation4 [shape = 'u8[8192]{0}', space=vmem, size = 0x2000, scoped, tag = 'output window, operand 0, single buffered']
    #allocation5 [shape = 's32[1]{0}', space=sflag, size = 0x4, scoped, tag = 'scoped memory for sft_forward.1']
    %36 = vsyncpa [#allocation5], 0
    // Predicated region
    $region2: #{sft_forward.1} parent=1 // pred_check
      _
    $region3: #{sft_forward.1} parent=1 // pred_check_branch
      %38 = sbr.rel (0) target = $region5
    $region4: #{sft_forward.1} parent=1 // pred_region
      _
    $region5: #{sft_forward.1} parent=1 // pred_fallthru
      _
    // Predicated region
    $region6: #{sft_forward.1} parent=1 // pred_check
      _
    $region7: #{sft_forward.1} parent=1 // pred_check_branch
      %40 = sbr.rel (0) target = $region9
    $region8: #{sft_forward.1} parent=1 // pred_region
      _
    $region9: #{sft_forward.1} parent=1 // pred_fallthru
      _
    // Predicated region
    $region10: #{sft_forward.1} parent=1 // pred_check
      _
    $region11: #{sft_forward.1} parent=1 // pred_check_branch
      %42 = sbr.rel (0) target = $region13
    $region12: #{sft_forward.1} parent=1 // pred_region
      _
    $region13: #{sft_forward.1} parent=1 // pred_fallthru
      _
    // Predicated region
    $region14: #{sft_forward.1} parent=1 // pred_check
      _
    $region15: #{sft_forward.1} parent=1 // pred_check_branch
      %44 = sbr.rel (0) target = $region17
    $region16: #{sft_forward.1} parent=1 // pred_region
      _
    $region17: #{sft_forward.1} parent=1 // pred_fallthru
      _
    // Predicated region
    $region18: #{sft_forward.1} parent=1 // pred_check
      _
    $region19: #{sft_forward.1} parent=1 // pred_check_branch
      %46 = sbr.rel (0) target = $region21
    $region20: #{sft_forward.1} parent=1 // pred_region
      _
    $region21: #{sft_forward.1} parent=1 // pred_fallthru
      _
    // Predicated region
    $region22: #{sft_forward.1} parent=1 // pred_check
      _
    $region23: #{sft_forward.1} parent=1 // pred_check_branch
      %48 = sbr.rel (0) target = $region25
    $region24: #{sft_forward.1} parent=1 // pred_region
      _
    $region25: #{sft_forward.1} parent=1 // pred_fallthru
      _
    // Predicated region
    $region26: #{sft_forward.1} parent=1 // pred_check
      _
    $region27: #{sft_forward.1} parent=1 // pred_check_branch
      %50 = sbr.rel (0) target = $region29
    $region28: #{sft_forward.1} parent=1 // pred_region
      _
    $region29: #{sft_forward.1} parent=1 // pred_fallthru
      _
    // Predicated region
    $region30: #{sft_forward.1} parent=1 // pred_check
      _
    $region31: #{sft_forward.1} parent=1 // pred_check_branch
      %52 = sbr.rel (0) target = $region33
    $region32: #{sft_forward.1} parent=1 // pred_region
      _
    $region33: #{sft_forward.1} parent=1 // pred_fallthru
      _
    // Predicated region
    $region34: #{sft_forward.1} parent=1 // pred_check
      _
    $region35: #{sft_forward.1} parent=1 // pred_check_branch
      %54 = sbr.rel (0) target = $region37
    $region36: #{sft_forward.1} parent=1 // pred_region
      _
    $region37: #{sft_forward.1} parent=1 // pred_fallthru
      _
    // Predicated region
    $region38: #{sft_forward.1} parent=1 // pred_check
      _
    $region39: #{sft_forward.1} parent=1 // pred_check_branch
      %56 = sbr.rel (0) target = $region41
    $region40: #{sft_forward.1} parent=1 // pred_region
      _
    $region41: #{sft_forward.1} parent=1 // pred_fallthru
      _
    // Predicated region
    $region42: #{sft_forward.1} parent=1 // pred_check
      _
    $region43: #{sft_forward.1} parent=1 // pred_check_branch
      %58 = sbr.rel (0) target = $region45
    $region44: #{sft_forward.1} parent=1 // pred_region
      _
    $region45: #{sft_forward.1} parent=1 // pred_fallthru
      _
    // Predicated region
    $region46: #{sft_forward.1} parent=1 // pred_check
      _
    $region47: #{sft_forward.1} parent=1 // pred_check_branch
      %60 = sbr.rel (0) target = $region49
    $region48: #{sft_forward.1} parent=1 // pred_region
      _
    $region49: #{sft_forward.1} parent=1 // pred_fallthru
      _
    // Predicated region
    $region50: #{sft_forward.1} parent=1 // pred_check
      _
    $region51: #{sft_forward.1} parent=1 // pred_check_branch
      %62 = sbr.rel (0) target = $region53
    $region52: #{sft_forward.1} parent=1 // pred_region
      _
    $region53: #{sft_forward.1} parent=1 // pred_fallthru
      _
    // Predicated region
    $region54: #{sft_forward.1} parent=1 // pred_check
      _
    $region55: #{sft_forward.1} parent=1 // pred_check_branch
      %64 = sbr.rel (0) target = $region57
    $region56: #{sft_forward.1} parent=1 // pred_region
      _
    $region57: #{sft_forward.1} parent=1 // pred_fallthru
      _
    // Predicated region
    $region58: #{sft_forward.1} parent=1 // pred_check
      _
    $region59: #{sft_forward.1} parent=1 // pred_check_branch
      %66 = sbr.rel (0) target = $region61
    $region60: #{sft_forward.1} parent=1 // pred_region
      _
    $region61: #{sft_forward.1} parent=1 // pred_fallthru
      _
    // Predicated region
    $region62: #{sft_forward.1} parent=1 // pred_check
      _
    $region63: #{sft_forward.1} parent=1 // pred_check_branch
      %68 = sbr.rel (0) target = $region65
    $region64: #{sft_forward.1} parent=1 // pred_region
      _
    $region65: #{sft_forward.1} parent=1 // pred_fallthru
      _
    // Predicated region
    $region66: #{sft_forward.1} parent=1 // pred_check
      _
    $region67: #{sft_forward.1} parent=1 // pred_check_branch
      %70 = sbr.rel (0) target = $region69
    $region68: #{sft_forward.1} parent=1 // pred_region
      _
    $region69: #{sft_forward.1} parent=1 // pred_fallthru
      _
    // Predicated region
    $region70: #{sft_forward.1} parent=1 // pred_check
      _
    $region71: #{sft_forward.1} parent=1 // pred_check_branch
      %72 = sbr.rel (0) target = $region73
    $region72: #{sft_forward.1} parent=1 // pred_region
      _
    $region73: #{sft_forward.1} parent=1 // pred_fallthru
      _
    // Predicated region
    $region74: #{sft_forward.1} parent=1 // pred_check
      _
    $region75: #{sft_forward.1} parent=1 // pred_check_branch
      %74 = sbr.rel (0) target = $region77
    $region76: #{sft_forward.1} parent=1 // pred_region
      _
    $region77: #{sft_forward.1} parent=1 // pred_fallthru
      _
    // Predicated region
    $region78: #{sft_forward.1} parent=1 // pred_check
      _
    $region79: #{sft_forward.1} parent=1 // pred_check_branch
      %76 = sbr.rel (0) target = $region81
    $region80: #{sft_forward.1} parent=1 // pred_region
      _
    $region81: #{sft_forward.1} parent=1 // pred_fallthru
      _
    // Predicated region
    $region82: #{sft_forward.1} parent=1 // pred_check
      _
    $region83: #{sft_forward.1} parent=1 // pred_check_branch
      %78 = sbr.rel (0) target = $region85
    $region84: #{sft_forward.1} parent=1 // pred_region
      _
    $region85: #{sft_forward.1} parent=1 // pred_fallthru
      _
    // Predicated region
    $region86: #{sft_forward.1} parent=1 // pred_check
      _
    $region87: #{sft_forward.1} parent=1 // pred_check_branch
      %80 = sbr.rel (0) target = $region89
    $region88: #{sft_forward.1} parent=1 // pred_region
      _
    $region89: #{sft_forward.1} parent=1 // pred_fallthru
      _
    // Predicated region
    $region90: #{sft_forward.1} parent=1 // pred_check
      _
    $region91: #{sft_forward.1} parent=1 // pred_check_branch
      %82 = sbr.rel (0) target = $region93
    $region92: #{sft_forward.1} parent=1 // pred_region
      _
    $region93: #{sft_forward.1} parent=1 // pred_fallthru
      _
    // Predicated region
    $region94: #{sft_forward.1} parent=1 // pred_check
      _
    $region95: #{sft_forward.1} parent=1 // pred_check_branch
      %84 = sbr.rel (0) target = $region97
    $region96: #{sft_forward.1} parent=1 // pred_region
      _
    $region97: #{sft_forward.1} parent=1 // pred_fallthru
      _
    %v85 = vlaneseq
    %v86 = vand.u32 %v85, 127
    %v87 = vld [vmem:[%s1] sm:$0xff]
    %v88 = vld [vmem:[%s1 + $0x8] sm:$0xff]
    %89 = vset.pattern.permute.xlu0 0
    %90 = vperm.xlu0 %89, %v87
    %v91 = vpop.permute.xlu0 %90
    %92 = vset.pattern.permute.xlu0 0
    %93 = vperm.xlu0 %92, %v88
    %v94 = vpop.permute.xlu0 %93
    %vm95 = vcmp.eq.s32.totalorder %v86, %v91
    %vm96 = vcmp.eq.s32.totalorder %v86, %v94
    %v97 = vsel %vm95, 1, 0
    %v98 = vsel %vm96, 1, 0
    %v99 = vcvt.s32.f32 %v97
    %v100 = vcvt.s32.f32 %v98
    %v101 = vld [vmem:[%s2] sm:$0xff]
    %v102 = vld [vmem:[%s2 + $0x8] sm:$0xff]
    %v103 = vld [vmem:[%s2 + $0x10] sm:$0xff]
    %v104 = vld [vmem:[%s2 + $0x18] sm:$0xff]
    %v105 = vld [vmem:[%s2 + $0x20] sm:$0xff]
    %v106 = vld [vmem:[%s2 + $0x28] sm:$0xff]
    %v107 = vld [vmem:[%s2 + $0x30] sm:$0xff]
    %v108 = vld [vmem:[%s2 + $0x38] sm:$0xff]
    %v109 = vld [vmem:[%s2 + $0x40] sm:$0xff]
    %v110 = vld [vmem:[%s2 + $0x48] sm:$0xff]
    %v111 = vld [vmem:[%s2 + $0x50] sm:$0xff]
    %v112 = vld [vmem:[%s2 + $0x58] sm:$0xff]
    %v113 = vld [vmem:[%s2 + $0x60] sm:$0xff]
    %v114 = vld [vmem:[%s2 + $0x68] sm:$0xff]
    %v115 = vld [vmem:[%s2 + $0x70] sm:$0xff]
    %v116 = vld [vmem:[%s2 + $0x78] sm:$0xff]
    %117 = vmatprep.subr.mxu0 0.0
    %118 = vmatpush1.msra.mxu0 %v101
    %119 = vmatprep.subr.mxu0 0.0
    %120 = vmatpush1.msra.mxu0 %v102
    %121 = vmatprep.subr.mxu0 0.0
    %122 = vmatpush1.msra.mxu0 %v103
    %123 = vmatprep.subr.mxu0 0.0
    %124 = vmatpush1.msra.mxu0 %v104
    %125 = vmatprep.subr.mxu0 0.0
    %126 = vmatpush1.msra.mxu0 %v105
    %127 = vmatprep.subr.mxu0 0.0
    %128 = vmatpush1.msra.mxu0 %v106
    %129 = vmatprep.subr.mxu0 0.0
    %130 = vmatpush1.msra.mxu0 %v107
    %131 = vmatprep.subr.mxu0 0.0
    %132 = vmatpush1.msra.mxu0 %v108
    %133 = vmatprep.subr.mxu0 0.0
    %134 = vmatpush1.msra.mxu0 %v109
    %135 = vmatprep.subr.mxu0 0.0
    %136 = vmatpush1.msra.mxu0 %v110
    %137 = vmatprep.subr.mxu0 0.0
    %138 = vmatpush1.msra.mxu0 %v111
    %139 = vmatprep.subr.mxu0 0.0
    %140 = vmatpush1.msra.mxu0 %v112
    %141 = vmatprep.subr.mxu0 0.0
    %142 = vmatpush1.msra.mxu0 %v113
    %143 = vmatprep.subr.mxu0 0.0
    %144 = vmatpush1.msra.mxu0 %v114
    %145 = vmatprep.subr.mxu0 0.0
    %146 = vmatpush1.msra.mxu0 %v115
    %147 = vmatprep.subr.mxu0 0.0
    %148 = vmatpush1.msra.mxu0 %v116
    %149 = vmatprep.subr.mxu0 0.0
    %150 = vmatpush1.msra.mxu0 0.0
    %151 = vmatprep.subr.mxu0 0.0
    %152 = vmatpush1.msra.mxu0 0.0
    %153 = vmatprep.subr.mxu0 0.0
    %154 = vmatpush1.msra.mxu0 0.0
    %155 = vmatprep.subr.mxu0 0.0
    %156 = vmatpush1.msra.mxu0 0.0
    %157 = vmatprep.subr.mxu0 0.0
    %158 = vmatpush1.msra.mxu0 0.0
    %159 = vmatprep.subr.mxu0 0.0
    %160 = vmatpush1.msra.mxu0 0.0
    %161 = vmatprep.subr.mxu0 0.0
    %162 = vmatpush1.msra.mxu0 0.0
    %163 = vmatprep.subr.mxu0 0.0
    %164 = vmatpush1.msra.mxu0 0.0
    %165 = vmatprep.subr.mxu0 0.0
    %166 = vmatpush1.msra.mxu0 0.0
    %167 = vmatprep.subr.mxu0 0.0
    %168 = vmatpush1.msra.mxu0 0.0
    %169 = vmatprep.subr.mxu0 0.0
    %170 = vmatpush1.msra.mxu0 0.0
    %171 = vmatprep.subr.mxu0 0.0
    %172 = vmatpush1.msra.mxu0 0.0
    %173 = vmatprep.subr.mxu0 0.0
    %174 = vmatpush1.msra.mxu0 0.0
    %175 = vmatprep.subr.mxu0 0.0
    %176 = vmatpush1.msra.mxu0 0.0
    %177 = vmatprep.subr.mxu0 0.0
    %178 = vmatpush1.msra.mxu0 0.0
    %179 = vmatprep.subr.mxu0 0.0
    %180 = vmatpush1.msra.mxu0 0.0
    %181 = vmatprep.mubr.f32.mxu0 0.0
    %182 = vmatmul.mubr.f32.gmra.mrb[0].mxu0 %v99
    %v183 = vpop.f32.mrb[0].mxu0
    %v184 = vadd.f32 0.0, %v183
    %v185 = vpop.f32.mrb[0].mxu0
    %186 = vmatprep.mubr.f32.mxu0 0.0
    %187 = vmatmul.mubr.f32.gmra.mrb[0].mxu0 %v100
    %v188 = vpop.f32.mrb[0].mxu0
    %v189 = vadd.f32 0.0, %v188
    %v190 = vpop.f32.mrb[0].mxu0
    %191 = vdwg.mxu0
    %v192 = vld [vmem:[%s3] sm:$0xff]
    %v193 = vadd.f32 %v184, %v192
    %v194 = vadd.f32 %v189, %v192
    %v195 = vld [vmem:[%s4] sm:$0x1]
    %v197 = vlaneseq
    %v198 = vshrl.u32 %v197, 7
    %v199 = vsub.s32 0, %v198
    %v200 = vrot.slane %v195, %v199
    %v202 = vadd.f32 %v193, %v200
    %v203 = vadd.f32 %v194, %v200
    %v204 = vld [vmem:[%s5] sm:$0x1]
    %v205 = vld [vmem:[%s6] sm:$0x1]
    %vm206 = vcmask 261120
    %v207 = vsel %vm206, %v202, 0.0
    %208 = vadd.xlane.f32.xlu0 %v207
    %v209 = vpop.xlane.xlu0 %208
    %v210 = vsel %vm206, %v203, 0.0
    %211 = vadd.xlane.f32.xlu0 %v210
    %v212 = vpop.xlane.xlu0 %211
    %v213 = vrcp.pop 32.0
    %v214 = vmul.f32 %v209, %v213
    %v215 = vmul.f32 %v212, %v213
    %v216 = vsub.f32 %v202, %v214
    %v217 = vsub.f32 %v203, %v215
    %v218 = vmul.f32 %v216, %v216
    %v219 = vmul.f32 %v217, %v217
    %v220 = vsel %vm206, %v218, 0.0
    %221 = vadd.xlane.f32.xlu0 %v220
    %v222 = vpop.xlane.xlu0 %221
    %v223 = vsel %vm206, %v219, 0.0
    %224 = vadd.xlane.f32.xlu0 %v223
    %v225 = vpop.xlane.xlu0 %224
    %v226 = vmul.f32 %v222, %v213
    %v227 = vmul.f32 %v225, %v213
    %v228 = vadd.f32 %v226, 1e-12
    %v229 = vadd.f32 %v227, 1e-12
    %v230 = vrsqrt.pop %v228
    %v231 = vrsqrt.pop %v229
    %v232 = vmul.f32 %v216, %v230
    %v233 = vmul.f32 %v217, %v231
    %v235 = vlaneseq
    %v236 = vshrl.u32 %v235, 7
    %v237 = vsub.s32 0, %v236
    %v238 = vrot.slane %v204, %v237
    %v240 = vmul.f32 %v232, %v238
    %v241 = vmul.f32 %v233, %v238
    %v243 = vlaneseq
    %v244 = vshrl.u32 %v243, 7
    %v245 = vsub.s32 0, %v244
    %v246 = vrot.slane %v205, %v245
    %v248 = vadd.f32 %v240, %v246
    %v249 = vadd.f32 %v241, %v246
    %v250 = vlaneseq
    %v251 = vshrl.u32 %v250, 7
    %vm252 = vcmp.ge.s32.totalorder %v251, %v86
    %s253 = sld [smem:[#allocation3]]
    %v254 = vstv %s253
    %vm255 = vcmp.lt.s32.totalorder %v86, %v254
    %vm256 = vmor %vm252, %vm255
    %v257 = vsel %vm256, 0.0, -1e+09
    %s258 = sld [smem:[#allocation3 + $0x1]]
    %v259 = vstv %s258
    %vm260 = vcmp.lt.s32.totalorder %v86, %v259
    %vm261 = vmor %vm252, %vm260
    %v262 = vsel %vm261, 0.0, -1e+09
    %v263 = vld [vmem:[%s7] sm:$0xff]
    %v264 = vld [vmem:[%s7 + $0x8] sm:$0xff]
    %v265 = vld [vmem:[%s7 + $0x10] sm:$0xff]
    %v266 = vld [vmem:[%s7 + $0x18] sm:$0xff]
    %v267 = vld [vmem:[%s8] sm:$0x1]
    %v269 = vlaneseq
    %v270 = vshrl.u32 %v269, 7
    %v271 = vsub.s32 0, %v270
    %v272 = vrot.slane %v267, %v271
    %v275 = vsel %vm206, %v248, 0
    %v278 = vsel %vm206, %v249, 0
    %280 = vmatprep.subr.mxu0 0.0
    %281 = vmatpush1.msra.mxu0 %v263
    %282 = vmatprep.subr.mxu0 0.0
    %283 = vmatpush1.msra.mxu0 %v264
    %284 = vmatprep.subr.mxu0 0.0
    %285 = vmatpush1.msra.mxu0 %v265
    %286 = vmatprep.subr.mxu0 0.0
    %287 = vmatpush1.msra.mxu0 %v266
    %288 = vmatprep.subr.mxu0 0.0
    %289 = vmatpush1.msra.mxu0 0.0
    %290 = vmatprep.subr.mxu0 0.0
    %291 = vmatpush1.msra.mxu0 0.0
    %292 = vmatprep.subr.mxu0 0.0
    %293 = vmatpush1.msra.mxu0 0.0
    %294 = vmatprep.subr.mxu0 0.0
    %295 = vmatpush1.msra.mxu0 0.0
    %296 = vmatprep.subr.mxu0 0.0
    %297 = vmatpush1.msra.mxu0 0.0
    %298 = vmatprep.subr.mxu0 0.0
    %299 = vmatpush1.msra.mxu0 0.0
    %300 = vmatprep.subr.mxu0 0.0
    %301 = vmatpush1.msra.mxu0 0.0
    %302 = vmatprep.subr.mxu0 0.0
    %303 = vmatpush1.msra.mxu0 0.0
    %304 = vmatprep.subr.mxu0 0.0
    %305 = vmatpush1.msra.mxu0 0.0
    %306 = vmatprep.subr.mxu0 0.0
    %307 = vmatpush1.msra.mxu0 0.0
    %308 = vmatprep.subr.mxu0 0.0
    %309 = vmatpush1.msra.mxu0 0.0
    %310 = vmatprep.subr.mxu0 0.0
    %311 = vmatpush1.msra.mxu0 0.0
    %312 = vmatprep.subr.mxu0 0.0
    %313 = vmatpush1.msra.mxu0 0.0
    %314 = vmatprep.subr.mxu0 0.0
    %315 = vmatpush1.msra.mxu0 0.0
    %316 = vmatprep.subr.mxu0 0.0
    %317 = vmatpush1.msra.mxu0 0.0
    %318 = vmatprep.subr.mxu0 0.0
    %319 = vmatpush1.msra.mxu0 0.0
    %320 = vmatprep.subr.mxu0 0.0
    %321 = vmatpush1.msra.mxu0 0.0
    %322 = vmatprep.subr.mxu0 0.0
    %323 = vmatpush1.msra.mxu0 0.0
    %324 = vmatprep.subr.mxu0 0.0
    %325 = vmatpush1.msra.mxu0 0.0
    %326 = vmatprep.subr.mxu0 0.0
    %327 = vmatpush1.msra.mxu0 0.0
    %328 = vmatprep.subr.mxu0 0.0
    %329 = vmatpush1.msra.mxu0 0.0
    %330 = vmatprep.subr.mxu0 0.0
    %331 = vmatpush1.msra.mxu0 0.0
    %332 = vmatprep.subr.mxu0 0.0
    %333 = vmatpush1.msra.mxu0 0.0
    %334 = vmatprep.subr.mxu0 0.0
    %335 = vmatpush1.msra.mxu0 0.0
    %336 = vmatprep.subr.mxu0 0.0
    %337 = vmatpush1.msra.mxu0 0.0
    %338 = vmatprep.subr.mxu0 0.0
    %339 = vmatpush1.msra.mxu0 0.0
    %340 = vmatprep.subr.mxu0 0.0
    %341 = vmatpush1.msra.mxu0 0.0
    %342 = vmatprep.subr.mxu0 0.0
    %343 = vmatpush1.msra.mxu0 0.0
    %344 = vmatprep.mubr.f32.mxu0 0.0
    %345 = vmatmul.mubr.f32.gmra.mrb[0].mxu0 %v275
    %v346 = vpop.f32.mrb[0].mxu0
    %v347 = vadd.f32 %v272, %v346
    %v348 = vpop.f32.mrb[0].mxu0
    %349 = vmatprep.mubr.f32.mxu0 0.0
    %350 = vmatmul.mubr.f32.gmra.mrb[0].mxu0 %v278
    %v351 = vpop.f32.mrb[0].mxu0
    %v352 = vadd.f32 %v272, %v351
    %v353 = vpop.f32.mrb[0].mxu0
    %354 = vdwg.mxu0
    %v355 = vmul.f32 %v347, 0.25
    %v356 = vmul.f32 %v352, 0.25
    %v357 = vld [vmem:[%s9] sm:$0xff]
    %v358 = vld [vmem:[%s9 + $0x8] sm:$0xff]
    %v359 = vld [vmem:[%s9 + $0x10] sm:$0xff]
    %v360 = vld [vmem:[%s9 + $0x18] sm:$0xff]
    %v361 = vld [vmem:[%s10] sm:$0x1]
    %v363 = vlaneseq
    %v364 = vshrl.u32 %v363, 7
    %v365 = vsub.s32 0, %v364
    %v366 = vrot.slane %v361, %v365
    %368 = vmatprep.subr.mxu0 0.0
    %369 = vmatpush1.msra.mxu0 %v357
    %370 = vmatprep.subr.mxu0 0.0
    %371 = vmatpush1.msra.mxu0 %v358
    %372 = vmatprep.subr.mxu0 0.0
    %373 = vmatpush1.msra.mxu0 %v359
    %374 = vmatprep.subr.mxu0 0.0
    %375 = vmatpush1.msra.mxu0 %v360
    %376 = vmatprep.subr.mxu0 0.0
    %377 = vmatpush1.msra.mxu0 0.0
    %378 = vmatprep.subr.mxu0 0.0
    %379 = vmatpush1.msra.mxu0 0.0
    %380 = vmatprep.subr.mxu0 0.0
    %381 = vmatpush1.msra.mxu0 0.0
    %382 = vmatprep.subr.mxu0 0.0
    %383 = vmatpush1.msra.mxu0 0.0
    %384 = vmatprep.subr.mxu0 0.0
    %385 = vmatpush1.msra.mxu0 0.0
    %386 = vmatprep.subr.mxu0 0.0
    %387 = vmatpush1.msra.mxu0 0.0
    %388 = vmatprep.subr.mxu0 0.0
    %389 = vmatpush1.msra.mxu0 0.0
    %390 = vmatprep.subr.mxu0 0.0
    %391 = vmatpush1.msra.mxu0 0.0
    %392 = vmatprep.subr.mxu0 0.0
    %393 = vmatpush1.msra.mxu0 0.0
    %394 = vmatprep.subr.mxu0 0.0
    %395 = vmatpush1.msra.mxu0 0.0
    %396 = vmatprep.subr.mxu0 0.0
    %397 = vmatpush1.msra.mxu0 0.0
    %398 = vmatprep.subr.mxu0 0.0
    %399 = vmatpush1.msra.mxu0 0.0
    %400 = vmatprep.subr.mxu0 0.0
    %401 = vmatpush1.msra.mxu0 0.0
    %402 = vmatprep.subr.mxu0 0.0
    %403 = vmatpush1.msra.mxu0 0.0
    %404 = vmatprep.subr.mxu0 0.0
    %405 = vmatpush1.msra.mxu0 0.0
    %406 = vmatprep.subr.mxu0 0.0
    %407 = vmatpush1.msra.mxu0 0.0
    %408 = vmatprep.subr.mxu0 0.0
    %409 = vmatpush1.msra.mxu0 0.0
    %410 = vmatprep.subr.mxu0 0.0
    %411 = vmatpush1.msra.mxu0 0.0
    %412 = vmatprep.subr.mxu0 0.0
    %413 = vmatpush1.msra.mxu0 0.0
    %414 = vmatprep.subr.mxu0 0.0
    %415 = vmatpush1.msra.mxu0 0.0
    %416 = vmatprep.subr.mxu0 0.0
    %417 = vmatpush1.msra.mxu0 0.0
    %418 = vmatprep.subr.mxu0 0.0
    %419 = vmatpush1.msra.mxu0 0.0
    %420 = vmatprep.subr.mxu0 0.0
    %421 = vmatpush1.msra.mxu0 0.0
    %422 = vmatprep.subr.mxu0 0.0
    %423 = vmatpush1.msra.mxu0 0.0
    %424 = vmatprep.subr.mxu0 0.0
    %425 = vmatpush1.msra.mxu0 0.0
    %426 = vmatprep.subr.mxu0 0.0
    %427 = vmatpush1.msra.mxu0 0.0
    %428 = vmatprep.subr.mxu0 0.0
    %429 = vmatpush1.msra.mxu0 0.0
    %430 = vmatprep.subr.mxu0 0.0
    %431 = vmatpush1.msra.mxu0 0.0
    %432 = vmatprep.mubr.f32.mxu0 0.0
    %433 = vmatmul.mubr.f32.gmra.mrb[0].mxu0 %v275
    %v434 = vpop.f32.mrb[0].mxu0
    %v435 = vadd.f32 %v366, %v434
    %v436 = vpop.f32.mrb[0].mxu0
    %437 = vmatprep.mubr.f32.mxu0 0.0
    %438 = vmatmul.mubr.f32.gmra.mrb[0].mxu0 %v278
    %v439 = vpop.f32.mrb[0].mxu0
    %v440 = vadd.f32 %v366, %v439
    %v441 = vpop.f32.mrb[0].mxu0
    %442 = vdwg.mxu0
    %v443 = vld [vmem:[%s11] sm:$0xff]
    %v444 = vld [vmem:[%s11 + $0x8] sm:$0xff]
    %v445 = vld [vmem:[%s11 + $0x10] sm:$0xff]
    %v446 = vld [vmem:[%s11 + $0x18] sm:$0xff]
    %v447 = vld [vmem:[%s12] sm:$0x1]
    %v449 = vlaneseq
    %v450 = vshrl.u32 %v449, 7
    %v451 = vsub.s32 0, %v450
    %v452 = vrot.slane %v447, %v451
    %454 = vmatprep.subr.mxu0 0.0
    %455 = vmatpush1.msra.mxu0 %v443
    %456 = vmatprep.subr.mxu0 0.0
    %457 = vmatpush1.msra.mxu0 %v444
    %458 = vmatprep.subr.mxu0 0.0
    %459 = vmatpush1.msra.mxu0 %v445
    %460 = vmatprep.subr.mxu0 0.0
    %461 = vmatpush1.msra.mxu0 %v446
    %462 = vmatprep.subr.mxu0 0.0
    %463 = vmatpush1.msra.mxu0 0.0
    %464 = vmatprep.subr.mxu0 0.0
    %465 = vmatpush1.msra.mxu0 0.0
    %466 = vmatprep.subr.mxu0 0.0
    %467 = vmatpush1.msra.mxu0 0.0
    %468 = vmatprep.subr.mxu0 0.0
    %469 = vmatpush1.msra.mxu0 0.0
    %470 = vmatprep.subr.mxu0 0.0
    %471 = vmatpush1.msra.mxu0 0.0
    %472 = vmatprep.subr.mxu0 0.0
    %473 = vmatpush1.msra.mxu0 0.0
    %474 = vmatprep.subr.mxu0 0.0
    %475 = vmatpush1.msra.mxu0 0.0
    %476 = vmatprep.subr.mxu0 0.0
    %477 = vmatpush1.msra.mxu0 0.0
    %478 = vmatprep.subr.mxu0 0.0
    %479 = vmatpush1.msra.mxu0 0.0
    %480 = vmatprep.subr.mxu0 0.0
    %481 = vmatpush1.msra.mxu0 0.0
    %482 = vmatprep.subr.mxu0 0.0
    %483 = vmatpush1.msra.mxu0 0.0
    %484 = vmatprep.subr.mxu0 0.0
    %485 = vmatpush1.msra.mxu0 0.0
    %486 = vmatprep.subr.mxu0 0.0
    %487 = vmatpush1.msra.mxu0 0.0
    %488 = vmatprep.subr.mxu0 0.0
    %489 = vmatpush1.msra.mxu0 0.0
    %490 = vmatprep.subr.mxu0 0.0
    %491 = vmatpush1.msra.mxu0 0.0
    %492 = vmatprep.subr.mxu0 0.0
    %493 = vmatpush1.msra.mxu0 0.0
    %494 = vmatprep.subr.mxu0 0.0
    %495 = vmatpush1.msra.mxu0 0.0
    %496 = vmatprep.subr.mxu0 0.0
    %497 = vmatpush1.msra.mxu0 0.0
    %498 = vmatprep.subr.mxu0 0.0
    %499 = vmatpush1.msra.mxu0 0.0
    %500 = vmatprep.subr.mxu0 0.0
    %501 = vmatpush1.msra.mxu0 0.0
    %502 = vmatprep.subr.mxu0 0.0
    %503 = vmatpush1.msra.mxu0 0.0
    %504 = vmatprep.subr.mxu0 0.0
    %505 = vmatpush1.msra.mxu0 0.0
    %506 = vmatprep.subr.mxu0 0.0
    %507 = vmatpush1.msra.mxu0 0.0
    %508 = vmatprep.subr.mxu0 0.0
    %509 = vmatpush1.msra.mxu0 0.0
    %510 = vmatprep.subr.mxu0 0.0
    %511 = vmatpush1.msra.mxu0 0.0
    %512 = vmatprep.subr.mxu0 0.0
    %513 = vmatpush1.msra.mxu0 0.0
    %514 = vmatprep.subr.mxu0 0.0
    %515 = vmatpush1.msra.mxu0 0.0
    %516 = vmatprep.subr.mxu0 0.0
    %517 = vmatpush1.msra.mxu0 0.0
    %518 = vmatprep.mubr.f32.mxu0 0.0
    %519 = vmatmul.mubr.f32.gmra.mrb[0].mxu0 %v275
    %v520 = vpop.f32.mrb[0].mxu0
    %v521 = vadd.f32 %v452, %v520
    %v522 = vpop.f32.mrb[0].mxu0
    %523 = vmatprep.mubr.f32.mxu0 0.0
    %524 = vmatmul.mubr.f32.gmra.mrb[0].mxu0 %v278
    %v525 = vpop.f32.mrb[0].mxu0
    %v526 = vadd.f32 %v452, %v525
    %v527 = vpop.f32.mrb[0].mxu0
    %528 = vdwg.mxu0
    %vm529 = vcmask 130048
    %v531 = vsel %vm529, %v355, 0
    %v534 = vsel %vm529, %v435, 0
    %536 = vmatprep.subr.mxu0 0.0
    %537 = vmatpush1.xpose.msra.mxu0 %v534
    %538 = vmatprep.subr.mxu0 0.0
    %539 = vmatpush1.xpose.msra.mxu0 0.0
    %540 = vmatprep.subr.mxu0 0.0
    %541 = vmatpush1.xpose.msra.mxu0 0.0
    %542 = vmatprep.subr.mxu0 0.0
    %543 = vmatpush1.xpose.msra.mxu0 0.0
    %544 = vmatprep.subr.mxu0 0.0
    %545 = vmatpush1.xpose.msra.mxu0 0.0
    %546 = vmatprep.subr.mxu0 0.0
    %547 = vmatpush1.xpose.msra.mxu0 0.0
    %548 = vmatprep.subr.mxu0 0.0
    %549 = vmatpush1.xpose.msra.mxu0 0.0
    %550 = vmatprep.subr.mxu0 0.0
    %551 = vmatpush1.xpose.msra.mxu0 0.0
    %552 = vmatprep.subr.mxu0 0.0
    %553 = vmatpush1.xpose.msra.mxu0 0.0
    %554 = vmatprep.subr.mxu0 0.0
    %555 = vmatpush1.xpose.msra.mxu0 0.0
    %556 = vmatprep.subr.mxu0 0.0
    %557 = vmatpush1.xpose.msra.mxu0 0.0
    %558 = vmatprep.subr.mxu0 0.0
    %559 = vmatpush1.xpose.msra.mxu0 0.0
    %560 = vmatprep.subr.mxu0 0.0
    %561 = vmatpush1.xpose.msra.mxu0 0.0
    %562 = vmatprep.subr.mxu0 0.0
    %563 = vmatpush1.xpose.msra.mxu0 0.0
    %564 = vmatprep.subr.mxu0 0.0
    %565 = vmatpush1.xpose.msra.mxu0 0.0
    %566 = vmatprep.subr.mxu0 0.0
    %567 = vmatpush1.xpose.msra.mxu0 0.0
    %568 = vmatprep.subr.mxu0 0.0
    %569 = vmatpush1.xpose.msra.mxu0 0.0
    %570 = vmatprep.subr.mxu0 0.0
    %571 = vmatpush1.xpose.msra.mxu0 0.0
    %572 = vmatprep.subr.mxu0 0.0
    %573 = vmatpush1.xpose.msra.mxu0 0.0
    %574 = vmatprep.subr.mxu0 0.0
    %575 = vmatpush1.xpose.msra.mxu0 0.0
    %576 = vmatprep.subr.mxu0 0.0
    %577 = vmatpush1.xpose.msra.mxu0 0.0
    %578 = vmatprep.subr.mxu0 0.0
    %579 = vmatpush1.xpose.msra.mxu0 0.0
    %580 = vmatprep.subr.mxu0 0.0
    %581 = vmatpush1.xpose.msra.mxu0 0.0
    %582 = vmatprep.subr.mxu0 0.0
    %583 = vmatpush1.xpose.msra.mxu0 0.0
    %584 = vmatprep.subr.mxu0 0.0
    %585 = vmatpush1.xpose.msra.mxu0 0.0
    %586 = vmatprep.subr.mxu0 0.0
    %587 = vmatpush1.xpose.msra.mxu0 0.0
    %588 = vmatprep.subr.mxu0 0.0
    %589 = vmatpush1.xpose.msra.mxu0 0.0
    %590 = vmatprep.subr.mxu0 0.0
    %591 = vmatpush1.xpose.msra.mxu0 0.0
    %592 = vmatprep.subr.mxu0 0.0
    %593 = vmatpush1.xpose.msra.mxu0 0.0
    %594 = vmatprep.subr.mxu0 0.0
    %595 = vmatpush1.xpose.msra.mxu0 0.0
    %596 = vmatprep.subr.mxu0 0.0
    %597 = vmatpush1.xpose.msra.mxu0 0.0
    %598 = vmatprep.subr.mxu0 0.0
    %599 = vmatpush1.xpose.msra.mxu0 0.0
    %600 = vmatprep.mubr.f32.mxu0 0.0
    %601 = vmatmul.mubr.f32.gmra.mrb[0].mxu0 %v531
    %v602 = vpop.f32.mrb[0].mxu0
    %v603 = vadd.f32 %v257, %v602
    %v604 = vpop.f32.mrb[0].mxu0
    %605 = vdwg.mxu0
    %v607 = vsel %vm529, %v356, 0
    %v610 = vsel %vm529, %v440, 0
    %612 = vmatprep.subr.mxu0 0.0
    %613 = vmatpush1.xpose.msra.mxu0 %v610
    %614 = vmatprep.subr.mxu0 0.0
    %615 = vmatpush1.xpose.msra.mxu0 0.0
    %616 = vmatprep.subr.mxu0 0.0
    %617 = vmatpush1.xpose.msra.mxu0 0.0
    %618 = vmatprep.subr.mxu0 0.0
    %619 = vmatpush1.xpose.msra.mxu0 0.0
    %620 = vmatprep.subr.mxu0 0.0
    %621 = vmatpush1.xpose.msra.mxu0 0.0
    %622 = vmatprep.subr.mxu0 0.0
    %623 = vmatpush1.xpose.msra.mxu0 0.0
    %624 = vmatprep.subr.mxu0 0.0
    %625 = vmatpush1.xpose.msra.mxu0 0.0
    %626 = vmatprep.subr.mxu0 0.0
    %627 = vmatpush1.xpose.msra.mxu0 0.0
    %628 = vmatprep.subr.mxu0 0.0
    %629 = vmatpush1.xpose.msra.mxu0 0.0
    %630 = vmatprep.subr.mxu0 0.0
    %631 = vmatpush1.xpose.msra.mxu0 0.0
    %632 = vmatprep.subr.mxu0 0.0
    %633 = vmatpush1.xpose.msra.mxu0 0.0
    %634 = vmatprep.subr.mxu0 0.0
    %635 = vmatpush1.xpose.msra.mxu0 0.0
    %636 = vmatprep.subr.mxu0 0.0
    %637 = vmatpush1.xpose.msra.mxu0 0.0
    %638 = vmatprep.subr.mxu0 0.0
    %639 = vmatpush1.xpose.msra.mxu0 0.0
    %640 = vmatprep.subr.mxu0 0.0
    %641 = vmatpush1.xpose.msra.mxu0 0.0
    %642 = vmatprep.subr.mxu0 0.0
    %643 = vmatpush1.xpose.msra.mxu0 0.0
    %644 = vmatprep.subr.mxu0 0.0
    %645 = vmatpush1.xpose.msra.mxu0 0.0
    %646 = vmatprep.subr.mxu0 0.0
    %647 = vmatpush1.xpose.msra.mxu0 0.0
    %648 = vmatprep.subr.mxu0 0.0
    %649 = vmatpush1.xpose.msra.mxu0 0.0
    %650 = vmatprep.subr.mxu0 0.0
    %651 = vmatpush1.xpose.msra.mxu0 0.0
    %652 = vmatprep.subr.mxu0 0.0
    %653 = vmatpush1.xpose.msra.mxu0 0.0
    %654 = vmatprep.subr.mxu0 0.0
    %655 = vmatpush1.xpose.msra.mxu0 0.0
    %656 = vmatprep.subr.mxu0 0.0
    %657 = vmatpush1.xpose.msra.mxu0 0.0
    %658 = vmatprep.subr.mxu0 0.0
    %659 = vmatpush1.xpose.msra.mxu0 0.0
    %660 = vmatprep.subr.mxu0 0.0
    %661 = vmatpush1.xpose.msra.mxu0 0.0
    %662 = vmatprep.subr.mxu0 0.0
    %663 = vmatpush1.xpose.msra.mxu0 0.0
    %664 = vmatprep.subr.mxu0 0.0
    %665 = vmatpush1.xpose.msra.mxu0 0.0
    %666 = vmatprep.subr.mxu0 0.0
    %667 = vmatpush1.xpose.msra.mxu0 0.0
    %668 = vmatprep.subr.mxu0 0.0
    %669 = vmatpush1.xpose.msra.mxu0 0.0
    %670 = vmatprep.subr.mxu0 0.0
    %671 = vmatpush1.xpose.msra.mxu0 0.0
    %672 = vmatprep.subr.mxu0 0.0
    %673 = vmatpush1.xpose.msra.mxu0 0.0
    %674 = vmatprep.subr.mxu0 0.0
    %675 = vmatpush1.xpose.msra.mxu0 0.0
    %676 = vmatprep.mubr.f32.mxu0 0.0
    %677 = vmatmul.mubr.f32.gmra.mrb[0].mxu0 %v607
    %v678 = vpop.f32.mrb[0].mxu0
    %v679 = vadd.f32 %v262, %v678
    %v680 = vpop.f32.mrb[0].mxu0
    %681 = vdwg.mxu0
    %vm682 = vcmask 64512
    %v683 = vsel %vm682, %v603, -inf
    %684 = vmax.xlane.f32.xlu0 %v683
    %v685 = vpop.xlane.xlu0 %684
    %v686 = vsel %vm682, %v679, -inf
    %687 = vmax.xlane.f32.xlu0 %v686
    %v688 = vpop.xlane.xlu0 %687
    %v689 = vsub.f32 %v603, %v685
    %v690 = vsub.f32 %v679, %v688
    %v691 = vmul.f32 %v689, 1.442695
    %v692 = vpow.pop %v691
    %v693 = vmul.f32 %v690, 1.442695
    %v694 = vpow.pop %v693
    %v695 = vsel %vm682, %v692, 0.0
    %696 = vadd.xlane.f32.xlu0 %v695
    %v697 = vpop.xlane.xlu0 %696
    %v698 = vsel %vm682, %v694, 0.0
    %699 = vadd.xlane.f32.xlu0 %v698
    %v700 = vpop.xlane.xlu0 %699
    %v701 = vrcp.pop %v697
    %v702 = vrcp.pop %v700
    %v703 = vmul.f32 %v692, %v701
    %v704 = vmul.f32 %v694, %v702
    %v706 = vsel %vm682, %v703, 0
    %708 = vmatprep.subr.mxu0 0.0
    %709 = vmatpush1.msra.mxu0 %v521
    %710 = vmatprep.subr.mxu0 0.0
    %711 = vmatpush1.msra.mxu0 0.0
    %712 = vmatprep.subr.mxu0 0.0
    %713 = vmatpush1.msra.mxu0 0.0
    %714 = vmatprep.subr.mxu0 0.0
    %715 = vmatpush1.msra.mxu0 0.0
    %716 = vmatprep.subr.mxu0 0.0
    %717 = vmatpush1.msra.mxu0 0.0
    %718 = vmatprep.subr.mxu0 0.0
    %719 = vmatpush1.msra.mxu0 0.0
    %720 = vmatprep.subr.mxu0 0.0
    %721 = vmatpush1.msra.mxu0 0.0
    %722 = vmatprep.subr.mxu0 0.0
    %723 = vmatpush1.msra.mxu0 0.0
    %724 = vmatprep.subr.mxu0 0.0
    %725 = vmatpush1.msra.mxu0 0.0
    %726 = vmatprep.subr.mxu0 0.0
    %727 = vmatpush1.msra.mxu0 0.0
    %728 = vmatprep.subr.mxu0 0.0
    %729 = vmatpush1.msra.mxu0 0.0
    %730 = vmatprep.subr.mxu0 0.0
    %731 = vmatpush1.msra.mxu0 0.0
    %732 = vmatprep.subr.mxu0 0.0
    %733 = vmatpush1.msra.mxu0 0.0
    %734 = vmatprep.subr.mxu0 0.0
    %735 = vmatpush1.msra.mxu0 0.0
    %736 = vmatprep.subr.mxu0 0.0
    %737 = vmatpush1.msra.mxu0 0.0
    %738 = vmatprep.subr.mxu0 0.0
    %739 = vmatpush1.msra.mxu0 0.0
    %740 = vmatprep.subr.mxu0 0.0
    %741 = vmatpush1.msra.mxu0 0.0
    %742 = vmatprep.subr.mxu0 0.0
    %743 = vmatpush1.msra.mxu0 0.0
    %744 = vmatprep.subr.mxu0 0.0
    %745 = vmatpush1.msra.mxu0 0.0
    %746 = vmatprep.subr.mxu0 0.0
    %747 = vmatpush1.msra.mxu0 0.0
    %748 = vmatprep.subr.mxu0 0.0
    %749 = vmatpush1.msra.mxu0 0.0
    %750 = vmatprep.subr.mxu0 0.0
    %751 = vmatpush1.msra.mxu0 0.0
    %752 = vmatprep.subr.mxu0 0.0
    %753 = vmatpush1.msra.mxu0 0.0
    %754 = vmatprep.subr.mxu0 0.0
    %755 = vmatpush1.msra.mxu0 0.0
    %756 = vmatprep.subr.mxu0 0.0
    %757 = vmatpush1.msra.mxu0 0.0
    %758 = vmatprep.subr.mxu0 0.0
    %759 = vmatpush1.msra.mxu0 0.0
    %760 = vmatprep.subr.mxu0 0.0
    %761 = vmatpush1.msra.mxu0 0.0
    %762 = vmatprep.subr.mxu0 0.0
    %763 = vmatpush1.msra.mxu0 0.0
    %764 = vmatprep.subr.mxu0 0.0
    %765 = vmatpush1.msra.mxu0 0.0
    %766 = vmatprep.subr.mxu0 0.0
    %767 = vmatpush1.msra.mxu0 0.0
    %768 = vmatprep.subr.mxu0 0.0
    %769 = vmatpush1.msra.mxu0 0.0
    %770 = vmatprep.subr.mxu0 0.0
    %771 = vmatpush1.msra.mxu0 0.0
    %772 = vmatprep.mubr.f32.mxu0 0.0
    %773 = vmatmul.mubr.f32.gmra.mrb[0].mxu0 %v706
    %v774 = vpop.f32.mrb[0].mxu0
    %v775 = vadd.f32 0.0, %v774
    %v776 = vpop.f32.mrb[0].mxu0
    %777 = vdwg.mxu0
    %v779 = vsel %vm682, %v704, 0
    %781 = vmatprep.subr.mxu0 0.0
    %782 = vmatpush1.msra.mxu0 %v526
    %783 = vmatprep.subr.mxu0 0.0
    %784 = vmatpush1.msra.mxu0 0.0
    %785 = vmatprep.subr.mxu0 0.0
    %786 = vmatpush1.msra.mxu0 0.0
    %787 = vmatprep.subr.mxu0 0.0
    %788 = vmatpush1.msra.mxu0 0.0
    %789 = vmatprep.subr.mxu0 0.0
    %790 = vmatpush1.msra.mxu0 0.0
    %791 = vmatprep.subr.mxu0 0.0
    %792 = vmatpush1.msra.mxu0 0.0
    %793 = vmatprep.subr.mxu0 0.0
    %794 = vmatpush1.msra.mxu0 0.0
    %795 = vmatprep.subr.mxu0 0.0
    %796 = vmatpush1.msra.mxu0 0.0
    %797 = vmatprep.subr.mxu0 0.0
    %798 = vmatpush1.msra.mxu0 0.0
    %799 = vmatprep.subr.mxu0 0.0
    %800 = vmatpush1.msra.mxu0 0.0
    %801 = vmatprep.subr.mxu0 0.0
    %802 = vmatpush1.msra.mxu0 0.0
    %803 = vmatprep.subr.mxu0 0.0
    %804 = vmatpush1.msra.mxu0 0.0
    %805 = vmatprep.subr.mxu0 0.0
    %806 = vmatpush1.msra.mxu0 0.0
    %807 = vmatprep.subr.mxu0 0.0
    %808 = vmatpush1.msra.mxu0 0.0
    %809 = vmatprep.subr.mxu0 0.0
    %810 = vmatpush1.msra.mxu0 0.0
    %811 = vmatprep.subr.mxu0 0.0
    %812 = vmatpush1.msra.mxu0 0.0
    %813 = vmatprep.subr.mxu0 0.0
    %814 = vmatpush1.msra.mxu0 0.0
    %815 = vmatprep.subr.mxu0 0.0
    %816 = vmatpush1.msra.mxu0 0.0
    %817 = vmatprep.subr.mxu0 0.0
    %818 = vmatpush1.msra.mxu0 0.0
    %819 = vmatprep.subr.mxu0 0.0
    %820 = vmatpush1.msra.mxu0 0.0
    %821 = vmatprep.subr.mxu0 0.0
    %822 = vmatpush1.msra.mxu0 0.0
    %823 = vmatprep.subr.mxu0 0.0
    %824 = vmatpush1.msra.mxu0 0.0
    %825 = vmatprep.subr.mxu0 0.0
    %826 = vmatpush1.msra.mxu0 0.0
    %827 = vmatprep.subr.mxu0 0.0
    %828 = vmatpush1.msra.mxu0 0.0
    %829 = vmatprep.subr.mxu0 0.0
    %830 = vmatpush1.msra.mxu0 0.0
    %831 = vmatprep.subr.mxu0 0.0
    %832 = vmatpush1.msra.mxu0 0.0
    %833 = vmatprep.subr.mxu0 0.0
    %834 = vmatpush1.msra.mxu0 0.0
    %835 = vmatprep.subr.mxu0 0.0
    %836 = vmatpush1.msra.mxu0 0.0
    %837 = vmatprep.subr.mxu0 0.0
    %838 = vmatpush1.msra.mxu0 0.0
    %839 = vmatprep.subr.mxu0 0.0
    %840 = vmatpush1.msra.mxu0 0.0
    %841 = vmatprep.subr.mxu0 0.0
    %842 = vmatpush1.msra.mxu0 0.0
    %843 = vmatprep.subr.mxu0 0.0
    %844 = vmatpush1.msra.mxu0 0.0
    %845 = vmatprep.mubr.f32.mxu0 0.0
    %846 = vmatmul.mubr.f32.gmra.mrb[0].mxu0 %v779
    %v847 = vpop.f32.mrb[0].mxu0
    %v848 = vadd.f32 0.0, %v847
    %v849 = vpop.f32.mrb[0].mxu0
    %850 = vdwg.mxu0
    %851 = vrot.lane.b32.xlu0 %v355, 112
    %v852 = vpop.permute.xlu0 %851
    %853 = vrot.lane.b32.xlu0 %v435, 112
    %v854 = vpop.permute.xlu0 %853
    %v855 = vsel %vm529, %v852, 0
    %v857 = vsel %vm529, %v854, 0
    %859 = vmatprep.subr.mxu0 0.0
    %860 = vmatpush1.xpose.msra.mxu0 %v857
    %861 = vmatprep.subr.mxu0 0.0
    %862 = vmatpush1.xpose.msra.mxu0 0.0
    %863 = vmatprep.subr.mxu0 0.0
    %864 = vmatpush1.xpose.msra.mxu0 0.0
    %865 = vmatprep.subr.mxu0 0.0
    %866 = vmatpush1.xpose.msra.mxu0 0.0
    %867 = vmatprep.subr.mxu0 0.0
    %868 = vmatpush1.xpose.msra.mxu0 0.0
    %869 = vmatprep.subr.mxu0 0.0
    %870 = vmatpush1.xpose.msra.mxu0 0.0
    %871 = vmatprep.subr.mxu0 0.0
    %872 = vmatpush1.xpose.msra.mxu0 0.0
    %873 = vmatprep.subr.mxu0 0.0
    %874 = vmatpush1.xpose.msra.mxu0 0.0
    %875 = vmatprep.subr.mxu0 0.0
    %876 = vmatpush1.xpose.msra.mxu0 0.0
    %877 = vmatprep.subr.mxu0 0.0
    %878 = vmatpush1.xpose.msra.mxu0 0.0
    %879 = vmatprep.subr.mxu0 0.0
    %880 = vmatpush1.xpose.msra.mxu0 0.0
    %881 = vmatprep.subr.mxu0 0.0
    %882 = vmatpush1.xpose.msra.mxu0 0.0
    %883 = vmatprep.subr.mxu0 0.0
    %884 = vmatpush1.xpose.msra.mxu0 0.0
    %885 = vmatprep.subr.mxu0 0.0
    %886 = vmatpush1.xpose.msra.mxu0 0.0
    %887 = vmatprep.subr.mxu0 0.0
    %888 = vmatpush1.xpose.msra.mxu0 0.0
    %889 = vmatprep.subr.mxu0 0.0
    %890 = vmatpush1.xpose.msra.mxu0 0.0
    %891 = vmatprep.subr.mxu0 0.0
    %892 = vmatpush1.xpose.msra.mxu0 0.0
    %893 = vmatprep.subr.mxu0 0.0
    %894 = vmatpush1.xpose.msra.mxu0 0.0
    %895 = vmatprep.subr.mxu0 0.0
    %896 = vmatpush1.xpose.msra.mxu0 0.0
    %897 = vmatprep.subr.mxu0 0.0
    %898 = vmatpush1.xpose.msra.mxu0 0.0
    %899 = vmatprep.subr.mxu0 0.0
    %900 = vmatpush1.xpose.msra.mxu0 0.0
    %901 = vmatprep.subr.mxu0 0.0
    %902 = vmatpush1.xpose.msra.mxu0 0.0
    %903 = vmatprep.subr.mxu0 0.0
    %904 = vmatpush1.xpose.msra.mxu0 0.0
    %905 = vmatprep.subr.mxu0 0.0
    %906 = vmatpush1.xpose.msra.mxu0 0.0
    %907 = vmatprep.subr.mxu0 0.0
    %908 = vmatpush1.xpose.msra.mxu0 0.0
    %909 = vmatprep.subr.mxu0 0.0
    %910 = vmatpush1.xpose.msra.mxu0 0.0
    %911 = vmatprep.subr.mxu0 0.0
    %912 = vmatpush1.xpose.msra.mxu0 0.0
    %913 = vmatprep.subr.mxu0 0.0
    %914 = vmatpush1.xpose.msra.mxu0 0.0
    %915 = vmatprep.subr.mxu0 0.0
    %916 = vmatpush1.xpose.msra.mxu0 0.0
    %917 = vmatprep.subr.mxu0 0.0
    %918 = vmatpush1.xpose.msra.mxu0 0.0
    %919 = vmatprep.subr.mxu0 0.0
    %920 = vmatpush1.xpose.msra.mxu0 0.0
    %921 = vmatprep.subr.mxu0 0.0
    %922 = vmatpush1.xpose.msra.mxu0 0.0
    %923 = vmatprep.mubr.f32.mxu0 0.0
    %924 = vmatmul.mubr.f32.gmra.mrb[0].mxu0 %v855
    %v925 = vpop.f32.mrb[0].mxu0
    %v926 = vadd.f32 %v257, %v925
    %v927 = vpop.f32.mrb[0].mxu0
    %928 = vdwg.mxu0
    %929 = vrot.lane.b32.xlu0 %v356, 112
    %v930 = vpop.permute.xlu0 %929
    %931 = vrot.lane.b32.xlu0 %v440, 112
    %v932 = vpop.permute.xlu0 %931
    %v933 = vsel %vm529, %v930, 0
    %v935 = vsel %vm529, %v932, 0
    %937 = vmatprep.subr.mxu0 0.0
    %938 = vmatpush1.xpose.msra.mxu0 %v935
    %939 = vmatprep.subr.mxu0 0.0
    %940 = vmatpush1.xpose.msra.mxu0 0.0
    %941 = vmatprep.subr.mxu0 0.0
    %942 = vmatpush1.xpose.msra.mxu0 0.0
    %943 = vmatprep.subr.mxu0 0.0
    %944 = vmatpush1.xpose.msra.mxu0 0.0
    %945 = vmatprep.subr.mxu0 0.0
    %946 = vmatpush1.xpose.msra.mxu0 0.0
    %947 = vmatprep.subr.mxu0 0.0
    %948 = vmatpush1.xpose.msra.mxu0 0.0
    %949 = vmatprep.subr.mxu0 0.0
    %950 = vmatpush1.xpose.msra.mxu0 0.0
    %951 = vmatprep.subr.mxu0 0.0
    %952 = vmatpush1.xpose.msra.mxu0 0.0
    %953 = vmatprep.subr.mxu0 0.0
    %954 = vmatpush1.xpose.msra.mxu0 0.0
    %955 = vmatprep.subr.mxu0 0.0
    %956 = vmatpush1.xpose.msra.mxu0 0.0
    %957 = vmatprep.subr.mxu0 0.0
    %958 = vmatpush1.xpose.msra.mxu0 0.0
    %959 = vmatprep.subr.mxu0 0.0
    %960 = vmatpush1.xpose.msra.mxu0 0.0
    %961 = vmatprep.subr.mxu0 0.0
    %962 = vmatpush1.xpose.msra.mxu0 0.0
    %963 = vmatprep.subr.mxu0 0.0
    %964 = vmatpush1.xpose.msra.mxu0 0.0
    %965 = vmatprep.subr.mxu0 0.0
    %966 = vmatpush1.xpose.msra.mxu0 0.0
    %967 = vmatprep.subr.mxu0 0.0
    %968 = vmatpush1.xpose.msra.mxu0 0.0
    %969 = vmatprep.subr.mxu0 0.0
    %970 = vmatpush1.xpose.msra.mxu0 0.0
    %971 = vmatprep.subr.mxu0 0.0
    %972 = vmatpush1.xpose.msra.mxu0 0.0
    %973 = vmatprep.subr.mxu0 0.0
    %974 = vmatpush1.xpose.msra.mxu0 0.0
    %975 = vmatprep.subr.mxu0 0.0
    %976 = vmatpush1.xpose.msra.mxu0 0.0
    %977 = vmatprep.subr.mxu0 0.0
    %978 = vmatpush1.xpose.msra.mxu0 0.0
    %979 = vmatprep.subr.mxu0 0.0
    %980 = vmatpush1.xpose.msra.mxu0 0.0
    %981 = vmatprep.subr.mxu0 0.0
    %982 = vmatpush1.xpose.msra.mxu0 0.0
    %983 = vmatprep.subr.mxu0 0.0
    %984 = vmatpush1.xpose.msra.mxu0 0.0
    %985 = vmatprep.subr.mxu0 0.0
    %986 = vmatpush1.xpose.msra.mxu0 0.0
    %987 = vmatprep.subr.mxu0 0.0
    %988 = vmatpush1.xpose.msra.mxu0 0.0
    %989 = vmatprep.subr.mxu0 0.0
    %990 = vmatpush1.xpose.msra.mxu0 0.0
    %991 = vmatprep.subr.mxu0 0.0
    %992 = vmatpush1.xpose.msra.mxu0 0.0
    %993 = vmatprep.subr.mxu0 0.0
    %994 = vmatpush1.xpose.msra.mxu0 0.0
    %995 = vmatprep.subr.mxu0 0.0
    %996 = vmatpush1.xpose.msra.mxu0 0.0
    %997 = vmatprep.subr.mxu0 0.0
    %998 = vmatpush1.xpose.msra.mxu0 0.0
    %999 = vmatprep.subr.mxu0 0.0
    %1000 = vmatpush1.xpose.msra.mxu0 0.0
    %1001 = vmatprep.mubr.f32.mxu0 0.0
    %1002 = vmatmul.mubr.f32.gmra.mrb[0].mxu0 %v933
    %v1003 = vpop.f32.mrb[0].mxu0
    %v1004 = vadd.f32 %v262, %v1003
    %v1005 = vpop.f32.mrb[0].mxu0
    %1006 = vdwg.mxu0
    %v1007 = vsel %vm682, %v926, -inf
    %1008 = vmax.xlane.f32.xlu0 %v1007
    %v1009 = vpop.xlane.xlu0 %1008
    %v1010 = vsel %vm682, %v1004, -inf
    %1011 = vmax.xlane.f32.xlu0 %v1010
    %v1012 = vpop.xlane.xlu0 %1011
    %v1013 = vsub.f32 %v926, %v1009
    %v1014 = vsub.f32 %v1004, %v1012
    %v1015 = vmul.f32 %v1013, 1.442695
    %v1016 = vpow.pop %v1015
    %v1017 = vmul.f32 %v1014, 1.442695
    %v1018 = vpow.pop %v1017
    %v1019 = vsel %vm682, %v1016, 0.0
    %1020 = vadd.xlane.f32.xlu0 %v1019
    %v1021 = vpop.xlane.xlu0 %1020
    %v1022 = vsel %vm682, %v1018, 0.0
    %1023 = vadd.xlane.f32.xlu0 %v1022
    %v1024 = vpop.xlane.xlu0 %1023
    %v1025 = vrcp.pop %v1021
    %v1026 = vrcp.pop %v1024
    %v1027 = vmul.f32 %v1016, %v1025
    %v1028 = vmul.f32 %v1018, %v1026
    %1030 = vrot.lane.b32.xlu0 %v521, 112
    %v1031 = vpop.permute.xlu0 %1030
    %v1034 = vsel %vm682, %v1027, 0
    %1036 = vmatprep.subr.mxu0 0.0
    %1037 = vmatpush1.msra.mxu0 %v1031
    %1038 = vmatprep.subr.mxu0 0.0
    %1039 = vmatpush1.msra.mxu0 0.0
    %1040 = vmatprep.subr.mxu0 0.0
    %1041 = vmatpush1.msra.mxu0 0.0
    %1042 = vmatprep.subr.mxu0 0.0
    %1043 = vmatpush1.msra.mxu0 0.0
    %1044 = vmatprep.subr.mxu0 0.0
    %1045 = vmatpush1.msra.mxu0 0.0
    %1046 = vmatprep.subr.mxu0 0.0
    %1047 = vmatpush1.msra.mxu0 0.0
    %1048 = vmatprep.subr.mxu0 0.0
    %1049 = vmatpush1.msra.mxu0 0.0
    %1050 = vmatprep.subr.mxu0 0.0
    %1051 = vmatpush1.msra.mxu0 0.0
    %1052 = vmatprep.subr.mxu0 0.0
    %1053 = vmatpush1.msra.mxu0 0.0
    %1054 = vmatprep.subr.mxu0 0.0
    %1055 = vmatpush1.msra.mxu0 0.0
    %1056 = vmatprep.subr.mxu0 0.0
    %1057 = vmatpush1.msra.mxu0 0.0
    %1058 = vmatprep.subr.mxu0 0.0
    %1059 = vmatpush1.msra.mxu0 0.0
    %1060 = vmatprep.subr.mxu0 0.0
    %1061 = vmatpush1.msra.mxu0 0.0
    %1062 = vmatprep.subr.mxu0 0.0
    %1063 = vmatpush1.msra.mxu0 0.0
    %1064 = vmatprep.subr.mxu0 0.0
    %1065 = vmatpush1.msra.mxu0 0.0
    %1066 = vmatprep.subr.mxu0 0.0
    %1067 = vmatpush1.msra.mxu0 0.0
    %1068 = vmatprep.subr.mxu0 0.0
    %1069 = vmatpush1.msra.mxu0 0.0
    %1070 = vmatprep.subr.mxu0 0.0
    %1071 = vmatpush1.msra.mxu0 0.0
    %1072 = vmatprep.subr.mxu0 0.0
    %1073 = vmatpush1.msra.mxu0 0.0
    %1074 = vmatprep.subr.mxu0 0.0
    %1075 = vmatpush1.msra.mxu0 0.0
    %1076 = vmatprep.subr.mxu0 0.0
    %1077 = vmatpush1.msra.mxu0 0.0
    %1078 = vmatprep.subr.mxu0 0.0
    %1079 = vmatpush1.msra.mxu0 0.0
    %1080 = vmatprep.subr.mxu0 0.0
    %1081 = vmatpush1.msra.mxu0 0.0
    %1082 = vmatprep.subr.mxu0 0.0
    %1083 = vmatpush1.msra.mxu0 0.0
    %1084 = vmatprep.subr.mxu0 0.0
    %1085 = vmatpush1.msra.mxu0 0.0
    %1086 = vmatprep.subr.mxu0 0.0
    %1087 = vmatpush1.msra.mxu0 0.0
    %1088 = vmatprep.subr.mxu0 0.0
    %1089 = vmatpush1.msra.mxu0 0.0
    %1090 = vmatprep.subr.mxu0 0.0
    %1091 = vmatpush1.msra.mxu0 0.0
    %1092 = vmatprep.subr.mxu0 0.0
    %1093 = vmatpush1.msra.mxu0 0.0
    %1094 = vmatprep.subr.mxu0 0.0
    %1095 = vmatpush1.msra.mxu0 0.0
    %1096 = vmatprep.subr.mxu0 0.0
    %1097 = vmatpush1.msra.mxu0 0.0
    %1098 = vmatprep.subr.mxu0 0.0
    %1099 = vmatpush1.msra.mxu0 0.0
    %1100 = vmatprep.mubr.f32.mxu0 0.0
    %1101 = vmatmul.mubr.f32.gmra.mrb[0].mxu0 %v1034
    %v1102 = vpop.f32.mrb[0].mxu0
    %v1103 = vadd.f32 0.0, %v1102
    %v1104 = vpop.f32.mrb[0].mxu0
    %1105 = vdwg.mxu0
    %1107 = vrot.lane.b32.xlu0 %v526, 112
    %v1108 = vpop.permute.xlu0 %1107
    %v1111 = vsel %vm682, %v1028, 0
    %1113 = vmatprep.subr.mxu0 0.0
    %1114 = vmatpush1.msra.mxu0 %v1108
    %1115 = vmatprep.subr.mxu0 0.0
    %1116 = vmatpush1.msra.mxu0 0.0
    %1117 = vmatprep.subr.mxu0 0.0
    %1118 = vmatpush1.msra.mxu0 0.0
    %1119 = vmatprep.subr.mxu0 0.0
    %1120 = vmatpush1.msra.mxu0 0.0
    %1121 = vmatprep.subr.mxu0 0.0
    %1122 = vmatpush1.msra.mxu0 0.0
    %1123 = vmatprep.subr.mxu0 0.0
    %1124 = vmatpush1.msra.mxu0 0.0
    %1125 = vmatprep.subr.mxu0 0.0
    %1126 = vmatpush1.msra.mxu0 0.0
    %1127 = vmatprep.subr.mxu0 0.0
    %1128 = vmatpush1.msra.mxu0 0.0
    %1129 = vmatprep.subr.mxu0 0.0
    %1130 = vmatpush1.msra.mxu0 0.0
    %1131 = vmatprep.subr.mxu0 0.0
    %1132 = vmatpush1.msra.mxu0 0.0
    %1133 = vmatprep.subr.mxu0 0.0
    %1134 = vmatpush1.msra.mxu0 0.0
    %1135 = vmatprep.subr.mxu0 0.0
    %1136 = vmatpush1.msra.mxu0 0.0
    %1137 = vmatprep.subr.mxu0 0.0
    %1138 = vmatpush1.msra.mxu0 0.0
    %1139 = vmatprep.subr.mxu0 0.0
    %1140 = vmatpush1.msra.mxu0 0.0
    %1141 = vmatprep.subr.mxu0 0.0
    %1142 = vmatpush1.msra.mxu0 0.0
    %1143 = vmatprep.subr.mxu0 0.0
    %1144 = vmatpush1.msra.mxu0 0.0
    %1145 = vmatprep.subr.mxu0 0.0
    %1146 = vmatpush1.msra.mxu0 0.0
    %1147 = vmatprep.subr.mxu0 0.0
    %1148 = vmatpush1.msra.mxu0 0.0
    %1149 = vmatprep.subr.mxu0 0.0
    %1150 = vmatpush1.msra.mxu0 0.0
    %1151 = vmatprep.subr.mxu0 0.0
    %1152 = vmatpush1.msra.mxu0 0.0
    %1153 = vmatprep.subr.mxu0 0.0
    %1154 = vmatpush1.msra.mxu0 0.0
    %1155 = vmatprep.subr.mxu0 0.0
    %1156 = vmatpush1.msra.mxu0 0.0
    %1157 = vmatprep.subr.mxu0 0.0
    %1158 = vmatpush1.msra.mxu0 0.0
    %1159 = vmatprep.subr.mxu0 0.0
    %1160 = vmatpush1.msra.mxu0 0.0
    %1161 = vmatprep.subr.mxu0 0.0
    %1162 = vmatpush1.msra.mxu0 0.0
    %1163 = vmatprep.subr.mxu0 0.0
    %1164 = vmatpush1.msra.mxu0 0.0
    %1165 = vmatprep.subr.mxu0 0.0
    %1166 = vmatpush1.msra.mxu0 0.0
    %1167 = vmatprep.subr.mxu0 0.0
    %1168 = vmatpush1.msra.mxu0 0.0
    %1169 = vmatprep.subr.mxu0 0.0
    %1170 = vmatpush1.msra.mxu0 0.0
    %1171 = vmatprep.subr.mxu0 0.0
    %1172 = vmatpush1.msra.mxu0 0.0
    %1173 = vmatprep.subr.mxu0 0.0
    %1174 = vmatpush1.msra.mxu0 0.0
    %1175 = vmatprep.subr.mxu0 0.0
    %1176 = vmatpush1.msra.mxu0 0.0
    %1177 = vmatprep.mubr.f32.mxu0 0.0
    %1178 = vmatmul.mubr.f32.gmra.mrb[0].mxu0 %v1111
    %v1179 = vpop.f32.mrb[0].mxu0
    %v1180 = vadd.f32 0.0, %v1179
    %v1181 = vpop.f32.mrb[0].mxu0
    %1182 = vdwg.mxu0
    %1185 = vrot.lane.b32.xlu0 %v1103, 16
    %v1186 = vpop.permute.xlu0 %1185
    %1187 = vrot.lane.b32.xlu0 %v1180, 16
    %v1188 = vpop.permute.xlu0 %1187
    %v1191 = vsel %vm529, %v775, %v1186
    %v1192 = vsel %vm529, %v848, %v1188
    %v1193 = vld [vmem:[%s13] sm:$0xff]
    %v1194 = vld [vmem:[%s13 + $0x8] sm:$0xff]
    %v1195 = vld [vmem:[%s13 + $0x10] sm:$0xff]
    %v1196 = vld [vmem:[%s13 + $0x18] sm:$0xff]
    %v1197 = vld [vmem:[%s14] sm:$0x1]
    %v1199 = vlaneseq
    %v1200 = vshrl.u32 %v1199, 7
    %v1201 = vsub.s32 0, %v1200
    %v1202 = vrot.slane %v1197, %v1201
    %v1205 = vsel %vm206, %v1191, 0
    %v1208 = vsel %vm206, %v1192, 0
    %1210 = vmatprep.subr.mxu0 0.0
    %1211 = vmatpush1.msra.mxu0 %v1193
    %1212 = vmatprep.subr.mxu0 0.0
    %1213 = vmatpush1.msra.mxu0 %v1194
    %1214 = vmatprep.subr.mxu0 0.0
    %1215 = vmatpush1.msra.mxu0 %v1195
    %1216 = vmatprep.subr.mxu0 0.0
    %1217 = vmatpush1.msra.mxu0 %v1196
    %1218 = vmatprep.subr.mxu0 0.0
    %1219 = vmatpush1.msra.mxu0 0.0
    %1220 = vmatprep.subr.mxu0 0.0
    %1221 = vmatpush1.msra.mxu0 0.0
    %1222 = vmatprep.subr.mxu0 0.0
    %1223 = vmatpush1.msra.mxu0 0.0
    %1224 = vmatprep.subr.mxu0 0.0
    %1225 = vmatpush1.msra.mxu0 0.0
    %1226 = vmatprep.subr.mxu0 0.0
    %1227 = vmatpush1.msra.mxu0 0.0
    %1228 = vmatprep.subr.mxu0 0.0
    %1229 = vmatpush1.msra.mxu0 0.0
    %1230 = vmatprep.subr.mxu0 0.0
    %1231 = vmatpush1.msra.mxu0 0.0
    %1232 = vmatprep.subr.mxu0 0.0
    %1233 = vmatpush1.msra.mxu0 0.0
    %1234 = vmatprep.subr.mxu0 0.0
    %1235 = vmatpush1.msra.mxu0 0.0
    %1236 = vmatprep.subr.mxu0 0.0
    %1237 = vmatpush1.msra.mxu0 0.0
    %1238 = vmatprep.subr.mxu0 0.0
    %1239 = vmatpush1.msra.mxu0 0.0
    %1240 = vmatprep.subr.mxu0 0.0
    %1241 = vmatpush1.msra.mxu0 0.0
    %1242 = vmatprep.subr.mxu0 0.0
    %1243 = vmatpush1.msra.mxu0 0.0
    %1244 = vmatprep.subr.mxu0 0.0
    %1245 = vmatpush1.msra.mxu0 0.0
    %1246 = vmatprep.subr.mxu0 0.0
    %1247 = vmatpush1.msra.mxu0 0.0
    %1248 = vmatprep.subr.mxu0 0.0
    %1249 = vmatpush1.msra.mxu0 0.0
    %1250 = vmatprep.subr.mxu0 0.0
    %1251 = vmatpush1.msra.mxu0 0.0
    %1252 = vmatprep.subr.mxu0 0.0
    %1253 = vmatpush1.msra.mxu0 0.0
    %1254 = vmatprep.subr.mxu0 0.0
    %1255 = vmatpush1.msra.mxu0 0.0
    %1256 = vmatprep.subr.mxu0 0.0
    %1257 = vmatpush1.msra.mxu0 0.0
    %1258 = vmatprep.subr.mxu0 0.0
    %1259 = vmatpush1.msra.mxu0 0.0
    %1260 = vmatprep.subr.mxu0 0.0
    %1261 = vmatpush1.msra.mxu0 0.0
    %1262 = vmatprep.subr.mxu0 0.0
    %1263 = vmatpush1.msra.mxu0 0.0
    %1264 = vmatprep.subr.mxu0 0.0
    %1265 = vmatpush1.msra.mxu0 0.0
    %1266 = vmatprep.subr.mxu0 0.0
    %1267 = vmatpush1.msra.mxu0 0.0
    %1268 = vmatprep.subr.mxu0 0.0
    %1269 = vmatpush1.msra.mxu0 0.0
    %1270 = vmatprep.subr.mxu0 0.0
    %1271 = vmatpush1.msra.mxu0 0.0
    %1272 = vmatprep.subr.mxu0 0.0
    %1273 = vmatpush1.msra.mxu0 0.0
    %1274 = vmatprep.mubr.f32.mxu0 0.0
    %1275 = vmatmul.mubr.f32.gmra.mrb[0].mxu0 %v1205
    %v1276 = vpop.f32.mrb[0].mxu0
    %v1277 = vadd.f32 %v1202, %v1276
    %v1278 = vpop.f32.mrb[0].mxu0
    %1279 = vmatprep.mubr.f32.mxu0 0.0
    %1280 = vmatmul.mubr.f32.gmra.mrb[0].mxu0 %v1208
    %v1281 = vpop.f32.mrb[0].mxu0
    %v1282 = vadd.f32 %v1202, %v1281
    %v1283 = vpop.f32.mrb[0].mxu0
    %1284 = vdwg.mxu0
    %v1285 = vadd.f32 %v248, %v1277
    %v1286 = vadd.f32 %v249, %v1282
    %v1287 = vld [vmem:[%s15] sm:$0x1]
    %v1288 = vld [vmem:[%s16] sm:$0x1]
    %v1289 = vsel %vm206, %v1285, 0.0
    %1290 = vadd.xlane.f32.xlu0 %v1289
    %v1291 = vpop.xlane.xlu0 %1290
    %v1292 = vsel %vm206, %v1286, 0.0
    %1293 = vadd.xlane.f32.xlu0 %v1292
    %v1294 = vpop.xlane.xlu0 %1293
    %v1295 = vmul.f32 %v1291, %v213
    %v1296 = vmul.f32 %v1294, %v213
    %v1297 = vsub.f32 %v1285, %v1295
    %v1298 = vsub.f32 %v1286, %v1296
    %v1299 = vmul.f32 %v1297, %v1297
    %v1300 = vmul.f32 %v1298, %v1298
    %v1301 = vsel %vm206, %v1299, 0.0
    %1302 = vadd.xlane.f32.xlu0 %v1301
    %v1303 = vpop.xlane.xlu0 %1302
    %v1304 = vsel %vm206, %v1300, 0.0
    %1305 = vadd.xlane.f32.xlu0 %v1304
    %v1306 = vpop.xlane.xlu0 %1305
    %v1307 = vmul.f32 %v1303, %v213
    %v1308 = vmul.f32 %v1306, %v213
    %v1309 = vadd.f32 %v1307, 1e-12
    %v1310 = vadd.f32 %v1308, 1e-12
    %v1311 = vrsqrt.pop %v1309
    %v1312 = vrsqrt.pop %v1310
    %v1313 = vmul.f32 %v1297, %v1311
    %v1314 = vmul.f32 %v1298, %v1312
    %v1316 = vlaneseq
    %v1317 = vshrl.u32 %v1316, 7
    %v1318 = vsub.s32 0, %v1317
    %v1319 = vrot.slane %v1287, %v1318
    %v1321 = vmul.f32 %v1313, %v1319
    %v1322 = vmul.f32 %v1314, %v1319
    %v1324 = vlaneseq
    %v1325 = vshrl.u32 %v1324, 7
    %v1326 = vsub.s32 0, %v1325
    %v1327 = vrot.slane %v1288, %v1326
    %v1329 = vadd.f32 %v1321, %v1327
    %v1330 = vadd.f32 %v1322, %v1327
    %v1331 = vld [vmem:[%s17] sm:$0xff]
    %v1332 = vld [vmem:[%s17 + $0x8] sm:$0xff]
    %v1333 = vld [vmem:[%s17 + $0x10] sm:$0xff]
    %v1334 = vld [vmem:[%s17 + $0x18] sm:$0xff]
    %v1335 = vld [vmem:[%s18] sm:$0x1]
    %v1337 = vlaneseq
    %v1338 = vshrl.u32 %v1337, 7
    %v1339 = vsub.s32 0, %v1338
    %v1340 = vrot.slane %v1335, %v1339
    %v1343 = vsel %vm206, %v1329, 0
    %v1346 = vsel %vm206, %v1330, 0
    %1348 = vmatprep.subr.mxu0 0.0
    %1349 = vmatpush1.msra.mxu0 %v1331
    %1350 = vmatprep.subr.mxu0 0.0
    %1351 = vmatpush1.msra.mxu0 %v1332
    %1352 = vmatprep.subr.mxu0 0.0
    %1353 = vmatpush1.msra.mxu0 %v1333
    %1354 = vmatprep.subr.mxu0 0.0
    %1355 = vmatpush1.msra.mxu0 %v1334
    %1356 = vmatprep.subr.mxu0 0.0
    %1357 = vmatpush1.msra.mxu0 0.0
    %1358 = vmatprep.subr.mxu0 0.0
    %1359 = vmatpush1.msra.mxu0 0.0
    %1360 = vmatprep.subr.mxu0 0.0
    %1361 = vmatpush1.msra.mxu0 0.0
    %1362 = vmatprep.subr.mxu0 0.0
    %1363 = vmatpush1.msra.mxu0 0.0
    %1364 = vmatprep.subr.mxu0 0.0
    %1365 = vmatpush1.msra.mxu0 0.0
    %1366 = vmatprep.subr.mxu0 0.0
    %1367 = vmatpush1.msra.mxu0 0.0
    %1368 = vmatprep.subr.mxu0 0.0
    %1369 = vmatpush1.msra.mxu0 0.0
    %1370 = vmatprep.subr.mxu0 0.0
    %1371 = vmatpush1.msra.mxu0 0.0
    %1372 = vmatprep.subr.mxu0 0.0
    %1373 = vmatpush1.msra.mxu0 0.0
    %1374 = vmatprep.subr.mxu0 0.0
    %1375 = vmatpush1.msra.mxu0 0.0
    %1376 = vmatprep.subr.mxu0 0.0
    %1377 = vmatpush1.msra.mxu0 0.0
    %1378 = vmatprep.subr.mxu0 0.0
    %1379 = vmatpush1.msra.mxu0 0.0
    %1380 = vmatprep.subr.mxu0 0.0
    %1381 = vmatpush1.msra.mxu0 0.0
    %1382 = vmatprep.subr.mxu0 0.0
    %1383 = vmatpush1.msra.mxu0 0.0
    %1384 = vmatprep.subr.mxu0 0.0
    %1385 = vmatpush1.msra.mxu0 0.0
    %1386 = vmatprep.subr.mxu0 0.0
    %1387 = vmatpush1.msra.mxu0 0.0
    %1388 = vmatprep.subr.mxu0 0.0
    %1389 = vmatpush1.msra.mxu0 0.0
    %1390 = vmatprep.subr.mxu0 0.0
    %1391 = vmatpush1.msra.mxu0 0.0
    %1392 = vmatprep.subr.mxu0 0.0
    %1393 = vmatpush1.msra.mxu0 0.0
    %1394 = vmatprep.subr.mxu0 0.0
    %1395 = vmatpush1.msra.mxu0 0.0
    %1396 = vmatprep.subr.mxu0 0.0
    %1397 = vmatpush1.msra.mxu0 0.0
    %1398 = vmatprep.subr.mxu0 0.0
    %1399 = vmatpush1.msra.mxu0 0.0
    %1400 = vmatprep.subr.mxu0 0.0
    %1401 = vmatpush1.msra.mxu0 0.0
    %1402 = vmatprep.subr.mxu0 0.0
    %1403 = vmatpush1.msra.mxu0 0.0
    %1404 = vmatprep.subr.mxu0 0.0
    %1405 = vmatpush1.msra.mxu0 0.0
    %1406 = vmatprep.subr.mxu0 0.0
    %1407 = vmatpush1.msra.mxu0 0.0
    %1408 = vmatprep.subr.mxu0 0.0
    %1409 = vmatpush1.msra.mxu0 0.0
    %1410 = vmatprep.subr.mxu0 0.0
    %1411 = vmatpush1.msra.mxu0 0.0
    %1412 = vmatprep.mubr.f32.mxu0 0.0
    %1413 = vmatmul.mubr.f32.gmra.mrb[0].mxu0 %v1343
    %v1414 = vpop.f32.mrb[0].mxu0
    %v1415 = vadd.f32 %v1340, %v1414
    %v1416 = vpop.f32.mrb[0].mxu0
    %1417 = vmatprep.mubr.f32.mxu0 0.0
    %1418 = vmatmul.mubr.f32.gmra.mrb[0].mxu0 %v1346
    %v1419 = vpop.f32.mrb[0].mxu0
    %v1420 = vadd.f32 %v1340, %v1419
    %v1421 = vpop.f32.mrb[0].mxu0
    %1422 = vdwg.mxu0
    %v1423 = vmul.f32 %v1415, 0.5
    %v1424 = vmul.f32 %v1420, 0.5
    %v1425 = vmul.f32 %v1415, 0.044715
    %v1426 = vmul.f32 %v1420, 0.044715
    %v1427 = vmul.f32 %v1425, %v1415
    %v1428 = vmul.f32 %v1426, %v1420
    %v1429 = vmul.f32 %v1427, %v1415
    %v1430 = vmul.f32 %v1428, %v1420
    %v1431 = vadd.f32 %v1415, %v1429
    %v1432 = vadd.f32 %v1420, %v1430
    %v1433 = vmul.f32 %v1431, 0.7978846
    %v1434 = vmul.f32 %v1432, 0.7978846
    %v1435 = vtanh.pop %v1433
    %v1436 = vtanh.pop %v1434
    %v1437 = vadd.f32 %v1435, 1.0
    %v1438 = vadd.f32 %v1436, 1.0
    %v1439 = vmul.f32 %v1423, %v1437
    %v1440 = vmul.f32 %v1424, %v1438
    %v1441 = vld [vmem:[%s19] sm:$0xff]
    %v1442 = vld [vmem:[%s19 + $0x8] sm:$0xff]
    %v1443 = vld [vmem:[%s19 + $0x10] sm:$0xff]
    %v1444 = vld [vmem:[%s19 + $0x18] sm:$0xff]
    %v1445 = vld [vmem:[%s19 + $0x20] sm:$0xff]
    %v1446 = vld [vmem:[%s19 + $0x28] sm:$0xff]
    %v1447 = vld [vmem:[%s19 + $0x30] sm:$0xff]
    %v1448 = vld [vmem:[%s19 + $0x38] sm:$0xff]
    %v1449 = vld [vmem:[%s20] sm:$0x1]
    %v1451 = vlaneseq
    %v1452 = vshrl.u32 %v1451, 7
    %v1453 = vsub.s32 0, %v1452
    %v1454 = vrot.slane %v1449, %v1453
    %vm1456 = vcmask 523264
    %v1458 = vsel %vm1456, %v1439, 0
    %v1461 = vsel %vm1456, %v1440, 0
    %1463 = vmatprep.subr.mxu0 0.0
    %1464 = vmatpush1.msra.mxu0 %v1441
    %1465 = vmatprep.subr.mxu0 0.0
    %1466 = vmatpush1.msra.mxu0 %v1442
    %1467 = vmatprep.subr.mxu0 0.0
    %1468 = vmatpush1.msra.mxu0 %v1443
    %1469 = vmatprep.subr.mxu0 0.0
    %1470 = vmatpush1.msra.mxu0 %v1444
    %1471 = vmatprep.subr.mxu0 0.0
    %1472 = vmatpush1.msra.mxu0 %v1445
    %1473 = vmatprep.subr.mxu0 0.0
    %1474 = vmatpush1.msra.mxu0 %v1446
    %1475 = vmatprep.subr.mxu0 0.0
    %1476 = vmatpush1.msra.mxu0 %v1447
    %1477 = vmatprep.subr.mxu0 0.0
    %1478 = vmatpush1.msra.mxu0 %v1448
    %1479 = vmatprep.subr.mxu0 0.0
    %1480 = vmatpush1.msra.mxu0 0.0
    %1481 = vmatprep.subr.mxu0 0.0
    %1482 = vmatpush1.msra.mxu0 0.0
    %1483 = vmatprep.subr.mxu0 0.0
    %1484 = vmatpush1.msra.mxu0 0.0
    %1485 = vmatprep.subr.mxu0 0.0
    %1486 = vmatpush1.msra.mxu0 0.0
    %1487 = vmatprep.subr.mxu0 0.0
    %1488 = vmatpush1.msra.mxu0 0.0
    %1489 = vmatprep.subr.mxu0 0.0
    %1490 = vmatpush1.msra.mxu0 0.0
    %1491 = vmatprep.subr.mxu0 0.0
    %1492 = vmatpush1.msra.mxu0 0.0
    %1493 = vmatprep.subr.mxu0 0.0
    %1494 = vmatpush1.msra.mxu0 0.0
    %1495 = vmatprep.subr.mxu0 0.0
    %1496 = vmatpush1.msra.mxu0 0.0
    %1497 = vmatprep.subr.mxu0 0.0
    %1498 = vmatpush1.msra.mxu0 0.0
    %1499 = vmatprep.subr.mxu0 0.0
    %1500 = vmatpush1.msra.mxu0 0.0
    %1501 = vmatprep.subr.mxu0 0.0
    %1502 = vmatpush1.msra.mxu0 0.0
    %1503 = vmatprep.subr.mxu0 0.0
    %1504 = vmatpush1.msra.mxu0 0.0
    %1505 = vmatprep.subr.mxu0 0.0
    %1506 = vmatpush1.msra.mxu0 0.0
    %1507 = vmatprep.subr.mxu0 0.0
    %1508 = vmatpush1.msra.mxu0 0.0
    %1509 = vmatprep.subr.mxu0 0.0
    %1510 = vmatpush1.msra.mxu0 0.0
    %1511 = vmatprep.subr.mxu0 0.0
    %1512 = vmatpush1.msra.mxu0 0.0
    %1513 = vmatprep.subr.mxu0 0.0
    %1514 = vmatpush1.msra.mxu0 0.0
    %1515 = vmatprep.subr.mxu0 0.0
    %1516 = vmatpush1.msra.mxu0 0.0
    %1517 = vmatprep.subr.mxu0 0.0
    %1518 = vmatpush1.msra.mxu0 0.0
    %1519 = vmatprep.subr.mxu0 0.0
    %1520 = vmatpush1.msra.mxu0 0.0
    %1521 = vmatprep.subr.mxu0 0.0
    %1522 = vmatpush1.msra.mxu0 0.0
    %1523 = vmatprep.subr.mxu0 0.0
    %1524 = vmatpush1.msra.mxu0 0.0
    %1525 = vmatprep.subr.mxu0 0.0
    %1526 = vmatpush1.msra.mxu0 0.0
    %1527 = vmatprep.mubr.f32.mxu0 0.0
    %1528 = vmatmul.mubr.f32.gmra.mrb[0].mxu0 %v1458
    %v1529 = vpop.f32.mrb[0].mxu0
    %v1530 = vadd.f32 %v1454, %v1529
    %v1531 = vpop.f32.mrb[0].mxu0
    %1532 = vmatprep.mubr.f32.mxu0 0.0
    %1533 = vmatmul.mubr.f32.gmra.mrb[0].mxu0 %v1461
    %v1534 = vpop.f32.mrb[0].mxu0
    %v1535 = vadd.f32 %v1454, %v1534
    %v1536 = vpop.f32.mrb[0].mxu0
    %1537 = vdwg.mxu0
    %v1538 = vadd.f32 %v1329, %v1530
    %v1539 = vadd.f32 %v1330, %v1535
    %v1540 = vld [vmem:[%s21] sm:$0x1]
    %v1541 = vld [vmem:[%s22] sm:$0x1]
    %v1542 = vsel %vm206, %v1538, 0.0
    %1543 = vadd.xlane.f32.xlu0 %v1542
    %v1544 = vpop.xlane.xlu0 %1543
    %v1545 = vsel %vm206, %v1539, 0.0
    %1546 = vadd.xlane.f32.xlu0 %v1545
    %v1547 = vpop.xlane.xlu0 %1546
    %v1548 = vmul.f32 %v1544, %v213
    %v1549 = vmul.f32 %v1547, %v213
    %v1550 = vsub.f32 %v1538, %v1548
    %v1551 = vsub.f32 %v1539, %v1549
    %v1552 = vmul.f32 %v1550, %v1550
    %v1553 = vmul.f32 %v1551, %v1551
    %v1554 = vsel %vm206, %v1552, 0.0
    %1555 = vadd.xlane.f32.xlu0 %v1554
    %v1556 = vpop.xlane.xlu0 %1555
    %v1557 = vsel %vm206, %v1553, 0.0
    %1558 = vadd.xlane.f32.xlu0 %v1557
    %v1559 = vpop.xlane.xlu0 %1558
    %v1560 = vmul.f32 %v1556, %v213
    %v1561 = vmul.f32 %v1559, %v213
    %v1562 = vadd.f32 %v1560, 1e-12
    %v1563 = vadd.f32 %v1561, 1e-12
    %v1564 = vrsqrt.pop %v1562
    %v1565 = vrsqrt.pop %v1563
    %v1566 = vmul.f32 %v1550, %v1564
    %v1567 = vmul.f32 %v1551, %v1565
    %v1569 = vlaneseq
    %v1570 = vshrl.u32 %v1569, 7
    %v1571 = vsub.s32 0, %v1570
    %v1572 = vrot.slane %v1540, %v1571
    %v1574 = vmul.f32 %v1566, %v1572
    %v1575 = vmul.f32 %v1567, %v1572
    %v1577 = vlaneseq
    %v1578 = vshrl.u32 %v1577, 7
    %v1579 = vsub.s32 0, %v1578
    %v1580 = vrot.slane %v1541, %v1579
    %v1582 = vadd.f32 %v1574, %v1580
    %v1583 = vadd.f32 %v1575, %v1580
    %s1584 = scalar_lea.vmem %s7, 32
    %v1585 = vld [vmem:[%s1584] sm:$0xff]
    %v1586 = vld [vmem:[%s1584 + $0x8] sm:$0xff]
    %v1587 = vld [vmem:[%s1584 + $0x10] sm:$0xff]
    %v1588 = vld [vmem:[%s1584 + $0x18] sm:$0xff]
    %s1589 = scalar_lea.vmem %s8, 1
    %v1590 = vld [vmem:[%s1589] sm:$0x1]
    %v1592 = vlaneseq
    %v1593 = vshrl.u32 %v1592, 7
    %v1594 = vsub.s32 0, %v1593
    %v1595 = vrot.slane %v1590, %v1594
    %v1598 = vsel %vm206, %v1582, 0
    %v1601 = vsel %vm206, %v1583, 0
    %1603 = vmatprep.subr.mxu0 0.0
    %1604 = vmatpush1.msra.mxu0 %v1585
    %1605 = vmatprep.subr.mxu0 0.0
    %1606 = vmatpush1.msra.mxu0 %v1586
    %1607 = vmatprep.subr.mxu0 0.0
    %1608 = vmatpush1.msra.mxu0 %v1587
    %1609 = vmatprep.subr.mxu0 0.0
    %1610 = vmatpush1.msra.mxu0 %v1588
    %1611 = vmatprep.subr.mxu0 0.0
    %1612 = vmatpush1.msra.mxu0 0.0
    %1613 = vmatprep.subr.mxu0 0.0
    %1614 = vmatpush1.msra.mxu0 0.0
    %1615 = vmatprep.subr.mxu0 0.0
    %1616 = vmatpush1.msra.mxu0 0.0
    %1617 = vmatprep.subr.mxu0 0.0
    %1618 = vmatpush1.msra.mxu0 0.0
    %1619 = vmatprep.subr.mxu0 0.0
    %1620 = vmatpush1.msra.mxu0 0.0
    %1621 = vmatprep.subr.mxu0 0.0
    %1622 = vmatpush1.msra.mxu0 0.0
    %1623 = vmatprep.subr.mxu0 0.0
    %1624 = vmatpush1.msra.mxu0 0.0
    %1625 = vmatprep.subr.mxu0 0.0
    %1626 = vmatpush1.msra.mxu0 0.0
    %1627 = vmatprep.subr.mxu0 0.0
    %1628 = vmatpush1.msra.mxu0 0.0
    %1629 = vmatprep.subr.mxu0 0.0
    %1630 = vmatpush1.msra.mxu0 0.0
    %1631 = vmatprep.subr.mxu0 0.0
    %1632 = vmatpush1.msra.mxu0 0.0
    %1633 = vmatprep.subr.mxu0 0.0
    %1634 = vmatpush1.msra.mxu0 0.0
    %1635 = vmatprep.subr.mxu0 0.0
    %1636 = vmatpush1.msra.mxu0 0.0
    %1637 = vmatprep.subr.mxu0 0.0
    %1638 = vmatpush1.msra.mxu0 0.0
    %1639 = vmatprep.subr.mxu0 0.0
    %1640 = vmatpush1.msra.mxu0 0.0
    %1641 = vmatprep.subr.mxu0 0.0
    %1642 = vmatpush1.msra.mxu0 0.0
    %1643 = vmatprep.subr.mxu0 0.0
    %1644 = vmatpush1.msra.mxu0 0.0
    %1645 = vmatprep.subr.mxu0 0.0
    %1646 = vmatpush1.msra.mxu0 0.0
    %1647 = vmatprep.subr.mxu0 0.0
    %1648 = vmatpush1.msra.mxu0 0.0
    %1649 = vmatprep.subr.mxu0 0.0
    %1650 = vmatpush1.msra.mxu0 0.0
    %1651 = vmatprep.subr.mxu0 0.0
    %1652 = vmatpush1.msra.mxu0 0.0
    %1653 = vmatprep.subr.mxu0 0.0
    %1654 = vmatpush1.msra.mxu0 0.0
    %1655 = vmatprep.subr.mxu0 0.0
    %1656 = vmatpush1.msra.mxu0 0.0
    %1657 = vmatprep.subr.mxu0 0.0
    %1658 = vmatpush1.msra.mxu0 0.0
    %1659 = vmatprep.subr.mxu0 0.0
    %1660 = vmatpush1.msra.mxu0 0.0
    %1661 = vmatprep.subr.mxu0 0.0
    %1662 = vmatpush1.msra.mxu0 0.0
    %1663 = vmatprep.subr.mxu0 0.0
    %1664 = vmatpush1.msra.mxu0 0.0
    %1665 = vmatprep.subr.mxu0 0.0
    %1666 = vmatpush1.msra.mxu0 0.0
    %1667 = vmatprep.mubr.f32.mxu0 0.0
    %1668 = vmatmul.mubr.f32.gmra.mrb[0].mxu0 %v1598
    %v1669 = vpop.f32.mrb[0].mxu0
    %v1670 = vadd.f32 %v1595, %v1669
    %v1671 = vpop.f32.mrb[0].mxu0
    %1672 = vmatprep.mubr.f32.mxu0 0.0
    %1673 = vmatmul.mubr.f32.gmra.mrb[0].mxu0 %v1601
    %v1674 = vpop.f32.mrb[0].mxu0
    %v1675 = vadd.f32 %v1595, %v1674
    %v1676 = vpop.f32.mrb[0].mxu0
    %1677 = vdwg.mxu0
    %v1678 = vmul.f32 %v1670, 0.25
    %v1679 = vmul.f32 %v1675, 0.25
    %s1680 = scalar_lea.vmem %s9, 32
    %v1681 = vld [vmem:[%s1680] sm:$0xff]
    %v1682 = vld [vmem:[%s1680 + $0x8] sm:$0xff]
    %v1683 = vld [vmem:[%s1680 + $0x10] sm:$0xff]
    %v1684 = vld [vmem:[%s1680 + $0x18] sm:$0xff]
    %s1685 = scalar_lea.vmem %s10, 1
    %v1686 = vld [vmem:[%s1685] sm:$0x1]
    %v1688 = vlaneseq
    %v1689 = vshrl.u32 %v1688, 7
    %v1690 = vsub.s32 0, %v1689
    %v1691 = vrot.slane %v1686, %v1690
    %1693 = vmatprep.subr.mxu0 0.0
    %1694 = vmatpush1.msra.mxu0 %v1681
    %1695 = vmatprep.subr.mxu0 0.0
    %1696 = vmatpush1.msra.mxu0 %v1682
    %1697 = vmatprep.subr.mxu0 0.0
    %1698 = vmatpush1.msra.mxu0 %v1683
    %1699 = vmatprep.subr.mxu0 0.0
    %1700 = vmatpush1.msra.mxu0 %v1684
    %1701 = vmatprep.subr.mxu0 0.0
    %1702 = vmatpush1.msra.mxu0 0.0
    %1703 = vmatprep.subr.mxu0 0.0
    %1704 = vmatpush1.msra.mxu0 0.0
    %1705 = vmatprep.subr.mxu0 0.0
    %1706 = vmatpush1.msra.mxu0 0.0
    %1707 = vmatprep.subr.mxu0 0.0
    %1708 = vmatpush1.msra.mxu0 0.0
    %1709 = vmatprep.subr.mxu0 0.0
    %1710 = vmatpush1.msra.mxu0 0.0
    %1711 = vmatprep.subr.mxu0 0.0
    %1712 = vmatpush1.msra.mxu0 0.0
    %1713 = vmatprep.subr.mxu0 0.0
    %1714 = vmatpush1.msra.mxu0 0.0
    %1715 = vmatprep.subr.mxu0 0.0
    %1716 = vmatpush1.msra.mxu0 0.0
    %1717 = vmatprep.subr.mxu0 0.0
    %1718 = vmatpush1.msra.mxu0 0.0
    %1719 = vmatprep.subr.mxu0 0.0
    %1720 = vmatpush1.msra.mxu0 0.0
    %1721 = vmatprep.subr.mxu0 0.0
    %1722 = vmatpush1.msra.mxu0 0.0
    %1723 = vmatprep.subr.mxu0 0.0
    %1724 = vmatpush1.msra.mxu0 0.0
    %1725 = vmatprep.subr.mxu0 0.0
    %1726 = vmatpush1.msra.mxu0 0.0
    %1727 = vmatprep.subr.mxu0 0.0
    %1728 = vmatpush1.msra.mxu0 0.0
    %1729 = vmatprep.subr.mxu0 0.0
    %1730 = vmatpush1.msra.mxu0 0.0
    %1731 = vmatprep.subr.mxu0 0.0
    %1732 = vmatpush1.msra.mxu0 0.0
    %1733 = vmatprep.subr.mxu0 0.0
    %1734 = vmatpush1.msra.mxu0 0.0
    %1735 = vmatprep.subr.mxu0 0.0
    %1736 = vmatpush1.msra.mxu0 0.0
    %1737 = vmatprep.subr.mxu0 0.0
    %1738 = vmatpush1.msra.mxu0 0.0
    %1739 = vmatprep.subr.mxu0 0.0
    %1740 = vmatpush1.msra.mxu0 0.0
    %1741 = vmatprep.subr.mxu0 0.0
    %1742 = vmatpush1.msra.mxu0 0.0
    %1743 = vmatprep.subr.mxu0 0.0
    %1744 = vmatpush1.msra.mxu0 0.0
    %1745 = vmatprep.subr.mxu0 0.0
    %1746 = vmatpush1.msra.mxu0 0.0
    %1747 = vmatprep.subr.mxu0 0.0
    %1748 = vmatpush1.msra.mxu0 0.0
    %1749 = vmatprep.subr.mxu0 0.0
    %1750 = vmatpush1.msra.mxu0 0.0
    %1751 = vmatprep.subr.mxu0 0.0
    %1752 = vmatpush1.msra.mxu0 0.0
    %1753 = vmatprep.subr.mxu0 0.0
    %1754 = vmatpush1.msra.mxu0 0.0
    %1755 = vmatprep.subr.mxu0 0.0
    %1756 = vmatpush1.msra.mxu0 0.0
    %1757 = vmatprep.mubr.f32.mxu0 0.0
    %1758 = vmatmul.mubr.f32.gmra.mrb[0].mxu0 %v1598
    %v1759 = vpop.f32.mrb[0].mxu0
    %v1760 = vadd.f32 %v1691, %v1759
    %v1761 = vpop.f32.mrb[0].mxu0
    %1762 = vmatprep.mubr.f32.mxu0 0.0
    %1763 = vmatmul.mubr.f32.gmra.mrb[0].mxu0 %v1601
    %v1764 = vpop.f32.mrb[0].mxu0
    %v1765 = vadd.f32 %v1691, %v1764
    %v1766 = vpop.f32.mrb[0].mxu0
    %1767 = vdwg.mxu0
    %s1768 = scalar_lea.vmem %s11, 32
    %v1769 = vld [vmem:[%s1768] sm:$0xff]
    %v1770 = vld [vmem:[%s1768 + $0x8] sm:$0xff]
    %v1771 = vld [vmem:[%s1768 + $0x10] sm:$0xff]
    %v1772 = vld [vmem:[%s1768 + $0x18] sm:$0xff]
    %s1773 = scalar_lea.vmem %s12, 1
    %v1774 = vld [vmem:[%s1773] sm:$0x1]
    %v1776 = vlaneseq
    %v1777 = vshrl.u32 %v1776, 7
    %v1778 = vsub.s32 0, %v1777
    %v1779 = vrot.slane %v1774, %v1778
    %1781 = vmatprep.subr.mxu0 0.0
    %1782 = vmatpush1.msra.mxu0 %v1769
    %1783 = vmatprep.subr.mxu0 0.0
    %1784 = vmatpush1.msra.mxu0 %v1770
    %1785 = vmatprep.subr.mxu0 0.0
    %1786 = vmatpush1.msra.mxu0 %v1771
    %1787 = vmatprep.subr.mxu0 0.0
    %1788 = vmatpush1.msra.mxu0 %v1772
    %1789 = vmatprep.subr.mxu0 0.0
    %1790 = vmatpush1.msra.mxu0 0.0
    %1791 = vmatprep.subr.mxu0 0.0
    %1792 = vmatpush1.msra.mxu0 0.0
    %1793 = vmatprep.subr.mxu0 0.0
    %1794 = vmatpush1.msra.mxu0 0.0
    %1795 = vmatprep.subr.mxu0 0.0
    %1796 = vmatpush1.msra.mxu0 0.0
    %1797 = vmatprep.subr.mxu0 0.0
    %1798 = vmatpush1.msra.mxu0 0.0
    %1799 = vmatprep.subr.mxu0 0.0
    %1800 = vmatpush1.msra.mxu0 0.0
    %1801 = vmatprep.subr.mxu0 0.0
    %1802 = vmatpush1.msra.mxu0 0.0
    %1803 = vmatprep.subr.mxu0 0.0
    %1804 = vmatpush1.msra.mxu0 0.0
    %1805 = vmatprep.subr.mxu0 0.0
    %1806 = vmatpush1.msra.mxu0 0.0
    %1807 = vmatprep.subr.mxu0 0.0
    %1808 = vmatpush1.msra.mxu0 0.0
    %1809 = vmatprep.subr.mxu0 0.0
    %1810 = vmatpush1.msra.mxu0 0.0
    %1811 = vmatprep.subr.mxu0 0.0
    %1812 = vmatpush1.msra.mxu0 0.0
    %1813 = vmatprep.subr.mxu0 0.0
    %1814 = vmatpush1.msra.mxu0 0.0
    %1815 = vmatprep.subr.mxu0 0.0
    %1816 = vmatpush1.msra.mxu0 0.0
    %1817 = vmatprep.subr.mxu0 0.0
    %1818 = vmatpush1.msra.mxu0 0.0
    %1819 = vmatprep.subr.mxu0 0.0
    %1820 = vmatpush1.msra.mxu0 0.0
    %1821 = vmatprep.subr.mxu0 0.0
    %1822 = vmatpush1.msra.mxu0 0.0
    %1823 = vmatprep.subr.mxu0 0.0
    %1824 = vmatpush1.msra.mxu0 0.0
    %1825 = vmatprep.subr.mxu0 0.0
    %1826 = vmatpush1.msra.mxu0 0.0
    %1827 = vmatprep.subr.mxu0 0.0
    %1828 = vmatpush1.msra.mxu0 0.0
    %1829 = vmatprep.subr.mxu0 0.0
    %1830 = vmatpush1.msra.mxu0 0.0
    %1831 = vmatprep.subr.mxu0 0.0
    %1832 = vmatpush1.msra.mxu0 0.0
    %1833 = vmatprep.subr.mxu0 0.0
    %1834 = vmatpush1.msra.mxu0 0.0
    %1835 = vmatprep.subr.mxu0 0.0
    %1836 = vmatpush1.msra.mxu0 0.0
    %1837 = vmatprep.subr.mxu0 0.0
    %1838 = vmatpush1.msra.mxu0 0.0
    %1839 = vmatprep.subr.mxu0 0.0
    %1840 = vmatpush1.msra.mxu0 0.0
    %1841 = vmatprep.subr.mxu0 0.0
    %1842 = vmatpush1.msra.mxu0 0.0
    %1843 = vmatprep.subr.mxu0 0.0
    %1844 = vmatpush1.msra.mxu0 0.0
    %1845 = vmatprep.mubr.f32.mxu0 0.0
    %1846 = vmatmul.mubr.f32.gmra.mrb[0].mxu0 %v1598
    %v1847 = vpop.f32.mrb[0].mxu0
    %v1848 = vadd.f32 %v1779, %v1847
    %v1849 = vpop.f32.mrb[0].mxu0
    %1850 = vmatprep.mubr.f32.mxu0 0.0
    %1851 = vmatmul.mubr.f32.gmra.mrb[0].mxu0 %v1601
    %v1852 = vpop.f32.mrb[0].mxu0
    %v1853 = vadd.f32 %v1779, %v1852
    %v1854 = vpop.f32.mrb[0].mxu0
    %1855 = vdwg.mxu0
    %v1857 = vsel %vm529, %v1678, 0
    %v1860 = vsel %vm529, %v1760, 0
    %1862 = vmatprep.subr.mxu0 0.0
    %1863 = vmatpush1.xpose.msra.mxu0 %v1860
    %1864 = vmatprep.subr.mxu0 0.0
    %1865 = vmatpush1.xpose.msra.mxu0 0.0
    %1866 = vmatprep.subr.mxu0 0.0
    %1867 = vmatpush1.xpose.msra.mxu0 0.0
    %1868 = vmatprep.subr.mxu0 0.0
    %1869 = vmatpush1.xpose.msra.mxu0 0.0
    %1870 = vmatprep.subr.mxu0 0.0
    %1871 = vmatpush1.xpose.msra.mxu0 0.0
    %1872 = vmatprep.subr.mxu0 0.0
    %1873 = vmatpush1.xpose.msra.mxu0 0.0
    %1874 = vmatprep.subr.mxu0 0.0
    %1875 = vmatpush1.xpose.msra.mxu0 0.0
    %1876 = vmatprep.subr.mxu0 0.0
    %1877 = vmatpush1.xpose.msra.mxu0 0.0
    %1878 = vmatprep.subr.mxu0 0.0
    %1879 = vmatpush1.xpose.msra.mxu0 0.0
    %1880 = vmatprep.subr.mxu0 0.0
    %1881 = vmatpush1.xpose.msra.mxu0 0.0
    %1882 = vmatprep.subr.mxu0 0.0
    %1883 = vmatpush1.xpose.msra.mxu0 0.0
    %1884 = vmatprep.subr.mxu0 0.0
    %1885 = vmatpush1.xpose.msra.mxu0 0.0
    %1886 = vmatprep.subr.mxu0 0.0
    %1887 = vmatpush1.xpose.msra.mxu0 0.0
    %1888 = vmatprep.subr.mxu0 0.0
    %1889 = vmatpush1.xpose.msra.mxu0 0.0
    %1890 = vmatprep.subr.mxu0 0.0
    %1891 = vmatpush1.xpose.msra.mxu0 0.0
    %1892 = vmatprep.subr.mxu0 0.0
    %1893 = vmatpush1.xpose.msra.mxu0 0.0
    %1894 = vmatprep.subr.mxu0 0.0
    %1895 = vmatpush1.xpose.msra.mxu0 0.0
    %1896 = vmatprep.subr.mxu0 0.0
    %1897 = vmatpush1.xpose.msra.mxu0 0.0
    %1898 = vmatprep.subr.mxu0 0.0
    %1899 = vmatpush1.xpose.msra.mxu0 0.0
    %1900 = vmatprep.subr.mxu0 0.0
    %1901 = vmatpush1.xpose.msra.mxu0 0.0
    %1902 = vmatprep.subr.mxu0 0.0
    %1903 = vmatpush1.xpose.msra.mxu0 0.0
    %1904 = vmatprep.subr.mxu0 0.0
    %1905 = vmatpush1.xpose.msra.mxu0 0.0
    %1906 = vmatprep.subr.mxu0 0.0
    %1907 = vmatpush1.xpose.msra.mxu0 0.0
    %1908 = vmatprep.subr.mxu0 0.0
    %1909 = vmatpush1.xpose.msra.mxu0 0.0
    %1910 = vmatprep.subr.mxu0 0.0
    %1911 = vmatpush1.xpose.msra.mxu0 0.0
    %1912 = vmatprep.subr.mxu0 0.0
    %1913 = vmatpush1.xpose.msra.mxu0 0.0
    %1914 = vmatprep.subr.mxu0 0.0
    %1915 = vmatpush1.xpose.msra.mxu0 0.0
    %1916 = vmatprep.subr.mxu0 0.0
    %1917 = vmatpush1.xpose.msra.mxu0 0.0
    %1918 = vmatprep.subr.mxu0 0.0
    %1919 = vmatpush1.xpose.msra.mxu0 0.0
    %1920 = vmatprep.subr.mxu0 0.0
    %1921 = vmatpush1.xpose.msra.mxu0 0.0
    %1922 = vmatprep.subr.mxu0 0.0
    %1923 = vmatpush1.xpose.msra.mxu0 0.0
    %1924 = vmatprep.subr.mxu0 0.0
    %1925 = vmatpush1.xpose.msra.mxu0 0.0
    %1926 = vmatprep.mubr.f32.mxu0 0.0
    %1927 = vmatmul.mubr.f32.gmra.mrb[0].mxu0 %v1857
    %v1928 = vpop.f32.mrb[0].mxu0
    %v1929 = vadd.f32 %v257, %v1928
    %v1930 = vpop.f32.mrb[0].mxu0
    %1931 = vdwg.mxu0
    %v1933 = vsel %vm529, %v1679, 0
    %v1936 = vsel %vm529, %v1765, 0
    %1938 = vmatprep.subr.mxu0 0.0
    %1939 = vmatpush1.xpose.msra.mxu0 %v1936
    %1940 = vmatprep.subr.mxu0 0.0
    %1941 = vmatpush1.xpose.msra.mxu0 0.0
    %1942 = vmatprep.subr.mxu0 0.0
    %1943 = vmatpush1.xpose.msra.mxu0 0.0
    %1944 = vmatprep.subr.mxu0 0.0
    %1945 = vmatpush1.xpose.msra.mxu0 0.0
    %1946 = vmatprep.subr.mxu0 0.0
    %1947 = vmatpush1.xpose.msra.mxu0 0.0
    %1948 = vmatprep.subr.mxu0 0.0
    %1949 = vmatpush1.xpose.msra.mxu0 0.0
    %1950 = vmatprep.subr.mxu0 0.0
    %1951 = vmatpush1.xpose.msra.mxu0 0.0
    %1952 = vmatprep.subr.mxu0 0.0
    %1953 = vmatpush1.xpose.msra.mxu0 0.0
    %1954 = vmatprep.subr.mxu0 0.0
    %1955 = vmatpush1.xpose.msra.mxu0 0.0
    %1956 = vmatprep.subr.mxu0 0.0
    %1957 = vmatpush1.xpose.msra.mxu0 0.0
    %1958 = vmatprep.subr.mxu0 0.0
    %1959 = vmatpush1.xpose.msra.mxu0 0.0
    %1960 = vmatprep.subr.mxu0 0.0
    %1961 = vmatpush1.xpose.msra.mxu0 0.0
    %1962 = vmatprep.subr.mxu0 0.0
    %1963 = vmatpush1.xpose.msra.mxu0 0.0
    %1964 = vmatprep.subr.mxu0 0.0
    %1965 = vmatpush1.xpose.msra.mxu0 0.0
    %1966 = vmatprep.subr.mxu0 0.0
    %1967 = vmatpush1.xpose.msra.mxu0 0.0
    %1968 = vmatprep.subr.mxu0 0.0
    %1969 = vmatpush1.xpose.msra.mxu0 0.0
    %1970 = vmatprep.subr.mxu0 0.0
    %1971 = vmatpush1.xpose.msra.mxu0 0.0
    %1972 = vmatprep.subr.mxu0 0.0
    %1973 = vmatpush1.xpose.msra.mxu0 0.0
    %1974 = vmatprep.subr.mxu0 0.0
    %1975 = vmatpush1.xpose.msra.mxu0 0.0
    %1976 = vmatprep.subr.mxu0 0.0
    %1977 = vmatpush1.xpose.msra.mxu0 0.0
    %1978 = vmatprep.subr.mxu0 0.0
    %1979 = vmatpush1.xpose.msra.mxu0 0.0
    %1980 = vmatprep.subr.mxu0 0.0
    %1981 = vmatpush1.xpose.msra.mxu0 0.0
    %1982 = vmatprep.subr.mxu0 0.0
    %1983 = vmatpush1.xpose.msra.mxu0 0.0
    %1984 = vmatprep.subr.mxu0 0.0
    %1985 = vmatpush1.xpose.msra.mxu0 0.0
    %1986 = vmatprep.subr.mxu0 0.0
    %1987 = vmatpush1.xpose.msra.mxu0 0.0
    %1988 = vmatprep.subr.mxu0 0.0
    %1989 = vmatpush1.xpose.msra.mxu0 0.0
    %1990 = vmatprep.subr.mxu0 0.0
    %1991 = vmatpush1.xpose.msra.mxu0 0.0
    %1992 = vmatprep.subr.mxu0 0.0
    %1993 = vmatpush1.xpose.msra.mxu0 0.0
    %1994 = vmatprep.subr.mxu0 0.0
    %1995 = vmatpush1.xpose.msra.mxu0 0.0
    %1996 = vmatprep.subr.mxu0 0.0
    %1997 = vmatpush1.xpose.msra.mxu0 0.0
    %1998 = vmatprep.subr.mxu0 0.0
    %1999 = vmatpush1.xpose.msra.mxu0 0.0
    %2000 = vmatprep.subr.mxu0 0.0
    %2001 = vmatpush1.xpose.msra.mxu0 0.0
    %2002 = vmatprep.mubr.f32.mxu0 0.0
    %2003 = vmatmul.mubr.f32.gmra.mrb[0].mxu0 %v1933
    %v2004 = vpop.f32.mrb[0].mxu0
    %v2005 = vadd.f32 %v262, %v2004
    %v2006 = vpop.f32.mrb[0].mxu0
    %2007 = vdwg.mxu0
    %v2008 = vsel %vm682, %v1929, -inf
    %2009 = vmax.xlane.f32.xlu0 %v2008
    %v2010 = vpop.xlane.xlu0 %2009
    %v2011 = vsel %vm682, %v2005, -inf
    %2012 = vmax.xlane.f32.xlu0 %v2011
    %v2013 = vpop.xlane.xlu0 %2012
    %v2014 = vsub.f32 %v1929, %v2010
    %v2015 = vsub.f32 %v2005, %v2013
    %v2016 = vmul.f32 %v2014, 1.442695
    %v2017 = vpow.pop %v2016
    %v2018 = vmul.f32 %v2015, 1.442695
    %v2019 = vpow.pop %v2018
    %v2020 = vsel %vm682, %v2017, 0.0
    %2021 = vadd.xlane.f32.xlu0 %v2020
    %v2022 = vpop.xlane.xlu0 %2021
    %v2023 = vsel %vm682, %v2019, 0.0
    %2024 = vadd.xlane.f32.xlu0 %v2023
    %v2025 = vpop.xlane.xlu0 %2024
    %v2026 = vrcp.pop %v2022
    %v2027 = vrcp.pop %v2025
    %v2028 = vmul.f32 %v2017, %v2026
    %v2029 = vmul.f32 %v2019, %v2027
    %v2031 = vsel %vm682, %v2028, 0
    %2033 = vmatprep.subr.mxu0 0.0
    %2034 = vmatpush1.msra.mxu0 %v1848
    %2035 = vmatprep.subr.mxu0 0.0
    %2036 = vmatpush1.msra.mxu0 0.0
    %2037 = vmatprep.subr.mxu0 0.0
    %2038 = vmatpush1.msra.mxu0 0.0
    %2039 = vmatprep.subr.mxu0 0.0
    %2040 = vmatpush1.msra.mxu0 0.0
    %2041 = vmatprep.subr.mxu0 0.0
    %2042 = vmatpush1.msra.mxu0 0.0
    %2043 = vmatprep.subr.mxu0 0.0
    %2044 = vmatpush1.msra.mxu0 0.0
    %2045 = vmatprep.subr.mxu0 0.0
    %2046 = vmatpush1.msra.mxu0 0.0
    %2047 = vmatprep.subr.mxu0 0.0
    %2048 = vmatpush1.msra.mxu0 0.0
    %2049 = vmatprep.subr.mxu0 0.0
    %2050 = vmatpush1.msra.mxu0 0.0
    %2051 = vmatprep.subr.mxu0 0.0
    %2052 = vmatpush1.msra.mxu0 0.0
    %2053 = vmatprep.subr.mxu0 0.0
    %2054 = vmatpush1.msra.mxu0 0.0
    %2055 = vmatprep.subr.mxu0 0.0
    %2056 = vmatpush1.msra.mxu0 0.0
    %2057 = vmatprep.subr.mxu0 0.0
    %2058 = vmatpush1.msra.mxu0 0.0
    %2059 = vmatprep.subr.mxu0 0.0
    %2060 = vmatpush1.msra.mxu0 0.0
    %2061 = vmatprep.subr.mxu0 0.0
    %2062 = vmatpush1.msra.mxu0 0.0
    %2063 = vmatprep.subr.mxu0 0.0
    %2064 = vmatpush1.msra.mxu0 0.0
    %2065 = vmatprep.subr.mxu0 0.0
    %2066 = vmatpush1.msra.mxu0 0.0
    %2067 = vmatprep.subr.mxu0 0.0
    %2068 = vmatpush1.msra.mxu0 0.0
    %2069 = vmatprep.subr.mxu0 0.0
    %2070 = vmatpush1.msra.mxu0 0.0
    %2071 = vmatprep.subr.mxu0 0.0
    %2072 = vmatpush1.msra.mxu0 0.0
    %2073 = vmatprep.subr.mxu0 0.0
    %2074 = vmatpush1.msra.mxu0 0.0
    %2075 = vmatprep.subr.mxu0 0.0
    %2076 = vmatpush1.msra.mxu0 0.0
    %2077 = vmatprep.subr.mxu0 0.0
    %2078 = vmatpush1.msra.mxu0 0.0
    %2079 = vmatprep.subr.mxu0 0.0
    %2080 = vmatpush1.msra.mxu0 0.0
    %2081 = vmatprep.subr.mxu0 0.0
    %2082 = vmatpush1.msra.mxu0 0.0
    %2083 = vmatprep.subr.mxu0 0.0
    %2084 = vmatpush1.msra.mxu0 0.0
    %2085 = vmatprep.subr.mxu0 0.0
    %2086 = vmatpush1.msra.mxu0 0.0
    %2087 = vmatprep.subr.mxu0 0.0
    %2088 = vmatpush1.msra.mxu0 0.0
    %2089 = vmatprep.subr.mxu0 0.0
    %2090 = vmatpush1.msra.mxu0 0.0
    %2091 = vmatprep.subr.mxu0 0.0
    %2092 = vmatpush1.msra.mxu0 0.0
    %2093 = vmatprep.subr.mxu0 0.0
    %2094 = vmatpush1.msra.mxu0 0.0
    %2095 = vmatprep.subr.mxu0 0.0
    %2096 = vmatpush1.msra.mxu0 0.0
    %2097 = vmatprep.mubr.f32.mxu0 0.0
    %2098 = vmatmul.mubr.f32.gmra.mrb[0].mxu0 %v2031
    %v2099 = vpop.f32.mrb[0].mxu0
    %v2100 = vadd.f32 0.0, %v2099
    %v2101 = vpop.f32.mrb[0].mxu0
    %2102 = vdwg.mxu0
    %v2104 = vsel %vm682, %v2029, 0
    %2106 = vmatprep.subr.mxu0 0.0
    %2107 = vmatpush1.msra.mxu0 %v1853
    %2108 = vmatprep.subr.mxu0 0.0
    %2109 = vmatpush1.msra.mxu0 0.0
    %2110 = vmatprep.subr.mxu0 0.0
    %2111 = vmatpush1.msra.mxu0 0.0
    %2112 = vmatprep.subr.mxu0 0.0
    %2113 = vmatpush1.msra.mxu0 0.0
    %2114 = vmatprep.subr.mxu0 0.0
    %2115 = vmatpush1.msra.mxu0 0.0
    %2116 = vmatprep.subr.mxu0 0.0
    %2117 = vmatpush1.msra.mxu0 0.0
    %2118 = vmatprep.subr.mxu0 0.0
    %2119 = vmatpush1.msra.mxu0 0.0
    %2120 = vmatprep.subr.mxu0 0.0
    %2121 = vmatpush1.msra.mxu0 0.0
    %2122 = vmatprep.subr.mxu0 0.0
    %2123 = vmatpush1.msra.mxu0 0.0
    %2124 = vmatprep.subr.mxu0 0.0
    %2125 = vmatpush1.msra.mxu0 0.0
    %2126 = vmatprep.subr.mxu0 0.0
    %2127 = vmatpush1.msra.mxu0 0.0
    %2128 = vmatprep.subr.mxu0 0.0
    %2129 = vmatpush1.msra.mxu0 0.0
    %2130 = vmatprep.subr.mxu0 0.0
    %2131 = vmatpush1.msra.mxu0 0.0
    %2132 = vmatprep.subr.mxu0 0.0
    %2133 = vmatpush1.msra.mxu0 0.0
    %2134 = vmatprep.subr.mxu0 0.0
    %2135 = vmatpush1.msra.mxu0 0.0
    %2136 = vmatprep.subr.mxu0 0.0
    %2137 = vmatpush1.msra.mxu0 0.0
    %2138 = vmatprep.subr.mxu0 0.0
    %2139 = vmatpush1.msra.mxu0 0.0
    %2140 = vmatprep.subr.mxu0 0.0
    %2141 = vmatpush1.msra.mxu0 0.0
    %2142 = vmatprep.subr.mxu0 0.0
    %2143 = vmatpush1.msra.mxu0 0.0
    %2144 = vmatprep.subr.mxu0 0.0
    %2145 = vmatpush1.msra.mxu0 0.0
    %2146 = vmatprep.subr.mxu0 0.0
    %2147 = vmatpush1.msra.mxu0 0.0
    %2148 = vmatprep.subr.mxu0 0.0
    %2149 = vmatpush1.msra.mxu0 0.0
    %2150 = vmatprep.subr.mxu0 0.0
    %2151 = vmatpush1.msra.mxu0 0.0
    %2152 = vmatprep.subr.mxu0 0.0
    %2153 = vmatpush1.msra.mxu0 0.0
    %2154 = vmatprep.subr.mxu0 0.0
    %2155 = vmatpush1.msra.mxu0 0.0
    %2156 = vmatprep.subr.mxu0 0.0
    %2157 = vmatpush1.msra.mxu0 0.0
    %2158 = vmatprep.subr.mxu0 0.0
    %2159 = vmatpush1.msra.mxu0 0.0
    %2160 = vmatprep.subr.mxu0 0.0
    %2161 = vmatpush1.msra.mxu0 0.0
    %2162 = vmatprep.subr.mxu0 0.0
    %2163 = vmatpush1.msra.mxu0 0.0
    %2164 = vmatprep.subr.mxu0 0.0
    %2165 = vmatpush1.msra.mxu0 0.0
    %2166 = vmatprep.subr.mxu0 0.0
    %2167 = vmatpush1.msra.mxu0 0.0
    %2168 = vmatprep.subr.mxu0 0.0
    %2169 = vmatpush1.msra.mxu0 0.0
    %2170 = vmatprep.mubr.f32.mxu0 0.0
    %2171 = vmatmul.mubr.f32.gmra.mrb[0].mxu0 %v2104
    %v2172 = vpop.f32.mrb[0].mxu0
    %v2173 = vadd.f32 0.0, %v2172
    %v2174 = vpop.f32.mrb[0].mxu0
    %2175 = vdwg.mxu0
    %2176 = vrot.lane.b32.xlu0 %v1678, 112
    %v2177 = vpop.permute.xlu0 %2176
    %2178 = vrot.lane.b32.xlu0 %v1760, 112
    %v2179 = vpop.permute.xlu0 %2178
    %v2180 = vsel %vm529, %v2177, 0
    %v2182 = vsel %vm529, %v2179, 0
    %2184 = vmatprep.subr.mxu0 0.0
    %2185 = vmatpush1.xpose.msra.mxu0 %v2182
    %2186 = vmatprep.subr.mxu0 0.0
    %2187 = vmatpush1.xpose.msra.mxu0 0.0
    %2188 = vmatprep.subr.mxu0 0.0
    %2189 = vmatpush1.xpose.msra.mxu0 0.0
    %2190 = vmatprep.subr.mxu0 0.0
    %2191 = vmatpush1.xpose.msra.mxu0 0.0
    %2192 = vmatprep.subr.mxu0 0.0
    %2193 = vmatpush1.xpose.msra.mxu0 0.0
    %2194 = vmatprep.subr.mxu0 0.0
    %2195 = vmatpush1.xpose.msra.mxu0 0.0
    %2196 = vmatprep.subr.mxu0 0.0
    %2197 = vmatpush1.xpose.msra.mxu0 0.0
    %2198 = vmatprep.subr.mxu0 0.0
    %2199 = vmatpush1.xpose.msra.mxu0 0.0
    %2200 = vmatprep.subr.mxu0 0.0
    %2201 = vmatpush1.xpose.msra.mxu0 0.0
    %2202 = vmatprep.subr.mxu0 0.0
    %2203 = vmatpush1.xpose.msra.mxu0 0.0
    %2204 = vmatprep.subr.mxu0 0.0
    %2205 = vmatpush1.xpose.msra.mxu0 0.0
    %2206 = vmatprep.subr.mxu0 0.0
    %2207 = vmatpush1.xpose.msra.mxu0 0.0
    %2208 = vmatprep.subr.mxu0 0.0
    %2209 = vmatpush1.xpose.msra.mxu0 0.0
    %2210 = vmatprep.subr.mxu0 0.0
    %2211 = vmatpush1.xpose.msra.mxu0 0.0
    %2212 = vmatprep.subr.mxu0 0.0
    %2213 = vmatpush1.xpose.msra.mxu0 0.0
    %2214 = vmatprep.subr.mxu0 0.0
    %2215 = vmatpush1.xpose.msra.mxu0 0.0
    %2216 = vmatprep.subr.mxu0 0.0
    %2217 = vmatpush1.xpose.msra.mxu0 0.0
    %2218 = vmatprep.subr.mxu0 0.0
    %2219 = vmatpush1.xpose.msra.mxu0 0.0
    %2220 = vmatprep.subr.mxu0 0.0
    %2221 = vmatpush1.xpose.msra.mxu0 0.0
    %2222 = vmatprep.subr.mxu0 0.0
    %2223 = vmatpush1.xpose.msra.mxu0 0.0
    %2224 = vmatprep.subr.mxu0 0.0
    %2225 = vmatpush1.xpose.msra.mxu0 0.0
    %2226 = vmatprep.subr.mxu0 0.0
    %2227 = vmatpush1.xpose.msra.mxu0 0.0
    %2228 = vmatprep.subr.mxu0 0.0
    %2229 = vmatpush1.xpose.msra.mxu0 0.0
    %2230 = vmatprep.subr.mxu0 0.0
    %2231 = vmatpush1.xpose.msra.mxu0 0.0
    %2232 = vmatprep.subr.mxu0 0.0
    %2233 = vmatpush1.xpose.msra.mxu0 0.0
    %2234 = vmatprep.subr.mxu0 0.0
    %2235 = vmatpush1.xpose.msra.mxu0 0.0
    %2236 = vmatprep.subr.mxu0 0.0
    %2237 = vmatpush1.xpose.msra.mxu0 0.0
    %2238 = vmatprep.subr.mxu0 0.0
    %2239 = vmatpush1.xpose.msra.mxu0 0.0
    %2240 = vmatprep.subr.mxu0 0.0
    %2241 = vmatpush1.xpose.msra.mxu0 0.0
    %2242 = vmatprep.subr.mxu0 0.0
    %2243 = vmatpush1.xpose.msra.mxu0 0.0
    %2244 = vmatprep.subr.mxu0 0.0
    %2245 = vmatpush1.xpose.msra.mxu0 0.0
    %2246 = vmatprep.subr.mxu0 0.0
    %2247 = vmatpush1.xpose.msra.mxu0 0.0
    %2248 = vmatprep.mubr.f32.mxu0 0.0
    %2249 = vmatmul.mubr.f32.gmra.mrb[0].mxu0 %v2180
    %v2250 = vpop.f32.mrb[0].mxu0
    %v2251 = vadd.f32 %v257, %v2250
    %v2252 = vpop.f32.mrb[0].mxu0
    %2253 = vdwg.mxu0
    %2254 = vrot.lane.b32.xlu0 %v1679, 112
    %v2255 = vpop.permute.xlu0 %2254
    %2256 = vrot.lane.b32.xlu0 %v1765, 112
    %v2257 = vpop.permute.xlu0 %2256
    %v2258 = vsel %vm529, %v2255, 0
    %v2260 = vsel %vm529, %v2257, 0
    %2262 = vmatprep.subr.mxu0 0.0
    %2263 = vmatpush1.xpose.msra.mxu0 %v2260
    %2264 = vmatprep.subr.mxu0 0.0
    %2265 = vmatpush1.xpose.msra.mxu0 0.0
    %2266 = vmatprep.subr.mxu0 0.0
    %2267 = vmatpush1.xpose.msra.mxu0 0.0
    %2268 = vmatprep.subr.mxu0 0.0
    %2269 = vmatpush1.xpose.msra.mxu0 0.0
    %2270 = vmatprep.subr.mxu0 0.0
    %2271 = vmatpush1.xpose.msra.mxu0 0.0
    %2272 = vmatprep.subr.mxu0 0.0
    %2273 = vmatpush1.xpose.msra.mxu0 0.0
    %2274 = vmatprep.subr.mxu0 0.0
    %2275 = vmatpush1.xpose.msra.mxu0 0.0
    %2276 = vmatprep.subr.mxu0 0.0
    %2277 = vmatpush1.xpose.msra.mxu0 0.0
    %2278 = vmatprep.subr.mxu0 0.0
    %2279 = vmatpush1.xpose.msra.mxu0 0.0
    %2280 = vmatprep.subr.mxu0 0.0
    %2281 = vmatpush1.xpose.msra.mxu0 0.0
    %2282 = vmatprep.subr.mxu0 0.0
    %2283 = vmatpush1.xpose.msra.mxu0 0.0
    %2284 = vmatprep.subr.mxu0 0.0
    %2285 = vmatpush1.xpose.msra.mxu0 0.0
    %2286 = vmatprep.subr.mxu0 0.0
    %2287 = vmatpush1.xpose.msra.mxu0 0.0
    %2288 = vmatprep.subr.mxu0 0.0
    %2289 = vmatpush1.xpose.msra.mxu0 0.0
    %2290 = vmatprep.subr.mxu0 0.0
    %2291 = vmatpush1.xpose.msra.mxu0 0.0
    %2292 = vmatprep.subr.mxu0 0.0
    %2293 = vmatpush1.xpose.msra.mxu0 0.0
    %2294 = vmatprep.subr.mxu0 0.0
    %2295 = vmatpush1.xpose.msra.mxu0 0.0
    %2296 = vmatprep.subr.mxu0 0.0
    %2297 = vmatpush1.xpose.msra.mxu0 0.0
    %2298 = vmatprep.subr.mxu0 0.0
    %2299 = vmatpush1.xpose.msra.mxu0 0.0
    %2300 = vmatprep.subr.mxu0 0.0
    %2301 = vmatpush1.xpose.msra.mxu0 0.0
    %2302 = vmatprep.subr.mxu0 0.0
    %2303 = vmatpush1.xpose.msra.mxu0 0.0
    %2304 = vmatprep.subr.mxu0 0.0
    %2305 = vmatpush1.xpose.msra.mxu0 0.0
    %2306 = vmatprep.subr.mxu0 0.0
    %2307 = vmatpush1.xpose.msra.mxu0 0.0
    %2308 = vmatprep.subr.mxu0 0.0
    %2309 = vmatpush1.xpose.msra.mxu0 0.0
    %2310 = vmatprep.subr.mxu0 0.0
    %2311 = vmatpush1.xpose.msra.mxu0 0.0
    %2312 = vmatprep.subr.mxu0 0.0
    %2313 = vmatpush1.xpose.msra.mxu0 0.0
    %2314 = vmatprep.subr.mxu0 0.0
    %2315 = vmatpush1.xpose.msra.mxu0 0.0
    %2316 = vmatprep.subr.mxu0 0.0
    %2317 = vmatpush1.xpose.msra.mxu0 0.0
    %2318 = vmatprep.subr.mxu0 0.0
    %2319 = vmatpush1.xpose.msra.mxu0 0.0
    %2320 = vmatprep.subr.mxu0 0.0
    %2321 = vmatpush1.xpose.msra.mxu0 0.0
    %2322 = vmatprep.subr.mxu0 0.0
    %2323 = vmatpush1.xpose.msra.mxu0 0.0
    %2324 = vmatprep.subr.mxu0 0.0
    %2325 = vmatpush1.xpose.msra.mxu0 0.0
    %2326 = vmatprep.mubr.f32.mxu0 0.0
    %2327 = vmatmul.mubr.f32.gmra.mrb[0].mxu0 %v2258
    %v2328 = vpop.f32.mrb[0].mxu0
    %v2329 = vadd.f32 %v262, %v2328
    %v2330 = vpop.f32.mrb[0].mxu0
    %2331 = vdwg.mxu0
    %v2332 = vsel %vm682, %v2251, -inf
    %2333 = vmax.xlane.f32.xlu0 %v2332
    %v2334 = vpop.xlane.xlu0 %2333
    %v2335 = vsel %vm682, %v2329, -inf
    %2336 = vmax.xlane.f32.xlu0 %v2335
    %v2337 = vpop.xlane.xlu0 %2336
    %v2338 = vsub.f32 %v2251, %v2334
    %v2339 = vsub.f32 %v2329, %v2337
    %v2340 = vmul.f32 %v2338, 1.442695
    %v2341 = vpow.pop %v2340
    %v2342 = vmul.f32 %v2339, 1.442695
    %v2343 = vpow.pop %v2342
    %v2344 = vsel %vm682, %v2341, 0.0
    %2345 = vadd.xlane.f32.xlu0 %v2344
    %v2346 = vpop.xlane.xlu0 %2345
    %v2347 = vsel %vm682, %v2343, 0.0
    %2348 = vadd.xlane.f32.xlu0 %v2347
    %v2349 = vpop.xlane.xlu0 %2348
    %v2350 = vrcp.pop %v2346
    %v2351 = vrcp.pop %v2349
    %v2352 = vmul.f32 %v2341, %v2350
    %v2353 = vmul.f32 %v2343, %v2351
    %2355 = vrot.lane.b32.xlu0 %v1848, 112
    %v2356 = vpop.permute.xlu0 %2355
    %v2359 = vsel %vm682, %v2352, 0
    %2361 = vmatprep.subr.mxu0 0.0
    %2362 = vmatpush1.msra.mxu0 %v2356
    %2363 = vmatprep.subr.mxu0 0.0
    %2364 = vmatpush1.msra.mxu0 0.0
    %2365 = vmatprep.subr.mxu0 0.0
    %2366 = vmatpush1.msra.mxu0 0.0
    %2367 = vmatprep.subr.mxu0 0.0
    %2368 = vmatpush1.msra.mxu0 0.0
    %2369 = vmatprep.subr.mxu0 0.0
    %2370 = vmatpush1.msra.mxu0 0.0
    %2371 = vmatprep.subr.mxu0 0.0
    %2372 = vmatpush1.msra.mxu0 0.0
    %2373 = vmatprep.subr.mxu0 0.0
    %2374 = vmatpush1.msra.mxu0 0.0
    %2375 = vmatprep.subr.mxu0 0.0
    %2376 = vmatpush1.msra.mxu0 0.0
    %2377 = vmatprep.subr.mxu0 0.0
    %2378 = vmatpush1.msra.mxu0 0.0
    %2379 = vmatprep.subr.mxu0 0.0
    %2380 = vmatpush1.msra.mxu0 0.0
    %2381 = vmatprep.subr.mxu0 0.0
    %2382 = vmatpush1.msra.mxu0 0.0
    %2383 = vmatprep.subr.mxu0 0.0
    %2384 = vmatpush1.msra.mxu0 0.0
    %2385 = vmatprep.subr.mxu0 0.0
    %2386 = vmatpush1.msra.mxu0 0.0
    %2387 = vmatprep.subr.mxu0 0.0
    %2388 = vmatpush1.msra.mxu0 0.0
    %2389 = vmatprep.subr.mxu0 0.0
    %2390 = vmatpush1.msra.mxu0 0.0
    %2391 = vmatprep.subr.mxu0 0.0
    %2392 = vmatpush1.msra.mxu0 0.0
    %2393 = vmatprep.subr.mxu0 0.0
    %2394 = vmatpush1.msra.mxu0 0.0
    %2395 = vmatprep.subr.mxu0 0.0
    %2396 = vmatpush1.msra.mxu0 0.0
    %2397 = vmatprep.subr.mxu0 0.0
    %2398 = vmatpush1.msra.mxu0 0.0
    %2399 = vmatprep.subr.mxu0 0.0
    %2400 = vmatpush1.msra.mxu0 0.0
    %2401 = vmatprep.subr.mxu0 0.0
    %2402 = vmatpush1.msra.mxu0 0.0
    %2403 = vmatprep.subr.mxu0 0.0
    %2404 = vmatpush1.msra.mxu0 0.0
    %2405 = vmatprep.subr.mxu0 0.0
    %2406 = vmatpush1.msra.mxu0 0.0
    %2407 = vmatprep.subr.mxu0 0.0
    %2408 = vmatpush1.msra.mxu0 0.0
    %2409 = vmatprep.subr.mxu0 0.0
    %2410 = vmatpush1.msra.mxu0 0.0
    %2411 = vmatprep.subr.mxu0 0.0
    %2412 = vmatpush1.msra.mxu0 0.0
    %2413 = vmatprep.subr.mxu0 0.0
    %2414 = vmatpush1.msra.mxu0 0.0
    %2415 = vmatprep.subr.mxu0 0.0
    %2416 = vmatpush1.msra.mxu0 0.0
    %2417 = vmatprep.subr.mxu0 0.0
    %2418 = vmatpush1.msra.mxu0 0.0
    %2419 = vmatprep.subr.mxu0 0.0
    %2420 = vmatpush1.msra.mxu0 0.0
    %2421 = vmatprep.subr.mxu0 0.0
    %2422 = vmatpush1.msra.mxu0 0.0
    %2423 = vmatprep.subr.mxu0 0.0
    %2424 = vmatpush1.msra.mxu0 0.0
    %2425 = vmatprep.mubr.f32.mxu0 0.0
    %2426 = vmatmul.mubr.f32.gmra.mrb[0].mxu0 %v2359
    %v2427 = vpop.f32.mrb[0].mxu0
    %v2428 = vadd.f32 0.0, %v2427
    %v2429 = vpop.f32.mrb[0].mxu0
    %2430 = vdwg.mxu0
    %2432 = vrot.lane.b32.xlu0 %v1853, 112
    %v2433 = vpop.permute.xlu0 %2432
    %v2436 = vsel %vm682, %v2353, 0
    %2438 = vmatprep.subr.mxu0 0.0
    %2439 = vmatpush1.msra.mxu0 %v2433
    %2440 = vmatprep.subr.mxu0 0.0
    %2441 = vmatpush1.msra.mxu0 0.0
    %2442 = vmatprep.subr.mxu0 0.0
    %2443 = vmatpush1.msra.mxu0 0.0
    %2444 = vmatprep.subr.mxu0 0.0
    %2445 = vmatpush1.msra.mxu0 0.0
    %2446 = vmatprep.subr.mxu0 0.0
    %2447 = vmatpush1.msra.mxu0 0.0
    %2448 = vmatprep.subr.mxu0 0.0
    %2449 = vmatpush1.msra.mxu0 0.0
    %2450 = vmatprep.subr.mxu0 0.0
    %2451 = vmatpush1.msra.mxu0 0.0
    %2452 = vmatprep.subr.mxu0 0.0
    %2453 = vmatpush1.msra.mxu0 0.0
    %2454 = vmatprep.subr.mxu0 0.0
    %2455 = vmatpush1.msra.mxu0 0.0
    %2456 = vmatprep.subr.mxu0 0.0
    %2457 = vmatpush1.msra.mxu0 0.0
    %2458 = vmatprep.subr.mxu0 0.0
    %2459 = vmatpush1.msra.mxu0 0.0
    %2460 = vmatprep.subr.mxu0 0.0
    %2461 = vmatpush1.msra.mxu0 0.0
    %2462 = vmatprep.subr.mxu0 0.0
    %2463 = vmatpush1.msra.mxu0 0.0
    %2464 = vmatprep.subr.mxu0 0.0
    %2465 = vmatpush1.msra.mxu0 0.0
    %2466 = vmatprep.subr.mxu0 0.0
    %2467 = vmatpush1.msra.mxu0 0.0
    %2468 = vmatprep.subr.mxu0 0.0
    %2469 = vmatpush1.msra.mxu0 0.0
    %2470 = vmatprep.subr.mxu0 0.0
    %2471 = vmatpush1.msra.mxu0 0.0
    %2472 = vmatprep.subr.mxu0 0.0
    %2473 = vmatpush1.msra.mxu0 0.0
    %2474 = vmatprep.subr.mxu0 0.0
    %2475 = vmatpush1.msra.mxu0 0.0
    %2476 = vmatprep.subr.mxu0 0.0
    %2477 = vmatpush1.msra.mxu0 0.0
    %2478 = vmatprep.subr.mxu0 0.0
    %2479 = vmatpush1.msra.mxu0 0.0
    %2480 = vmatprep.subr.mxu0 0.0
    %2481 = vmatpush1.msra.mxu0 0.0
    %2482 = vmatprep.subr.mxu0 0.0
    %2483 = vmatpush1.msra.mxu0 0.0
    %2484 = vmatprep.subr.mxu0 0.0
    %2485 = vmatpush1.msra.mxu0 0.0
    %2486 = vmatprep.subr.mxu0 0.0
    %2487 = vmatpush1.msra.mxu0 0.0
    %2488 = vmatprep.subr.mxu0 0.0
    %2489 = vmatpush1.msra.mxu0 0.0
    %2490 = vmatprep.subr.mxu0 0.0
    %2491 = vmatpush1.msra.mxu0 0.0
    %2492 = vmatprep.subr.mxu0 0.0
    %2493 = vmatpush1.msra.mxu0 0.0
    %2494 = vmatprep.subr.mxu0 0.0
    %2495 = vmatpush1.msra.mxu0 0.0
    %2496 = vmatprep.subr.mxu0 0.0
    %2497 = vmatpush1.msra.mxu0 0.0
    %2498 = vmatprep.subr.mxu0 0.0
    %2499 = vmatpush1.msra.mxu0 0.0
    %2500 = vmatprep.subr.mxu0 0.0
    %2501 = vmatpush1.msra.mxu0 0.0
    %2502 = vmatprep.mubr.f32.mxu0 0.0
    %2503 = vmatmul.mubr.f32.gmra.mrb[0].mxu0 %v2436
    %v2504 = vpop.f32.mrb[0].mxu0
    %v2505 = vadd.f32 0.0, %v2504
    %v2506 = vpop.f32.mrb[0].mxu0
    %2507 = vdwg.mxu0
    %2510 = vrot.lane.b32.xlu0 %v2428, 16
    %v2511 = vpop.permute.xlu0 %2510
    %2512 = vrot.lane.b32.xlu0 %v2505, 16
    %v2513 = vpop.permute.xlu0 %2512
    %v2516 = vsel %vm529, %v2100, %v2511
    %v2517 = vsel %vm529, %v2173, %v2513
    %s2518 = scalar_lea.vmem %s13, 32
    %v2519 = vld [vmem:[%s2518] sm:$0xff]
    %v2520 = vld [vmem:[%s2518 + $0x8] sm:$0xff]
    %v2521 = vld [vmem:[%s2518 + $0x10] sm:$0xff]
    %v2522 = vld [vmem:[%s2518 + $0x18] sm:$0xff]
    %s2523 = scalar_lea.vmem %s14, 1
    %v2524 = vld [vmem:[%s2523] sm:$0x1]
    %v2526 = vlaneseq
    %v2527 = vshrl.u32 %v2526, 7
    %v2528 = vsub.s32 0, %v2527
    %v2529 = vrot.slane %v2524, %v2528
    %v2532 = vsel %vm206, %v2516, 0
    %v2535 = vsel %vm206, %v2517, 0
    %2537 = vmatprep.subr.mxu0 0.0
    %2538 = vmatpush1.msra.mxu0 %v2519
    %2539 = vmatprep.subr.mxu0 0.0
    %2540 = vmatpush1.msra.mxu0 %v2520
    %2541 = vmatprep.subr.mxu0 0.0
    %2542 = vmatpush1.msra.mxu0 %v2521
    %2543 = vmatprep.subr.mxu0 0.0
    %2544 = vmatpush1.msra.mxu0 %v2522
    %2545 = vmatprep.subr.mxu0 0.0
    %2546 = vmatpush1.msra.mxu0 0.0
    %2547 = vmatprep.subr.mxu0 0.0
    %2548 = vmatpush1.msra.mxu0 0.0
    %2549 = vmatprep.subr.mxu0 0.0
    %2550 = vmatpush1.msra.mxu0 0.0
    %2551 = vmatprep.subr.mxu0 0.0
    %2552 = vmatpush1.msra.mxu0 0.0
    %2553 = vmatprep.subr.mxu0 0.0
    %2554 = vmatpush1.msra.mxu0 0.0
    %2555 = vmatprep.subr.mxu0 0.0
    %2556 = vmatpush1.msra.mxu0 0.0
    %2557 = vmatprep.subr.mxu0 0.0
    %2558 = vmatpush1.msra.mxu0 0.0
    %2559 = vmatprep.subr.mxu0 0.0
    %2560 = vmatpush1.msra.mxu0 0.0
    %2561 = vmatprep.subr.mxu0 0.0
    %2562 = vmatpush1.msra.mxu0 0.0
    %2563 = vmatprep.subr.mxu0 0.0
    %2564 = vmatpush1.msra.mxu0 0.0
    %2565 = vmatprep.subr.mxu0 0.0
    %2566 = vmatpush1.msra.mxu0 0.0
    %2567 = vmatprep.subr.mxu0 0.0
    %2568 = vmatpush1.msra.mxu0 0.0
    %2569 = vmatprep.subr.mxu0 0.0
    %2570 = vmatpush1.msra.mxu0 0.0
    %2571 = vmatprep.subr.mxu0 0.0
    %2572 = vmatpush1.msra.mxu0 0.0
    %2573 = vmatprep.subr.mxu0 0.0
    %2574 = vmatpush1.msra.mxu0 0.0
    %2575 = vmatprep.subr.mxu0 0.0
    %2576 = vmatpush1.msra.mxu0 0.0
    %2577 = vmatprep.subr.mxu0 0.0
    %2578 = vmatpush1.msra.mxu0 0.0
    %2579 = vmatprep.subr.mxu0 0.0
    %2580 = vmatpush1.msra.mxu0 0.0
    %2581 = vmatprep.subr.mxu0 0.0
    %2582 = vmatpush1.msra.mxu0 0.0
    %2583 = vmatprep.subr.mxu0 0.0
    %2584 = vmatpush1.msra.mxu0 0.0
    %2585 = vmatprep.subr.mxu0 0.0
    %2586 = vmatpush1.msra.mxu0 0.0
    %2587 = vmatprep.subr.mxu0 0.0
    %2588 = vmatpush1.msra.mxu0 0.0
    %2589 = vmatprep.subr.mxu0 0.0
    %2590 = vmatpush1.msra.mxu0 0.0
    %2591 = vmatprep.subr.mxu0 0.0
    %2592 = vmatpush1.msra.mxu0 0.0
    %2593 = vmatprep.subr.mxu0 0.0
    %2594 = vmatpush1.msra.mxu0 0.0
    %2595 = vmatprep.subr.mxu0 0.0
    %2596 = vmatpush1.msra.mxu0 0.0
    %2597 = vmatprep.subr.mxu0 0.0
    %2598 = vmatpush1.msra.mxu0 0.0
    %2599 = vmatprep.subr.mxu0 0.0
    %2600 = vmatpush1.msra.mxu0 0.0
    %2601 = vmatprep.mubr.f32.mxu0 0.0
    %2602 = vmatmul.mubr.f32.gmra.mrb[0].mxu0 %v2532
    %v2603 = vpop.f32.mrb[0].mxu0
    %v2604 = vadd.f32 %v2529, %v2603
    %v2605 = vpop.f32.mrb[0].mxu0
    %2606 = vmatprep.mubr.f32.mxu0 0.0
    %2607 = vmatmul.mubr.f32.gmra.mrb[0].mxu0 %v2535
    %v2608 = vpop.f32.mrb[0].mxu0
    %v2609 = vadd.f32 %v2529, %v2608
    %v2610 = vpop.f32.mrb[0].mxu0
    %2611 = vdwg.mxu0
    %v2612 = vadd.f32 %v1582, %v2604
    %v2613 = vadd.f32 %v1583, %v2609
    %s2614 = scalar_lea.vmem %s15, 1
    %v2615 = vld [vmem:[%s2614] sm:$0x1]
    %s2616 = scalar_lea.vmem %s16, 1
    %v2617 = vld [vmem:[%s2616] sm:$0x1]
    %v2618 = vsel %vm206, %v2612, 0.0
    %2619 = vadd.xlane.f32.xlu0 %v2618
    %v2620 = vpop.xlane.xlu0 %2619
    %v2621 = vsel %vm206, %v2613, 0.0
    %2622 = vadd.xlane.f32.xlu0 %v2621
    %v2623 = vpop.xlane.xlu0 %2622
    %v2624 = vmul.f32 %v2620, %v213
    %v2625 = vmul.f32 %v2623, %v213
    %v2626 = vsub.f32 %v2612, %v2624
    %v2627 = vsub.f32 %v2613, %v2625
    %v2628 = vmul.f32 %v2626, %v2626
    %v2629 = vmul.f32 %v2627, %v2627
    %v2630 = vsel %vm206, %v2628, 0.0
    %2631 = vadd.xlane.f32.xlu0 %v2630
    %v2632 = vpop.xlane.xlu0 %2631
    %v2633 = vsel %vm206, %v2629, 0.0
    %2634 = vadd.xlane.f32.xlu0 %v2633
    %v2635 = vpop.xlane.xlu0 %2634
    %v2636 = vmul.f32 %v2632, %v213
    %v2637 = vmul.f32 %v2635, %v213
    %v2638 = vadd.f32 %v2636, 1e-12
    %v2639 = vadd.f32 %v2637, 1e-12
    %v2640 = vrsqrt.pop %v2638
    %v2641 = vrsqrt.pop %v2639
    %v2642 = vmul.f32 %v2626, %v2640
    %v2643 = vmul.f32 %v2627, %v2641
    %v2645 = vlaneseq
    %v2646 = vshrl.u32 %v2645, 7
    %v2647 = vsub.s32 0, %v2646
    %v2648 = vrot.slane %v2615, %v2647
    %v2650 = vmul.f32 %v2642, %v2648
    %v2651 = vmul.f32 %v2643, %v2648
    %v2653 = vlaneseq
    %v2654 = vshrl.u32 %v2653, 7
    %v2655 = vsub.s32 0, %v2654
    %v2656 = vrot.slane %v2617, %v2655
    %v2658 = vadd.f32 %v2650, %v2656
    %v2659 = vadd.f32 %v2651, %v2656
    %s2660 = scalar_lea.vmem %s17, 32
    %v2661 = vld [vmem:[%s2660] sm:$0xff]
    %v2662 = vld [vmem:[%s2660 + $0x8] sm:$0xff]
    %v2663 = vld [vmem:[%s2660 + $0x10] sm:$0xff]
    %v2664 = vld [vmem:[%s2660 + $0x18] sm:$0xff]
    %s2665 = scalar_lea.vmem %s18, 1
    %v2666 = vld [vmem:[%s2665] sm:$0x1]
    %v2668 = vlaneseq
    %v2669 = vshrl.u32 %v2668, 7
    %v2670 = vsub.s32 0, %v2669
    %v2671 = vrot.slane %v2666, %v2670
    %v2674 = vsel %vm206, %v2658, 0
    %v2677 = vsel %vm206, %v2659, 0
    %2679 = vmatprep.subr.mxu0 0.0
    %2680 = vmatpush1.msra.mxu0 %v2661
    %2681 = vmatprep.subr.mxu0 0.0
    %2682 = vmatpush1.msra.mxu0 %v2662
    %2683 = vmatprep.subr.mxu0 0.0
    %2684 = vmatpush1.msra.mxu0 %v2663
    %2685 = vmatprep.subr.mxu0 0.0
    %2686 = vmatpush1.msra.mxu0 %v2664
    %2687 = vmatprep.subr.mxu0 0.0
    %2688 = vmatpush1.msra.mxu0 0.0
    %2689 = vmatprep.subr.mxu0 0.0
    %2690 = vmatpush1.msra.mxu0 0.0
    %2691 = vmatprep.subr.mxu0 0.0
    %2692 = vmatpush1.msra.mxu0 0.0
    %2693 = vmatprep.subr.mxu0 0.0
    %2694 = vmatpush1.msra.mxu0 0.0
    %2695 = vmatprep.subr.mxu0 0.0
    %2696 = vmatpush1.msra.mxu0 0.0
    %2697 = vmatprep.subr.mxu0 0.0
    %2698 = vmatpush1.msra.mxu0 0.0
    %2699 = vmatprep.subr.mxu0 0.0
    %2700 = vmatpush1.msra.mxu0 0.0
    %2701 = vmatprep.subr.mxu0 0.0
    %2702 = vmatpush1.msra.mxu0 0.0
    %2703 = vmatprep.subr.mxu0 0.0
    %2704 = vmatpush1.msra.mxu0 0.0
    %2705 = vmatprep.subr.mxu0 0.0
    %2706 = vmatpush1.msra.mxu0 0.0
    %2707 = vmatprep.subr.mxu0 0.0
    %2708 = vmatpush1.msra.mxu0 0.0
    %2709 = vmatprep.subr.mxu0 0.0
    %2710 = vmatpush1.msra.mxu0 0.0
    %2711 = vmatprep.subr.mxu0 0.0
    %2712 = vmatpush1.msra.mxu0 0.0
    %2713 = vmatprep.subr.mxu0 0.0
    %2714 = vmatpush1.msra.mxu0 0.0
    %2715 = vmatprep.subr.mxu0 0.0
    %2716 = vmatpush1.msra.mxu0 0.0
    %2717 = vmatprep.subr.mxu0 0.0
    %2718 = vmatpush1.msra.mxu0 0.0
    %2719 = vmatprep.subr.mxu0 0.0
    %2720 = vmatpush1.msra.mxu0 0.0
    %2721 = vmatprep.subr.mxu0 0.0
    %2722 = vmatpush1.msra.mxu0 0.0
    %2723 = vmatprep.subr.mxu0 0.0
    %2724 = vmatpush1.msra.mxu0 0.0
    %2725 = vmatprep.subr.mxu0 0.0
    %2726 = vmatpush1.msra.mxu0 0.0
    %2727 = vmatprep.subr.mxu0 0.0
    %2728 = vmatpush1.msra.mxu0 0.0
    %2729 = vmatprep.subr.mxu0 0.0
    %2730 = vmatpush1.msra.mxu0 0.0
    %2731 = vmatprep.subr.mxu0 0.0
    %2732 = vmatpush1.msra.mxu0 0.0
    %2733 = vmatprep.subr.mxu0 0.0
    %2734 = vmatpush1.msra.mxu0 0.0
    %2735 = vmatprep.subr.mxu0 0.0
    %2736 = vmatpush1.msra.mxu0 0.0
    %2737 = vmatprep.subr.mxu0 0.0
    %2738 = vmatpush1.msra.mxu0 0.0
    %2739 = vmatprep.subr.mxu0 0.0
    %2740 = vmatpush1.msra.mxu0 0.0
    %2741 = vmatprep.subr.mxu0 0.0
    %2742 = vmatpush1.msra.mxu0 0.0
    %2743 = vmatprep.mubr.f32.mxu0 0.0
    %2744 = vmatmul.mubr.f32.gmra.mrb[0].mxu0 %v2674
    %v2745 = vpop.f32.mrb[0].mxu0
    %v2746 = vadd.f32 %v2671, %v2745
    %v2747 = vpop.f32.mrb[0].mxu0
    %2748 = vmatprep.mubr.f32.mxu0 0.0
    %2749 = vmatmul.mubr.f32.gmra.mrb[0].mxu0 %v2677
    %v2750 = vpop.f32.mrb[0].mxu0
    %v2751 = vadd.f32 %v2671, %v2750
    %v2752 = vpop.f32.mrb[0].mxu0
    %2753 = vdwg.mxu0
    %v2754 = vmul.f32 %v2746, 0.5
    %v2755 = vmul.f32 %v2751, 0.5
    %v2756 = vmul.f32 %v2746, 0.044715
    %v2757 = vmul.f32 %v2751, 0.044715
    %v2758 = vmul.f32 %v2756, %v2746
    %v2759 = vmul.f32 %v2757, %v2751
    %v2760 = vmul.f32 %v2758, %v2746
    %v2761 = vmul.f32 %v2759, %v2751
    %v2762 = vadd.f32 %v2746, %v2760
    %v2763 = vadd.f32 %v2751, %v2761
    %v2764 = vmul.f32 %v2762, 0.7978846
    %v2765 = vmul.f32 %v2763, 0.7978846
    %v2766 = vtanh.pop %v2764
    %v2767 = vtanh.pop %v2765
    %v2768 = vadd.f32 %v2766, 1.0
    %v2769 = vadd.f32 %v2767, 1.0
    %v2770 = vmul.f32 %v2754, %v2768
    %v2771 = vmul.f32 %v2755, %v2769
    %s2772 = scalar_lea.vmem %s19, 64
    %v2773 = vld [vmem:[%s2772] sm:$0xff]
    %v2774 = vld [vmem:[%s2772 + $0x8] sm:$0xff]
    %v2775 = vld [vmem:[%s2772 + $0x10] sm:$0xff]
    %v2776 = vld [vmem:[%s2772 + $0x18] sm:$0xff]
    %v2777 = vld [vmem:[%s2772 + $0x20] sm:$0xff]
    %v2778 = vld [vmem:[%s2772 + $0x28] sm:$0xff]
    %v2779 = vld [vmem:[%s2772 + $0x30] sm:$0xff]
    %v2780 = vld [vmem:[%s2772 + $0x38] sm:$0xff]
    %s2781 = scalar_lea.vmem %s20, 1
    %v2782 = vld [vmem:[%s2781] sm:$0x1]
    %v2784 = vlaneseq
    %v2785 = vshrl.u32 %v2784, 7
    %v2786 = vsub.s32 0, %v2785
    %v2787 = vrot.slane %v2782, %v2786
    %v2790 = vsel %vm1456, %v2770, 0
    %v2793 = vsel %vm1456, %v2771, 0
    %2795 = vmatprep.subr.mxu0 0.0
    %2796 = vmatpush1.msra.mxu0 %v2773
    %2797 = vmatprep.subr.mxu0 0.0
    %2798 = vmatpush1.msra.mxu0 %v2774
    %2799 = vmatprep.subr.mxu0 0.0
    %2800 = vmatpush1.msra.mxu0 %v2775
    %2801 = vmatprep.subr.mxu0 0.0
    %2802 = vmatpush1.msra.mxu0 %v2776
    %2803 = vmatprep.subr.mxu0 0.0
    %2804 = vmatpush1.msra.mxu0 %v2777
    %2805 = vmatprep.subr.mxu0 0.0
    %2806 = vmatpush1.msra.mxu0 %v2778
    %2807 = vmatprep.subr.mxu0 0.0
    %2808 = vmatpush1.msra.mxu0 %v2779
    %2809 = vmatprep.subr.mxu0 0.0
    %2810 = vmatpush1.msra.mxu0 %v2780
    %2811 = vmatprep.subr.mxu0 0.0
    %2812 = vmatpush1.msra.mxu0 0.0
    %2813 = vmatprep.subr.mxu0 0.0
    %2814 = vmatpush1.msra.mxu0 0.0
    %2815 = vmatprep.subr.mxu0 0.0
    %2816 = vmatpush1.msra.mxu0 0.0
    %2817 = vmatprep.subr.mxu0 0.0
    %2818 = vmatpush1.msra.mxu0 0.0
    %2819 = vmatprep.subr.mxu0 0.0
    %2820 = vmatpush1.msra.mxu0 0.0
    %2821 = vmatprep.subr.mxu0 0.0
    %2822 = vmatpush1.msra.mxu0 0.0
    %2823 = vmatprep.subr.mxu0 0.0
    %2824 = vmatpush1.msra.mxu0 0.0
    %2825 = vmatprep.subr.mxu0 0.0
    %2826 = vmatpush1.msra.mxu0 0.0
    %2827 = vmatprep.subr.mxu0 0.0
    %2828 = vmatpush1.msra.mxu0 0.0
    %2829 = vmatprep.subr.mxu0 0.0
    %2830 = vmatpush1.msra.mxu0 0.0
    %2831 = vmatprep.subr.mxu0 0.0
    %2832 = vmatpush1.msra.mxu0 0.0
    %2833 = vmatprep.subr.mxu0 0.0
    %2834 = vmatpush1.msra.mxu0 0.0
    %2835 = vmatprep.subr.mxu0 0.0
    %2836 = vmatpush1.msra.mxu0 0.0
    %2837 = vmatprep.subr.mxu0 0.0
    %2838 = vmatpush1.msra.mxu0 0.0
    %2839 = vmatprep.subr.mxu0 0.0
    %2840 = vmatpush1.msra.mxu0 0.0
    %2841 = vmatprep.subr.mxu0 0.0
    %2842 = vmatpush1.msra.mxu0 0.0
    %2843 = vmatprep.subr.mxu0 0.0
    %2844 = vmatpush1.msra.mxu0 0.0
    %2845 = vmatprep.subr.mxu0 0.0
    %2846 = vmatpush1.msra.mxu0 0.0
    %2847 = vmatprep.subr.mxu0 0.0
    %2848 = vmatpush1.msra.mxu0 0.0
    %2849 = vmatprep.subr.mxu0 0.0
    %2850 = vmatpush1.msra.mxu0 0.0
    %2851 = vmatprep.subr.mxu0 0.0
    %2852 = vmatpush1.msra.mxu0 0.0
    %2853 = vmatprep.subr.mxu0 0.0
    %2854 = vmatpush1.msra.mxu0 0.0
    %2855 = vmatprep.subr.mxu0 0.0
    %2856 = vmatpush1.msra.mxu0 0.0
    %2857 = vmatprep.subr.mxu0 0.0
    %2858 = vmatpush1.msra.mxu0 0.0
    %2859 = vmatprep.mubr.f32.mxu0 0.0
    %2860 = vmatmul.mubr.f32.gmra.mrb[0].mxu0 %v2790
    %v2861 = vpop.f32.mrb[0].mxu0
    %v2862 = vadd.f32 %v2787, %v2861
    %v2863 = vpop.f32.mrb[0].mxu0
    %2864 = vmatprep.mubr.f32.mxu0 0.0
    %2865 = vmatmul.mubr.f32.gmra.mrb[0].mxu0 %v2793
    %v2866 = vpop.f32.mrb[0].mxu0
    %v2867 = vadd.f32 %v2787, %v2866
    %v2868 = vpop.f32.mrb[0].mxu0
    %2869 = vdwg.mxu0
    %v2870 = vadd.f32 %v2658, %v2862
    %v2871 = vadd.f32 %v2659, %v2867
    %s2872 = scalar_lea.vmem %s21, 1
    %v2873 = vld [vmem:[%s2872] sm:$0x1]
    %s2874 = scalar_lea.vmem %s22, 1
    %v2875 = vld [vmem:[%s2874] sm:$0x1]
    %v2876 = vsel %vm206, %v2870, 0.0
    %2877 = vadd.xlane.f32.xlu0 %v2876
    %v2878 = vpop.xlane.xlu0 %2877
    %v2879 = vsel %vm206, %v2871, 0.0
    %2880 = vadd.xlane.f32.xlu0 %v2879
    %v2881 = vpop.xlane.xlu0 %2880
    %v2882 = vmul.f32 %v2878, %v213
    %v2883 = vmul.f32 %v2881, %v213
    %v2884 = vsub.f32 %v2870, %v2882
    %v2885 = vsub.f32 %v2871, %v2883
    %v2886 = vmul.f32 %v2884, %v2884
    %v2887 = vmul.f32 %v2885, %v2885
    %v2888 = vsel %vm206, %v2886, 0.0
    %2889 = vadd.xlane.f32.xlu0 %v2888
    %v2890 = vpop.xlane.xlu0 %2889
    %v2891 = vsel %vm206, %v2887, 0.0
    %2892 = vadd.xlane.f32.xlu0 %v2891
    %v2893 = vpop.xlane.xlu0 %2892
    %v2894 = vmul.f32 %v2890, %v213
    %v2895 = vmul.f32 %v2893, %v213
    %v2896 = vadd.f32 %v2894, 1e-12
    %v2897 = vadd.f32 %v2895, 1e-12
    %v2898 = vrsqrt.pop %v2896
    %v2899 = vrsqrt.pop %v2897
    %v2900 = vmul.f32 %v2884, %v2898
    %v2901 = vmul.f32 %v2885, %v2899
    %v2903 = vlaneseq
    %v2904 = vshrl.u32 %v2903, 7
    %v2905 = vsub.s32 0, %v2904
    %v2906 = vrot.slane %v2873, %v2905
    %v2908 = vmul.f32 %v2900, %v2906
    %v2909 = vmul.f32 %v2901, %v2906
    %v2911 = vlaneseq
    %v2912 = vshrl.u32 %v2911, 7
    %v2913 = vsub.s32 0, %v2912
    %v2914 = vrot.slane %v2875, %v2913
    %v2916 = vadd.f32 %v2908, %v2914
    %v2917 = vadd.f32 %v2909, %v2914
    %v2918 = vld [vmem:[%s23] sm:$0xff]
    %v2919 = vld [vmem:[%s23 + $0x8] sm:$0xff]
    %v2920 = vld [vmem:[%s23 + $0x10] sm:$0xff]
    %v2921 = vld [vmem:[%s23 + $0x18] sm:$0xff]
    %v2922 = vld [vmem:[%s24] sm:$0x1]
    %v2924 = vlaneseq
    %v2925 = vshrl.u32 %v2924, 7
    %v2926 = vsub.s32 0, %v2925
    %v2927 = vrot.slane %v2922, %v2926
    %v2930 = vsel %vm206, %v2916, 0
    %v2933 = vsel %vm206, %v2917, 0
    %2935 = vmatprep.subr.mxu0 0.0
    %2936 = vmatpush1.msra.mxu0 %v2918
    %2937 = vmatprep.subr.mxu0 0.0
    %2938 = vmatpush1.msra.mxu0 %v2919
    %2939 = vmatprep.subr.mxu0 0.0
    %2940 = vmatpush1.msra.mxu0 %v2920
    %2941 = vmatprep.subr.mxu0 0.0
    %2942 = vmatpush1.msra.mxu0 %v2921
    %2943 = vmatprep.subr.mxu0 0.0
    %2944 = vmatpush1.msra.mxu0 0.0
    %2945 = vmatprep.subr.mxu0 0.0
    %2946 = vmatpush1.msra.mxu0 0.0
    %2947 = vmatprep.subr.mxu0 0.0
    %2948 = vmatpush1.msra.mxu0 0.0
    %2949 = vmatprep.subr.mxu0 0.0
    %2950 = vmatpush1.msra.mxu0 0.0
    %2951 = vmatprep.subr.mxu0 0.0
    %2952 = vmatpush1.msra.mxu0 0.0
    %2953 = vmatprep.subr.mxu0 0.0
    %2954 = vmatpush1.msra.mxu0 0.0
    %2955 = vmatprep.subr.mxu0 0.0
    %2956 = vmatpush1.msra.mxu0 0.0
    %2957 = vmatprep.subr.mxu0 0.0
    %2958 = vmatpush1.msra.mxu0 0.0
    %2959 = vmatprep.subr.mxu0 0.0
    %2960 = vmatpush1.msra.mxu0 0.0
    %2961 = vmatprep.subr.mxu0 0.0
    %2962 = vmatpush1.msra.mxu0 0.0
    %2963 = vmatprep.subr.mxu0 0.0
    %2964 = vmatpush1.msra.mxu0 0.0
    %2965 = vmatprep.subr.mxu0 0.0
    %2966 = vmatpush1.msra.mxu0 0.0
    %2967 = vmatprep.subr.mxu0 0.0
    %2968 = vmatpush1.msra.mxu0 0.0
    %2969 = vmatprep.subr.mxu0 0.0
    %2970 = vmatpush1.msra.mxu0 0.0
    %2971 = vmatprep.subr.mxu0 0.0
    %2972 = vmatpush1.msra.mxu0 0.0
    %2973 = vmatprep.subr.mxu0 0.0
    %2974 = vmatpush1.msra.mxu0 0.0
    %2975 = vmatprep.subr.mxu0 0.0
    %2976 = vmatpush1.msra.mxu0 0.0
    %2977 = vmatprep.subr.mxu0 0.0
    %2978 = vmatpush1.msra.mxu0 0.0
    %2979 = vmatprep.subr.mxu0 0.0
    %2980 = vmatpush1.msra.mxu0 0.0
    %2981 = vmatprep.subr.mxu0 0.0
    %2982 = vmatpush1.msra.mxu0 0.0
    %2983 = vmatprep.subr.mxu0 0.0
    %2984 = vmatpush1.msra.mxu0 0.0
    %2985 = vmatprep.subr.mxu0 0.0
    %2986 = vmatpush1.msra.mxu0 0.0
    %2987 = vmatprep.subr.mxu0 0.0
    %2988 = vmatpush1.msra.mxu0 0.0
    %2989 = vmatprep.subr.mxu0 0.0
    %2990 = vmatpush1.msra.mxu0 0.0
    %2991 = vmatprep.subr.mxu0 0.0
    %2992 = vmatpush1.msra.mxu0 0.0
    %2993 = vmatprep.subr.mxu0 0.0
    %2994 = vmatpush1.msra.mxu0 0.0
    %2995 = vmatprep.subr.mxu0 0.0
    %2996 = vmatpush1.msra.mxu0 0.0
    %2997 = vmatprep.subr.mxu0 0.0
    %2998 = vmatpush1.msra.mxu0 0.0
    %2999 = vmatprep.mubr.f32.mxu0 0.0
    %3000 = vmatmul.mubr.f32.gmra.mrb[0].mxu0 %v2930
    %v3001 = vpop.f32.mrb[0].mxu0
    %v3002 = vadd.f32 %v2927, %v3001
    %v3003 = vpop.f32.mrb[0].mxu0
    %3004 = vmatprep.mubr.f32.mxu0 0.0
    %3005 = vmatmul.mubr.f32.gmra.mrb[0].mxu0 %v2933
    %v3006 = vpop.f32.mrb[0].mxu0
    %v3007 = vadd.f32 %v2927, %v3006
    %v3008 = vpop.f32.mrb[0].mxu0
    %3009 = vdwg.mxu0
    %3010 = vst [vmem:[#allocation4] sm:$0xff] %v3002
    %3011 = vst [vmem:[#allocation4 + $0x8] sm:$0xff] %v3007
    // Predicated region
    $region98: #{sft_forward.1} parent=1 // pred_check
      _
    $region99: #{sft_forward.1} parent=1 // pred_check_branch
      %3013 = sbr.rel (0) target = $region101
    $region100: #{sft_forward.1} parent=1 // pred_region
      %s3015 = ssub.s32 256, 256
      %3016 = vsyncadd [#allocation5], %s3015
      %s3017 = sshll.u32 [#allocation4], 4
      %s3018 = int_to_ptr.vmem [resolvable:$true] %s3017
      %3023 = dma.vmem_to_hbm [thread:$0]  %s3018, 256, %s25, [#allocation5], 128, 128, 8
    $region101: #{sft_forward.1} parent=1 // pred_fallthru
      _
    // Predicated region
    $region102: #{sft_forward.1} parent=1 // pred_check
      _
    $region103: #{sft_forward.1} parent=1 // pred_check_branch
      %3025 = sbr.rel (0) target = $region105
    $region104: #{sft_forward.1} parent=1 // pred_region
      %3026 = dma.done [#allocation5], 256
    $region105: #{sft_forward.1} parent=1 // pred_fallthru
      _
    %3027 = vsyncpa [#allocation5], 1

</llo_original>
